<compile_context>
chip_gen: v7x
topology: tpu7x:2x2x1
jax: 0.10.0
libtpu: 0.0.40
codegen_flags: <defaults>
</compile_context>

<pallas_src>
import math
import functools

import jax
import jax.numpy as jnp
from jax import lax
from jax.experimental import pallas as pl
from jax.experimental.pallas import tpu as pltpu


# ----------------------------------------------------------------------------
# helpers
# ----------------------------------------------------------------------------
def _silu(x):
    return x * jax.nn.sigmoid(x)


def _dot(a, b):
    return jnp.dot(a, b, preferred_element_type=jnp.float32)


# ----------------------------------------------------------------------------
# Kernel 1: prologue — edgenn MLP (Linear -> SiLU -> Linear), row-tiled
# ----------------------------------------------------------------------------
def edgenn_kernel(x_ref, w1_ref, b1_ref, w2_ref, b2_ref, o_ref):
    bf16 = jnp.bfloat16
    h = _silu(_dot(x_ref[...].astype(bf16), w1_ref[...]) + b1_ref[...])
    o_ref[...] = _dot(h.astype(bf16), w2_ref[...]) + b2_ref[...]


# ----------------------------------------------------------------------------
# Kernel 2: fused conv loop — grid step l: (l==0: readout 0 | l>0: conv layer l
# + readout l).  Activation and the per-atom accumulator stay resident in VMEM.
# ----------------------------------------------------------------------------
def fused_layer_kernel(src_ref, dst_ref, natom_ref,             # scalar prefetch (SMEM)
                       x_ref, rbf_ref, sbf_ref,                 # grid-invariant inputs
                       wx_ref, bx_ref, wr_ref, ws_ref, wo_ref, bo_ref,
                       w_cc_ref, b_cc_ref,
                       ro_wr_ref, ro_w1_ref, ro_b1_ref, ro_w2_ref, ro_b2_ref,
                       out_ref,                                 # (A,1) resident accumulator
                       act_ref, h_ref, agg_ref, sbfg_ref, hg_ref, atom_ref):
    bf16 = jnp.bfloat16
    l = pl.program_id(0)
    n_nodes = x_ref.shape[0]
    n_edges = sbf_ref.shape[0]

    @pl.when(l == 0)
    def _init():
        act_ref[...] = x_ref[...]
        out_ref[...] = jnp.zeros_like(out_ref)

    @pl.when(l > 0)
    def _conv_block():
        x0 = act_ref[...]                                  # residual for the big skip
        # --- DNMP directional message passing (index gather/scatter, exact f32) ---
        # TODO(synk): exact DNMP definition not provided; canonical DimeNet block used.
        rbf_gate = _dot(rbf_ref[...].astype(bf16), wr_ref[...])                 # [N, IE]
        h_ref[...] = _silu(_dot(x0.astype(bf16), wx_ref[...]) + bx_ref[...]) * rbf_gate
        sbfg_ref[...] = _dot(sbf_ref[...].astype(bf16), ws_ref[...])            # [E, IE]
        agg_ref[...] = jnp.zeros_like(agg_ref)

        # TODO(synk): batch edges by destination tile for large E (serial loop here).
        def edge_body(e, carry):
            s = src_ref[e]
            d = dst_ref[e]
            msg = h_ref[pl.ds(s, 1), :] * sbfg_ref[pl.ds(e, 1), :]
            agg_ref[pl.ds(d, 1), :] = agg_ref[pl.ds(d, 1), :] + msg
            return carry
        lax.fori_loop(0, n_edges, edge_body, 0)

        out = _silu(_dot(agg_ref[...].astype(bf16), wo_ref[...]) + bo_ref[...])
        # --- LayerNorm (per-row over channels, eps=1e-8, no affine) ---
        # TODO(synk): reference LayerNorm takes a `batch` arg; per-row norm assumed.
        mu = jnp.mean(out, axis=-1, keepdims=True)
        var = jnp.mean((out - mu) * (out - mu), axis=-1, keepdims=True)
        out = (out - mu) * jax.lax.rsqrt(var + 1e-8)

        # packed per-layer [C,C] weights: 0,1=bf_skip  2=dense_bf_skip  3..6=af_skip
        def res_layer(t, k):
            # TODO(synk): ResidualLayer definition not given; canonical DimeNet form.
            hh = _silu(_dot(t.astype(bf16), w_cc_ref[k]) + b_cc_ref[k:k + 1, :])
            hh = _silu(_dot(hh.astype(bf16), w_cc_ref[k + 1]) + b_cc_ref[k + 1:k + 2, :])
            return t + hh

        out = res_layer(out, 0)                                               # bf_skip
        out = _silu(_dot(out.astype(bf16), w_cc_ref[2]) + b_cc_ref[2:3, :]) + x0  # dense+AF+skip
        out = res_layer(out, 3)                                               # af_skip[0]
        out = res_layer(out, 5)                                               # af_skip[1]
        act_ref[...] = out

    # --- AtomWise readout `l` (exact-f32 node->atom scatter-add), accumulated ---
    # TODO(synk): AtomWise definition not provided; canonical rbf-gated readout used.
    hg_ref[...] = act_ref[...] * _dot(rbf_ref[...].astype(bf16), ro_wr_ref[...])   # [N, C]
    atom_ref[...] = jnp.zeros_like(atom_ref)

    def node_body(i, carry):
        a = natom_ref[i]
        atom_ref[pl.ds(a, 1), :] = atom_ref[pl.ds(a, 1), :] + hg_ref[pl.ds(i, 1), :]
        return carry
    lax.fori_loop(0, n_nodes, node_body, 0)

    h1 = _silu(_dot(atom_ref[...].astype(bf16), ro_w1_ref[...]) + ro_b1_ref[...])   # [A, C]
    # 1-column Linear as VPU mul + lane reduce (no near-empty MXU push)
    per_atom = jnp.sum(h1 * ro_w2_ref[...], axis=-1, keepdims=True) + ro_b2_ref[...]
    out_ref[...] = out_ref[...] + per_atom


# ----------------------------------------------------------------------------
# Parameter init (deterministic, Glorot-style; Glorot_Ortho_ not bit-exact)
# ----------------------------------------------------------------------------
def _glorot(key, fan_in, fan_out):
    std = math.sqrt(2.0 / (fan_in + fan_out))
    return std * jax.random.normal(key, (fan_in, fan_out), jnp.float32)


def init_params(key, conv_layers, emb_size, sbf_dim, rbf_dim, in_channels, int_emb):
    keys = iter(jax.random.split(key, 256))
    nk = lambda: next(keys)
    C = in_channels
    p = {}
    p["edgenn"] = dict(w1=_glorot(nk(), emb_size, emb_size), b1=jnp.zeros((1, emb_size)),
                       w2=_glorot(nk(), emb_size, emb_size), b2=jnp.zeros((1, emb_size)))
    p["convs"] = [dict(wx=_glorot(nk(), C, int_emb), bx=jnp.zeros((1, int_emb)),
                       wr=_glorot(nk(), rbf_dim, int_emb),
                       ws=_glorot(nk(), sbf_dim, int_emb),
                       wo=_glorot(nk(), int_emb, C), bo=jnp.zeros((1, C)))
                  for _ in range(conv_layers)]
    p["readouts"] = [dict(wr=_glorot(nk(), rbf_dim, C),
                          w1=_glorot(nk(), C, C), b1=jnp.zeros((1, C)),
                          w2=_glorot(nk(), C, 1), b2=jnp.zeros((1, 1)))
                     for _ in range(conv_layers + 1)]
    res = lambda: dict(w1=_glorot(nk(), C, C), b1=jnp.zeros((1, C)),
                       w2=_glorot(nk(), C, C), b2=jnp.zeros((1, C)))
    p["bf_skip"] = [res() for _ in range(conv_layers)]
    p["af_skip"] = [(res(), res()) for _ in range(conv_layers)]
    p["dense_bf_skip"] = [dict(w=_glorot(nk(), C, C), b=jnp.zeros((1, C)))
                          for _ in range(conv_layers)]
    return p


def pack_params(params):
    """Stack per-layer weights along a leading dim (front-padded with a dummy
    slot so grid step 0 = readout-only).  MXU operands in bf16, biases f32."""
    bf16, f32 = jnp.bfloat16, jnp.float32
    convs = params["convs"]
    ros = params["readouts"]
    L = len(convs)

    def front_pad(x):                       # prepend a zero "layer-0 dummy" slot
        return jnp.concatenate([jnp.zeros_like(x[:1]), x], axis=0)

    conv_wx = front_pad(jnp.stack([c["wx"] for c in convs])).astype(bf16)   # [L+1,C,IE]
    conv_bx = front_pad(jnp.stack([c["bx"] for c in convs])).astype(f32)    # [L+1,1,IE]
    conv_wr = front_pad(jnp.stack([c["wr"] for c in convs])).astype(bf16)   # [L+1,rbf,IE]
    conv_ws = front_pad(jnp.stack([c["ws"] for c in convs])).astype(bf16)   # [L+1,sbf,IE]
    conv_wo = front_pad(jnp.stack([c["wo"] for c in convs])).astype(bf16)   # [L+1,IE,C]
    conv_bo = front_pad(jnp.stack([c["bo"] for c in convs])).astype(f32)    # [L+1,1,C]

    def layer_cc(i):
        bf = params["bf_skip"][i]
        dn = params["dense_bf_skip"][i]
        a1, a2 = params["af_skip"][i]
        ws_ = [bf["w1"], bf["w2"], dn["w"], a1["w1"], a1["w2"], a2["w1"], a2["w2"]]
        bs_ = [bf["b1"], bf["b2"], dn["b"], a1["b1"], a1["b2"], a2["b1"], a2["b2"]]
        return jnp.stack(ws_), jnp.stack([b[0] for b in bs_])
    w_cc = front_pad(jnp.stack([layer_cc(i)[0] for i in range(L)])).astype(bf16)  # [L+1,7,C,C]
    b_cc = front_pad(jnp.stack([layer_cc(i)[1] for i in range(L)])).astype(f32)   # [L+1,7,C]

    ro_wr = jnp.stack([r["wr"] for r in ros]).astype(bf16)          # [L+1,rbf,C]
    ro_w1 = jnp.stack([r["w1"] for r in ros]).astype(bf16)          # [L+1,C,C]
    ro_b1 = jnp.stack([r["b1"] for r in ros]).astype(f32)           # [L+1,1,C]
    ro_w2 = jnp.stack([r["w2"].T for r in ros]).astype(f32)         # [L+1,1,C] row vector
    ro_b2 = jnp.stack([r["b2"] for r in ros]).astype(f32)           # [L+1,1,1]

    e = params["edgenn"]
    return dict(conv_wx=conv_wx, conv_bx=conv_bx, conv_wr=conv_wr, conv_ws=conv_ws,
                conv_wo=conv_wo, conv_bo=conv_bo,
                w_cc=w_cc, b_cc=b_cc,
                ro_wr=ro_wr, ro_w1=ro_w1, ro_b1=ro_b1, ro_w2=ro_w2, ro_b2=ro_b2,
                edge_w1=e["w1"].astype(jnp.bfloat16), edge_b1=e["b1"].astype(f32),
                edge_w2=e["w2"].astype(jnp.bfloat16), edge_b2=e["b2"].astype(f32))


def _fused_vmem_limit(N, E, A, C, IE, rbf_dim, sbf_dim):
    """Explicit VMEM budget: >= 2x the resident-set estimate, capped at 56 MiB
    (fits v7x's 64 MiB physical VMEM; well above v5e/v6e scoped defaults)."""
    f32b, bf16b = 4, 2
    invariant = 2 * f32b * (N * C + N * rbf_dim + E * sbf_dim)           # double-buffered inputs
    weights = 2 * (bf16b * (C * IE + rbf_dim * IE + sbf_dim * IE + IE * C
                            + 7 * C * C + rbf_dim * C + C * C)
                   + f32b * (IE + C + 7 * C + C + C + 1))                # double-buffered per-layer
    out = 2 * f32b * A
    scratch = f32b * (N * C + 2 * N * IE + E * IE + N * C + A * C)
    est = invariant + weights + out + scratch
    return int(min(56 * 1024 * 1024, max(32 * 1024 * 1024, 2 * est)))


# ----------------------------------------------------------------------------
# Forward
# ----------------------------------------------------------------------------
def noattn_forward(packed, x, edge_attr, edge_index, edge_sbf, node_rbf,
                   edge_index_0, atom_batch, *, num_graphs):
    f32 = jnp.float32
    N, C = x.shape
    E = edge_index.shape[1]
    A = atom_batch.shape[0]                 # num_atoms
    G = num_graphs
    Lp1, _, IE = packed["conv_wx"].shape    # conv_layers + 1
    rbf_dim = node_rbf.shape[1]
    sbf_dim = edge_sbf.shape[1]
    Ne, emb = edge_attr.shape

    # --- prologue: edgenn MLP, row-tiled 'parallel' grid ---
    tile = Ne if Ne <= 512 else 512
    edge_out = pl.pallas_call(
        edgenn_kernel,
        out_shape=jax.ShapeDtypeStruct((Ne, emb), f32),
        grid=(pl.cdiv(Ne, tile),),
        in_specs=[pl.BlockSpec((tile, emb), lambda i: (i, 0)),
                  pl.BlockSpec((emb, emb), lambda i: (0, 0)),
                  pl.BlockSpec((1, emb), lambda i: (0, 0)),
                  pl.BlockSpec((emb, emb), lambda i: (0, 0)),
                  pl.BlockSpec((1, emb), lambda i: (0, 0))],
        out_specs=pl.BlockSpec((tile, emb), lambda i: (i, 0)),
        compiler_params=pltpu.CompilerParams(
            dimension_semantics=("parallel",), vmem_limit_bytes=32 * 1024 * 1024),
    )(edge_attr, packed["edge_w1"], packed["edge_b1"],
      packed["edge_w2"], packed["edge_b2"])

    # --- fused conv loop + readouts: one launch, layer grid axis, index-based
    #     gather/scatter via scalar-prefetched SMEM indices ---
    # TODO(synk): on v7x add a second 'parallel' row-tile axis (2 TensorCores)
    #             and pipeline_mode=pl.Buffered(1) on the grid-invariant inputs.
    grid_spec = pltpu.PrefetchScalarGridSpec(
        num_scalar_prefetch=3,
        grid=(Lp1,),
        in_specs=[
            pl.BlockSpec((N, C), lambda l, *_: (0, 0)),               # x (used at l==0)
            pl.BlockSpec((N, rbf_dim), lambda l, *_: (0, 0)),         # node_rbf (resident)
            pl.BlockSpec((E, sbf_dim), lambda l, *_: (0, 0)),         # edge_sbf (resident)
            pl.BlockSpec((None, C, IE), lambda l, *_: (l, 0, 0)),     # conv wx
            pl.BlockSpec((None, 1, IE), lambda l, *_: (l, 0, 0)),     # conv bx
            pl.BlockSpec((None, rbf_dim, IE), lambda l, *_: (l, 0, 0)),  # conv rbf gate W
            pl.BlockSpec((None, sbf_dim, IE), lambda l, *_: (l, 0, 0)),  # conv sbf gate W
            pl.BlockSpec((None, IE, C), lambda l, *_: (l, 0, 0)),     # conv wo
            pl.BlockSpec((None, 1, C), lambda l, *_: (l, 0, 0)),      # conv bo
            pl.BlockSpec((None, 7, C, C), lambda l, *_: (l, 0, 0, 0)),  # skip/dense weights
            pl.BlockSpec((None, 7, C), lambda l, *_: (l, 0, 0)),      # skip/dense biases
            pl.BlockSpec((None, rbf_dim, C), lambda l, *_: (l, 0, 0)),  # readout rbf gate W
            pl.BlockSpec((None, C, C), lambda l, *_: (l, 0, 0)),      # readout w1
            pl.BlockSpec((None, 1, C), lambda l, *_: (l, 0, 0)),      # readout b1
            pl.BlockSpec((None, 1, C), lambda l, *_: (l, 0, 0)),      # readout w2 (row)
            pl.BlockSpec((None, 1, 1), lambda l, *_: (l, 0, 0)),      # readout b2
        ],
        out_specs=pl.BlockSpec((A, 1), lambda l, *_: (0, 0)),         # per-atom accumulator
        scratch_shapes=[pltpu.VMEM((N, C), f32),      # resident activation
                        pltpu.VMEM((N, IE), f32),     # gated messages h
                        pltpu.VMEM((N, IE), f32),     # edge->node scatter accumulator
                        pltpu.VMEM((E, IE), f32),     # sbf gates
                        pltpu.VMEM((N, C), f32),      # rbf-gated readout features
                        pltpu.VMEM((A, C), f32)],     # node->atom scatter accumulator
    )
    per_atom = pl.pallas_call(
        fused_layer_kernel,
        out_shape=jax.ShapeDtypeStruct((A, 1), f32),
        grid_spec=grid_spec,
        compiler_params=pltpu.CompilerParams(
            dimension_semantics=("arbitrary",),
            vmem_limit_bytes=_fused_vmem_limit(N, E, A, C, IE, rbf_dim, sbf_dim)),
    )(edge_index[0], edge_index[1], edge_index_0,
      x, node_rbf, edge_sbf,
      packed["conv_wx"], packed["conv_bx"], packed["conv_wr"], packed["conv_ws"],
      packed["conv_wo"], packed["conv_bo"],
      packed["w_cc"], packed["b_cc"],
      packed["ro_wr"], packed["ro_w1"], packed["ro_b1"], packed["ro_w2"], packed["ro_b2"])

    # final atoms -> graphs scatter-add in the wrapper (no 1-column MXU matmul)
    results = jnp.zeros((G,), f32).at[atom_batch].add(per_atom[:, 0])
    return results, edge_out


# ----------------------------------------------------------------------------
# Demo
# ----------------------------------------------------------------------------
if __name__ == "__main__":
    conv_layers = 2
    emb_size = 32
    rbf_dim = 16
    sbf_dim = 16
    in_channels = 128     # module default
    int_emb = 128         # DNMP int_emb_size (hard-coded in the reference)

    N = 16                # message-passing nodes (molecular edges)
    E = 32                # triplets
    num_atoms = 8
    num_graphs = 2

    key = jax.random.PRNGKey(0)
    k_p, k_x, k_e, k_r, k_s, k_i1, k_i2, k_i0 = jax.random.split(key, 8)

    params = init_params(k_p, conv_layers, emb_size, sbf_dim, rbf_dim, in_channels, int_emb)
    packed = jax.tree_util.tree_map(jax.device_put, pack_params(params))

    x = jax.random.normal(k_x, (N, in_channels), jnp.float32)
    edge_attr = jax.random.normal(k_e, (N, emb_size), jnp.float32)
    node_rbf = jax.random.normal(k_r, (N, rbf_dim), jnp.float32)
    edge_sbf = jax.random.normal(k_s, (E, sbf_dim), jnp.float32)
    edge_index = jnp.stack([jax.random.randint(k_i1, (E,), 0, N),
                            jax.random.randint(k_i2, (E,), 0, N)], axis=0)
    edge_index_0 = jax.random.randint(k_i0, (N,), 0, num_atoms)                  # node -> atom
    atom_batch = jnp.repeat(jnp.arange(num_graphs), num_atoms // num_graphs)     # atom -> graph

    fwd = jax.jit(functools.partial(noattn_forward, num_graphs=num_graphs))
    results, edge_attr_out = fwd(packed, x, edge_attr, edge_index, edge_sbf,
                                 node_rbf, edge_index_0, atom_batch)
    jax.block_until_ready(results)
    jax.block_until_ready(edge_attr_out)

    assert results.shape == (num_graphs,)
    assert edge_attr_out.shape == (N, emb_size)
    assert bool(jnp.all(jnp.isfinite(results)))
    assert bool(jnp.all(jnp.isfinite(edge_attr_out)))
    print("KERNEL_OK")
</pallas_src>

<mosaic_0001>
module attributes {stable_mosaic.version = 11 : i64} {
  func.func @fused_layer_kernel(%arg0: i32, %arg1: memref<32xi32, #tpu.memory_space<smem>>, %arg2: memref<32xi32, #tpu.memory_space<smem>>, %arg3: memref<16xi32, #tpu.memory_space<smem>>, %arg4: memref<16x128xf32, #tpu.memory_space<vmem>>, %arg5: memref<16x16xf32, #tpu.memory_space<vmem>>, %arg6: memref<32x16xf32, #tpu.memory_space<vmem>>, %arg7: memref<1x128x128xbf16, #tpu.memory_space<vmem>>, %arg8: memref<1x1x128xf32, #tpu.memory_space<vmem>>, %arg9: memref<1x16x128xbf16, #tpu.memory_space<vmem>>, %arg10: memref<1x16x128xbf16, #tpu.memory_space<vmem>>, %arg11: memref<1x128x128xbf16, #tpu.memory_space<vmem>>, %arg12: memref<1x1x128xf32, #tpu.memory_space<vmem>>, %arg13: memref<1x7x128x128xbf16, #tpu.memory_space<vmem>>, %arg14: memref<1x7x128xf32, #tpu.memory_space<vmem>>, %arg15: memref<1x16x128xbf16, #tpu.memory_space<vmem>>, %arg16: memref<1x128x128xbf16, #tpu.memory_space<vmem>>, %arg17: memref<1x1x128xf32, #tpu.memory_space<vmem>>, %arg18: memref<1x1x128xf32, #tpu.memory_space<vmem>>, %arg19: memref<1x1x1xf32, #tpu.memory_space<vmem>>, %arg20: memref<8x1xf32, #tpu.memory_space<vmem>>, %arg21: memref<16x128xf32, #tpu.memory_space<vmem>>, %arg22: memref<16x128xf32, #tpu.memory_space<vmem>>, %arg23: memref<16x128xf32, #tpu.memory_space<vmem>>, %arg24: memref<32x128xf32, #tpu.memory_space<vmem>>, %arg25: memref<16x128xf32, #tpu.memory_space<vmem>>, %arg26: memref<8x128xf32, #tpu.memory_space<vmem>>) attributes {dimension_semantics = [#tpu.dimension_semantics<arbitrary>], iteration_bounds = array<i64: 3>, scalar_prefetch = 3 : i64, scratch_operands = 6 : i64, tpu.core_type = #tpu.core_type<tc>, window_params = [{pipeline_mode = #tpu.pipeline_mode<synchronous>, transform_indices = @transform_0, window_bounds = array<i64: 16, 128>}, {pipeline_mode = #tpu.pipeline_mode<synchronous>, transform_indices = @transform_1, window_bounds = array<i64: 16, 16>}, {pipeline_mode = #tpu.pipeline_mode<synchronous>, transform_indices = @transform_2, window_bounds = array<i64: 32, 16>}, {transform_indices = @transform_3, window_bounds = array<i64: 1, 128, 128>}, {transform_indices = @transform_4, window_bounds = array<i64: 1, 1, 128>}, {transform_indices = @transform_5, window_bounds = array<i64: 1, 16, 128>}, {transform_indices = @transform_6, window_bounds = array<i64: 1, 16, 128>}, {transform_indices = @transform_7, window_bounds = array<i64: 1, 128, 128>}, {transform_indices = @transform_8, window_bounds = array<i64: 1, 1, 128>}, {transform_indices = @transform_9, window_bounds = array<i64: 1, 7, 128, 128>}, {transform_indices = @transform_10, window_bounds = array<i64: 1, 7, 128>}, {transform_indices = @transform_11, window_bounds = array<i64: 1, 16, 128>}, {transform_indices = @transform_12, window_bounds = array<i64: 1, 128, 128>}, {transform_indices = @transform_13, window_bounds = array<i64: 1, 1, 128>}, {transform_indices = @transform_14, window_bounds = array<i64: 1, 1, 128>}, {transform_indices = @transform_15, window_bounds = array<i64: 1, 1, 1>}, {pipeline_mode = #tpu.pipeline_mode<synchronous>, transform_indices = @transform_16, window_bounds = array<i64: 8, 1>}]} {
    %c0_i32 = arith.constant 0 : i32
    %0 = arith.cmpi eq, %arg0, %c0_i32 : i32
    %1 = arith.extui %0 : i1 to i32
    %c0_i32_0 = arith.constant 0 : i32
    %2 = arith.cmpi ne, %1, %c0_i32_0 : i32
    scf.if %2 {
      %c0_37 = arith.constant 0 : index
      %c0_38 = arith.constant 0 : index
      %45 = vector.load %arg4[%c0_37, %c0_38] : memref<16x128xf32, #tpu.memory_space<vmem>>, vector<16x128xf32>
      %c0_39 = arith.constant 0 : index
      %c0_40 = arith.constant 0 : index
      %46 = vector.load %arg21[%c0_39, %c0_40] : memref<16x128xf32, #tpu.memory_space<vmem>>, vector<16x128xf32>
      tpu.vector_store %arg21[%c0_39, %c0_40], %45 {strides = array<i32>} : memref<16x128xf32, #tpu.memory_space<vmem>>, vector<16x128xf32>,
      %cst_41 = arith.constant 0.000000e+00 : f32
      %47 = vector.broadcast %cst_41 : f32 to vector<8x1xf32>
      %c0_42 = arith.constant 0 : index
      %c0_43 = arith.constant 0 : index
      %48 = vector.load %arg20[%c0_42, %c0_43] : memref<8x1xf32, #tpu.memory_space<vmem>>, vector<8x1xf32>
      tpu.vector_store %arg20[%c0_42, %c0_43], %47 {strides = array<i32>} : memref<8x1xf32, #tpu.memory_space<vmem>>, vector<8x1xf32>,
    } else {
    }
    %c0_i32_1 = arith.constant 0 : i32
    %3 = arith.cmpi sgt, %arg0, %c0_i32_1 : i32
    %4 = arith.extui %3 : i1 to i32
    %c0_i32_2 = arith.constant 0 : i32
    %5 = arith.cmpi ne, %4, %c0_i32_2 : i32
    scf.if %5 {
      %c0_37 = arith.constant 0 : index
      %c0_38 = arith.constant 0 : index
      %45 = vector.load %arg21[%c0_37, %c0_38] : memref<16x128xf32, #tpu.memory_space<vmem>>, vector<16x128xf32>
      %c0_39 = arith.constant 0 : index
      %c0_40 = arith.constant 0 : index
      %46 = vector.load %arg5[%c0_39, %c0_40] : memref<16x16xf32, #tpu.memory_space<vmem>>, vector<16x16xf32>
      %47 = arith.truncf %46 : vector<16x16xf32> to vector<16x16xbf16>
      %c0_41 = arith.constant 0 : index
      %c0_42 = arith.constant 0 : index
      %c0_43 = arith.constant 0 : index
      %48 = vector.load %arg9[%c0_41, %c0_42, %c0_43] : memref<1x16x128xbf16, #tpu.memory_space<vmem>>, vector<1x16x128xbf16>
      %49 = vector.shape_cast %48 : vector<1x16x128xbf16> to vector<16x128xbf16>
      %cst_44 = arith.constant dense<0.000000e+00> : vector<16x128xf32>
      %50 = tpu.matmul %47, %49, %cst_44 {dimension_numbers = #tpu.dot_dimension_numbers<[1], [0], [0], [1], [0, 0, 1, 1], [], []>} : vector<16x16xbf16>, vector<16x128xbf16>, vector<16x128xf32> -> vector<16x128xf32>
      %51 = arith.truncf %45 : vector<16x128xf32> to vector<16x128xbf16>
      %c0_45 = arith.constant 0 : index
      %c0_46 = arith.constant 0 : index
      %c0_47 = arith.constant 0 : index
      %52 = vector.load %arg7[%c0_45, %c0_46, %c0_47] : memref<1x128x128xbf16, #tpu.memory_space<vmem>>, vector<1x128x128xbf16>
      %53 = vector.shape_cast %52 : vector<1x128x128xbf16> to vector<128x128xbf16>
      %cst_48 = arith.constant dense<0.000000e+00> : vector<16x128xf32>
      %54 = tpu.matmul %51, %53, %cst_48 {dimension_numbers = #tpu.dot_dimension_numbers<[1], [0], [0], [1], [0, 0, 1, 1], [], []>} : vector<16x128xbf16>, vector<128x128xbf16>, vector<16x128xf32> -> vector<16x128xf32>
      %c0_49 = arith.constant 0 : index
      %c0_50 = arith.constant 0 : index
      %c0_51 = arith.constant 0 : index
      %55 = vector.load %arg8[%c0_49, %c0_50, %c0_51] : memref<1x1x128xf32, #tpu.memory_space<vmem>>, vector<1x1x128xf32>
      %56 = vector.shape_cast %55 : vector<1x1x128xf32> to vector<1x128xf32>
      %57 = vector.broadcast %56 : vector<1x128xf32> to vector<16x128xf32>
      %58 = arith.addf %54, %57 : vector<16x128xf32>
      %59 = arith.negf %58 : vector<16x128xf32>
      %60 = math.exp %59 : vector<16x128xf32>
      %cst_52 = arith.constant 1.000000e+00 : f32
      %61 = vector.broadcast %cst_52 : f32 to vector<16x128xf32>
      %62 = arith.addf %61, %60 : vector<16x128xf32>
      %63 = arith.divf %61, %62 : vector<16x128xf32>
      %64 = arith.mulf %58, %63 : vector<16x128xf32>
      %65 = arith.mulf %64, %50 : vector<16x128xf32>
      %c0_53 = arith.constant 0 : index
      %c0_54 = arith.constant 0 : index
      %66 = vector.load %arg22[%c0_53, %c0_54] : memref<16x128xf32, #tpu.memory_space<vmem>>, vector<16x128xf32>
      tpu.vector_store %arg22[%c0_53, %c0_54], %65 {strides = array<i32>} : memref<16x128xf32, #tpu.memory_space<vmem>>, vector<16x128xf32>,
      %c0_55 = arith.constant 0 : index
      %c0_56 = arith.constant 0 : index
      %67 = vector.load %arg6[%c0_55, %c0_56] : memref<32x16xf32, #tpu.memory_space<vmem>>, vector<32x16xf32>
      %68 = arith.truncf %67 : vector<32x16xf32> to vector<32x16xbf16>
      %c0_57 = arith.constant 0 : index
      %c0_58 = arith.constant 0 : index
      %c0_59 = arith.constant 0 : index
      %69 = vector.load %arg10[%c0_57, %c0_58, %c0_59] : memref<1x16x128xbf16, #tpu.memory_space<vmem>>, vector<1x16x128xbf16>
      %70 = vector.shape_cast %69 : vector<1x16x128xbf16> to vector<16x128xbf16>
      %cst_60 = arith.constant dense<0.000000e+00> : vector<32x128xf32>
      %71 = tpu.matmul %68, %70, %cst_60 {dimension_numbers = #tpu.dot_dimension_numbers<[1], [0], [0], [1], [0, 0, 1, 1], [], []>} : vector<32x16xbf16>, vector<16x128xbf16>, vector<32x128xf32> -> vector<32x128xf32>
      %c0_61 = arith.constant 0 : index
      %c0_62 = arith.constant 0 : index
      %72 = vector.load %arg24[%c0_61, %c0_62] : memref<32x128xf32, #tpu.memory_space<vmem>>, vector<32x128xf32>
      tpu.vector_store %arg24[%c0_61, %c0_62], %71 {strides = array<i32>} : memref<32x128xf32, #tpu.memory_space<vmem>>, vector<32x128xf32>,
      %cst_63 = arith.constant 0.000000e+00 : f32
      %73 = vector.broadcast %cst_63 : f32 to vector<16x128xf32>
      %c0_64 = arith.constant 0 : index
      %c0_65 = arith.constant 0 : index
      %74 = vector.load %arg23[%c0_64, %c0_65] : memref<16x128xf32, #tpu.memory_space<vmem>>, vector<16x128xf32>
      tpu.vector_store %arg23[%c0_64, %c0_65], %73 {strides = array<i32>} : memref<16x128xf32, #tpu.memory_space<vmem>>, vector<16x128xf32>,
      %c0_i32_66 = arith.constant 0 : i32
      %c32_i32 = arith.constant 32 : i32
      %75 = arith.addi %c0_i32_66, %c32_i32 : i32
      %c1_i32_67 = arith.constant 1 : i32
      scf.for %arg27 = %c0_i32_66 to %75 step %c1_i32_67  : i32 {
        %214 = arith.index_cast %arg27 : i32 to index
        %215 = memref.load %arg1[%214] : memref<32xi32, #tpu.memory_space<smem>>
        %216 = arith.index_cast %arg27 : i32 to index
        %217 = memref.load %arg2[%216] : memref<32xi32, #tpu.memory_space<smem>>
        %218 = arith.index_cast %215 : i32 to index
        %c0_143 = arith.constant 0 : index
        %219 = vector.load %arg22[%218, %c0_143] : memref<16x128xf32, #tpu.memory_space<vmem>>, vector<1x128xf32>
        %220 = arith.index_cast %arg27 : i32 to index
        %c0_144 = arith.constant 0 : index
        %221 = vector.load %arg24[%220, %c0_144] : memref<32x128xf32, #tpu.memory_space<vmem>>, vector<1x128xf32>
        %222 = arith.mulf %219, %221 : vector<1x128xf32>
        %223 = arith.index_cast %217 : i32 to index
        %c0_145 = arith.constant 0 : index
        %224 = vector.load %arg23[%223, %c0_145] : memref<16x128xf32, #tpu.memory_space<vmem>>, vector<1x128xf32>
        %225 = arith.addf %224, %222 : vector<1x128xf32>
        %226 = arith.index_cast %217 : i32 to index
        %c0_146 = arith.constant 0 : index
        %227 = vector.load %arg23[%226, %c0_146] : memref<16x128xf32, #tpu.memory_space<vmem>>, vector<1x128xf32>
        tpu.vector_store %arg23[%226, %c0_146], %225 {strides = array<i32>} : memref<16x128xf32, #tpu.memory_space<vmem>>, vector<1x128xf32>,
      }
      %c32_i32_68 = arith.constant 32 : i32
      %c0_69 = arith.constant 0 : index
      %c0_70 = arith.constant 0 : index
      %76 = vector.load %arg23[%c0_69, %c0_70] : memref<16x128xf32, #tpu.memory_space<vmem>>, vector<16x128xf32>
      %77 = arith.truncf %76 : vector<16x128xf32> to vector<16x128xbf16>
      %c0_71 = arith.constant 0 : index
      %c0_72 = arith.constant 0 : index
      %c0_73 = arith.constant 0 : index
      %78 = vector.load %arg11[%c0_71, %c0_72, %c0_73] : memref<1x128x128xbf16, #tpu.memory_space<vmem>>, vector<1x128x128xbf16>
      %79 = vector.shape_cast %78 : vector<1x128x128xbf16> to vector<128x128xbf16>
      %cst_74 = arith.constant dense<0.000000e+00> : vector<16x128xf32>
      %80 = tpu.matmul %77, %79, %cst_74 {dimension_numbers = #tpu.dot_dimension_numbers<[1], [0], [0], [1], [0, 0, 1, 1], [], []>} : vector<16x128xbf16>, vector<128x128xbf16>, vector<16x128xf32> -> vector<16x128xf32>
      %c0_75 = arith.constant 0 : index
      %c0_76 = arith.constant 0 : index
      %c0_77 = arith.constant 0 : index
      %81 = vector.load %arg12[%c0_75, %c0_76, %c0_77] : memref<1x1x128xf32, #tpu.memory_space<vmem>>, vector<1x1x128xf32>
      %82 = vector.shape_cast %81 : vector<1x1x128xf32> to vector<1x128xf32>
      %83 = vector.broadcast %82 : vector<1x128xf32> to vector<16x128xf32>
      %84 = arith.addf %80, %83 : vector<16x128xf32>
      %85 = arith.negf %84 : vector<16x128xf32>
      %86 = math.exp %85 : vector<16x128xf32>
      %cst_78 = arith.constant 1.000000e+00 : f32
      %87 = vector.broadcast %cst_78 : f32 to vector<16x128xf32>
      %88 = arith.addf %87, %86 : vector<16x128xf32>
      %89 = arith.divf %87, %88 : vector<16x128xf32>
      %90 = arith.mulf %84, %89 : vector<16x128xf32>
      %cst_79 = arith.constant dense<0.000000e+00> : vector<16xf32>
      %91 = vector.multi_reduction <add>, %90, %cst_79 [1] : vector<16x128xf32> to vector<16xf32>
      %92 = vector.shape_cast %91 : vector<16xf32> to vector<16x1xf32>
      %cst_80 = arith.constant 1.280000e+02 : f32
      %93 = vector.broadcast %cst_80 : f32 to vector<16x1xf32>
      %94 = arith.divf %92, %93 : vector<16x1xf32>
      %95 = vector.broadcast %94 : vector<16x1xf32> to vector<16x128xf32>
      %96 = arith.subf %90, %95 : vector<16x128xf32>
      %97 = vector.broadcast %94 : vector<16x1xf32> to vector<16x128xf32>
      %98 = arith.subf %90, %97 : vector<16x128xf32>
      %99 = arith.mulf %96, %98 : vector<16x128xf32>
      %cst_81 = arith.constant dense<0.000000e+00> : vector<16xf32>
      %100 = vector.multi_reduction <add>, %99, %cst_81 [1] : vector<16x128xf32> to vector<16xf32>
      %101 = vector.shape_cast %100 : vector<16xf32> to vector<16x1xf32>
      %cst_82 = arith.constant 1.280000e+02 : f32
      %102 = vector.broadcast %cst_82 : f32 to vector<16x1xf32>
      %103 = arith.divf %101, %102 : vector<16x1xf32>
      %104 = vector.broadcast %94 : vector<16x1xf32> to vector<16x128xf32>
      %105 = arith.subf %90, %104 : vector<16x128xf32>
      %cst_83 = arith.constant 9.99999993E-9 : f32
      %106 = vector.broadcast %cst_83 : f32 to vector<16x1xf32>
      %107 = arith.addf %103, %106 : vector<16x1xf32>
      %108 = math.rsqrt %107 : vector<16x1xf32>
      %109 = vector.broadcast %108 : vector<16x1xf32> to vector<16x128xf32>
      %110 = arith.mulf %105, %109 : vector<16x128xf32>
      %111 = arith.truncf %110 : vector<16x128xf32> to vector<16x128xbf16>
      %c0_84 = arith.constant 0 : index
      %c0_85 = arith.constant 0 : index
      %c0_86 = arith.constant 0 : index
      %c0_87 = arith.constant 0 : index
      %112 = vector.load %arg13[%c0_84, %c0_85, %c0_86, %c0_87] : memref<1x7x128x128xbf16, #tpu.memory_space<vmem>>, vector<1x1x128x128xbf16>
      %113 = vector.shape_cast %112 : vector<1x1x128x128xbf16> to vector<128x128xbf16>
      %cst_88 = arith.constant dense<0.000000e+00> : vector<16x128xf32>
      %114 = tpu.matmul %111, %113, %cst_88 {dimension_numbers = #tpu.dot_dimension_numbers<[1], [0], [0], [1], [0, 0, 1, 1], [], []>} : vector<16x128xbf16>, vector<128x128xbf16>, vector<16x128xf32> -> vector<16x128xf32>
      %c0_89 = arith.constant 0 : index
      %c0_90 = arith.constant 0 : index
      %c0_91 = arith.constant 0 : index
      %115 = vector.load %arg14[%c0_89, %c0_90, %c0_91] : memref<1x7x128xf32, #tpu.memory_space<vmem>>, vector<1x1x128xf32>
      %116 = vector.shape_cast %115 : vector<1x1x128xf32> to vector<1x128xf32>
      %117 = vector.broadcast %116 : vector<1x128xf32> to vector<16x128xf32>
      %118 = arith.addf %114, %117 : vector<16x128xf32>
      %119 = arith.negf %118 : vector<16x128xf32>
      %120 = math.exp %119 : vector<16x128xf32>
      %cst_92 = arith.constant 1.000000e+00 : f32
      %121 = vector.broadcast %cst_92 : f32 to vector<16x128xf32>
      %122 = arith.addf %121, %120 : vector<16x128xf32>
      %123 = arith.divf %121, %122 : vector<16x128xf32>
      %124 = arith.mulf %118, %123 : vector<16x128xf32>
      %125 = arith.truncf %124 : vector<16x128xf32> to vector<16x128xbf16>
      %c0_93 = arith.constant 0 : index
      %c1 = arith.constant 1 : index
      %c0_94 = arith.constant 0 : index
      %c0_95 = arith.constant 0 : index
      %126 = vector.load %arg13[%c0_93, %c1, %c0_94, %c0_95] : memref<1x7x128x128xbf16, #tpu.memory_space<vmem>>, vector<1x1x128x128xbf16>
      %127 = vector.shape_cast %126 : vector<1x1x128x128xbf16> to vector<128x128xbf16>
      %cst_96 = arith.constant dense<0.000000e+00> : vector<16x128xf32>
      %128 = tpu.matmul %125, %127, %cst_96 {dimension_numbers = #tpu.dot_dimension_numbers<[1], [0], [0], [1], [0, 0, 1, 1], [], []>} : vector<16x128xbf16>, vector<128x128xbf16>, vector<16x128xf32> -> vector<16x128xf32>
      %c0_97 = arith.constant 0 : index
      %c1_98 = arith.constant 1 : index
      %c0_99 = arith.constant 0 : index
      %129 = vector.load %arg14[%c0_97, %c1_98, %c0_99] : memref<1x7x128xf32, #tpu.memory_space<vmem>>, vector<1x1x128xf32>
      %130 = vector.shape_cast %129 : vector<1x1x128xf32> to vector<1x128xf32>
      %131 = vector.broadcast %130 : vector<1x128xf32> to vector<16x128xf32>
      %132 = arith.addf %128, %131 : vector<16x128xf32>
      %133 = arith.negf %132 : vector<16x128xf32>
      %134 = math.exp %133 : vector<16x128xf32>
      %cst_100 = arith.constant 1.000000e+00 : f32
      %135 = vector.broadcast %cst_100 : f32 to vector<16x128xf32>
      %136 = arith.addf %135, %134 : vector<16x128xf32>
      %137 = arith.divf %135, %136 : vector<16x128xf32>
      %138 = arith.mulf %132, %137 : vector<16x128xf32>
      %139 = arith.addf %110, %138 : vector<16x128xf32>
      %140 = arith.truncf %139 : vector<16x128xf32> to vector<16x128xbf16>
      %c0_101 = arith.constant 0 : index
      %c2 = arith.constant 2 : index
      %c0_102 = arith.constant 0 : index
      %c0_103 = arith.constant 0 : index
      %141 = vector.load %arg13[%c0_101, %c2, %c0_102, %c0_103] : memref<1x7x128x128xbf16, #tpu.memory_space<vmem>>, vector<1x1x128x128xbf16>
      %142 = vector.shape_cast %141 : vector<1x1x128x128xbf16> to vector<128x128xbf16>
      %cst_104 = arith.constant dense<0.000000e+00> : vector<16x128xf32>
      %143 = tpu.matmul %140, %142, %cst_104 {dimension_numbers = #tpu.dot_dimension_numbers<[1], [0], [0], [1], [0, 0, 1, 1], [], []>} : vector<16x128xbf16>, vector<128x128xbf16>, vector<16x128xf32> -> vector<16x128xf32>
      %c0_105 = arith.constant 0 : index
      %c2_106 = arith.constant 2 : index
      %c0_107 = arith.constant 0 : index
      %144 = vector.load %arg14[%c0_105, %c2_106, %c0_107] : memref<1x7x128xf32, #tpu.memory_space<vmem>>, vector<1x1x128xf32>
      %145 = vector.shape_cast %144 : vector<1x1x128xf32> to vector<1x128xf32>
      %146 = vector.broadcast %145 : vector<1x128xf32> to vector<16x128xf32>
      %147 = arith.addf %143, %146 : vector<16x128xf32>
      %148 = arith.negf %147 : vector<16x128xf32>
      %149 = math.exp %148 : vector<16x128xf32>
      %cst_108 = arith.constant 1.000000e+00 : f32
      %150 = vector.broadcast %cst_108 : f32 to vector<16x128xf32>
      %151 = arith.addf %150, %149 : vector<16x128xf32>
      %152 = arith.divf %150, %151 : vector<16x128xf32>
      %153 = arith.mulf %147, %152 : vector<16x128xf32>
      %154 = arith.addf %153, %45 : vector<16x128xf32>
      %155 = arith.truncf %154 : vector<16x128xf32> to vector<16x128xbf16>
      %c0_109 = arith.constant 0 : index
      %c3 = arith.constant 3 : index
      %c0_110 = arith.constant 0 : index
      %c0_111 = arith.constant 0 : index
      %156 = vector.load %arg13[%c0_109, %c3, %c0_110, %c0_111] : memref<1x7x128x128xbf16, #tpu.memory_space<vmem>>, vector<1x1x128x128xbf16>
      %157 = vector.shape_cast %156 : vector<1x1x128x128xbf16> to vector<128x128xbf16>
      %cst_112 = arith.constant dense<0.000000e+00> : vector<16x128xf32>
      %158 = tpu.matmul %155, %157, %cst_112 {dimension_numbers = #tpu.dot_dimension_numbers<[1], [0], [0], [1], [0, 0, 1, 1], [], []>} : vector<16x128xbf16>, vector<128x128xbf16>, vector<16x128xf32> -> vector<16x128xf32>
      %c0_113 = arith.constant 0 : index
      %c3_114 = arith.constant 3 : index
      %c0_115 = arith.constant 0 : index
      %159 = vector.load %arg14[%c0_113, %c3_114, %c0_115] : memref<1x7x128xf32, #tpu.memory_space<vmem>>, vector<1x1x128xf32>
      %160 = vector.shape_cast %159 : vector<1x1x128xf32> to vector<1x128xf32>
      %161 = vector.broadcast %160 : vector<1x128xf32> to vector<16x128xf32>
      %162 = arith.addf %158, %161 : vector<16x128xf32>
      %163 = arith.negf %162 : vector<16x128xf32>
      %164 = math.exp %163 : vector<16x128xf32>
      %cst_116 = arith.constant 1.000000e+00 : f32
      %165 = vector.broadcast %cst_116 : f32 to vector<16x128xf32>
      %166 = arith.addf %165, %164 : vector<16x128xf32>
      %167 = arith.divf %165, %166 : vector<16x128xf32>
      %168 = arith.mulf %162, %167 : vector<16x128xf32>
      %169 = arith.truncf %168 : vector<16x128xf32> to vector<16x128xbf16>
      %c0_117 = arith.constant 0 : index
      %c4 = arith.constant 4 : index
      %c0_118 = arith.constant 0 : index
      %c0_119 = arith.constant 0 : index
      %170 = vector.load %arg13[%c0_117, %c4, %c0_118, %c0_119] : memref<1x7x128x128xbf16, #tpu.memory_space<vmem>>, vector<1x1x128x128xbf16>
      %171 = vector.shape_cast %170 : vector<1x1x128x128xbf16> to vector<128x128xbf16>
      %cst_120 = arith.constant dense<0.000000e+00> : vector<16x128xf32>
      %172 = tpu.matmul %169, %171, %cst_120 {dimension_numbers = #tpu.dot_dimension_numbers<[1], [0], [0], [1], [0, 0, 1, 1], [], []>} : vector<16x128xbf16>, vector<128x128xbf16>, vector<16x128xf32> -> vector<16x128xf32>
      %c0_121 = arith.constant 0 : index
      %c4_122 = arith.constant 4 : index
      %c0_123 = arith.constant 0 : index
      %173 = vector.load %arg14[%c0_121, %c4_122, %c0_123] : memref<1x7x128xf32, #tpu.memory_space<vmem>>, vector<1x1x128xf32>
      %174 = vector.shape_cast %173 : vector<1x1x128xf32> to vector<1x128xf32>
      %175 = vector.broadcast %174 : vector<1x128xf32> to vector<16x128xf32>
      %176 = arith.addf %172, %175 : vector<16x128xf32>
      %177 = arith.negf %176 : vector<16x128xf32>
      %178 = math.exp %177 : vector<16x128xf32>
      %cst_124 = arith.constant 1.000000e+00 : f32
      %179 = vector.broadcast %cst_124 : f32 to vector<16x128xf32>
      %180 = arith.addf %179, %178 : vector<16x128xf32>
      %181 = arith.divf %179, %180 : vector<16x128xf32>
      %182 = arith.mulf %176, %181 : vector<16x128xf32>
      %183 = arith.addf %154, %182 : vector<16x128xf32>
      %184 = arith.truncf %183 : vector<16x128xf32> to vector<16x128xbf16>
      %c0_125 = arith.constant 0 : index
      %c5 = arith.constant 5 : index
      %c0_126 = arith.constant 0 : index
      %c0_127 = arith.constant 0 : index
      %185 = vector.load %arg13[%c0_125, %c5, %c0_126, %c0_127] : memref<1x7x128x128xbf16, #tpu.memory_space<vmem>>, vector<1x1x128x128xbf16>
      %186 = vector.shape_cast %185 : vector<1x1x128x128xbf16> to vector<128x128xbf16>
      %cst_128 = arith.constant dense<0.000000e+00> : vector<16x128xf32>
      %187 = tpu.matmul %184, %186, %cst_128 {dimension_numbers = #tpu.dot_dimension_numbers<[1], [0], [0], [1], [0, 0, 1, 1], [], []>} : vector<16x128xbf16>, vector<128x128xbf16>, vector<16x128xf32> -> vector<16x128xf32>
      %c0_129 = arith.constant 0 : index
      %c5_130 = arith.constant 5 : index
      %c0_131 = arith.constant 0 : index
      %188 = vector.load %arg14[%c0_129, %c5_130, %c0_131] : memref<1x7x128xf32, #tpu.memory_space<vmem>>, vector<1x1x128xf32>
      %189 = vector.shape_cast %188 : vector<1x1x128xf32> to vector<1x128xf32>
      %190 = vector.broadcast %189 : vector<1x128xf32> to vector<16x128xf32>
      %191 = arith.addf %187, %190 : vector<16x128xf32>
      %192 = arith.negf %191 : vector<16x128xf32>
      %193 = math.exp %192 : vector<16x128xf32>
      %cst_132 = arith.constant 1.000000e+00 : f32
      %194 = vector.broadcast %cst_132 : f32 to vector<16x128xf32>
      %195 = arith.addf %194, %193 : vector<16x128xf32>
      %196 = arith.divf %194, %195 : vector<16x128xf32>
      %197 = arith.mulf %191, %196 : vector<16x128xf32>
      %198 = arith.truncf %197 : vector<16x128xf32> to vector<16x128xbf16>
      %c0_133 = arith.constant 0 : index
      %c6 = arith.constant 6 : index
      %c0_134 = arith.constant 0 : index
      %c0_135 = arith.constant 0 : index
      %199 = vector.load %arg13[%c0_133, %c6, %c0_134, %c0_135] : memref<1x7x128x128xbf16, #tpu.memory_space<vmem>>, vector<1x1x128x128xbf16>
      %200 = vector.shape_cast %199 : vector<1x1x128x128xbf16> to vector<128x128xbf16>
      %cst_136 = arith.constant dense<0.000000e+00> : vector<16x128xf32>
      %201 = tpu.matmul %198, %200, %cst_136 {dimension_numbers = #tpu.dot_dimension_numbers<[1], [0], [0], [1], [0, 0, 1, 1], [], []>} : vector<16x128xbf16>, vector<128x128xbf16>, vector<16x128xf32> -> vector<16x128xf32>
      %c0_137 = arith.constant 0 : index
      %c6_138 = arith.constant 6 : index
      %c0_139 = arith.constant 0 : index
      %202 = vector.load %arg14[%c0_137, %c6_138, %c0_139] : memref<1x7x128xf32, #tpu.memory_space<vmem>>, vector<1x1x128xf32>
      %203 = vector.shape_cast %202 : vector<1x1x128xf32> to vector<1x128xf32>
      %204 = vector.broadcast %203 : vector<1x128xf32> to vector<16x128xf32>
      %205 = arith.addf %201, %204 : vector<16x128xf32>
      %206 = arith.negf %205 : vector<16x128xf32>
      %207 = math.exp %206 : vector<16x128xf32>
      %cst_140 = arith.constant 1.000000e+00 : f32
      %208 = vector.broadcast %cst_140 : f32 to vector<16x128xf32>
      %209 = arith.addf %208, %207 : vector<16x128xf32>
      %210 = arith.divf %208, %209 : vector<16x128xf32>
      %211 = arith.mulf %205, %210 : vector<16x128xf32>
      %212 = arith.addf %183, %211 : vector<16x128xf32>
      %c0_141 = arith.constant 0 : index
      %c0_142 = arith.constant 0 : index
      %213 = vector.load %arg21[%c0_141, %c0_142] : memref<16x128xf32, #tpu.memory_space<vmem>>, vector<16x128xf32>
      tpu.vector_store %arg21[%c0_141, %c0_142], %212 {strides = array<i32>} : memref<16x128xf32, #tpu.memory_space<vmem>>, vector<16x128xf32>,
    } else {
    }
    %c0 = arith.constant 0 : index
    %c0_3 = arith.constant 0 : index
    %6 = vector.load %arg21[%c0, %c0_3] : memref<16x128xf32, #tpu.memory_space<vmem>>, vector<16x128xf32>
    %c0_4 = arith.constant 0 : index
    %c0_5 = arith.constant 0 : index
    %7 = vector.load %arg5[%c0_4, %c0_5] : memref<16x16xf32, #tpu.memory_space<vmem>>, vector<16x16xf32>
    %8 = arith.truncf %7 : vector<16x16xf32> to vector<16x16xbf16>
    %c0_6 = arith.constant 0 : index
    %c0_7 = arith.constant 0 : index
    %c0_8 = arith.constant 0 : index
    %9 = vector.load %arg15[%c0_6, %c0_7, %c0_8] : memref<1x16x128xbf16, #tpu.memory_space<vmem>>, vector<1x16x128xbf16>
    %10 = vector.shape_cast %9 : vector<1x16x128xbf16> to vector<16x128xbf16>
    %cst = arith.constant dense<0.000000e+00> : vector<16x128xf32>
    %11 = tpu.matmul %8, %10, %cst {dimension_numbers = #tpu.dot_dimension_numbers<[1], [0], [0], [1], [0, 0, 1, 1], [], []>} : vector<16x16xbf16>, vector<16x128xbf16>, vector<16x128xf32> -> vector<16x128xf32>
    %12 = arith.mulf %6, %11 : vector<16x128xf32>
    %c0_9 = arith.constant 0 : index
    %c0_10 = arith.constant 0 : index
    %13 = vector.load %arg25[%c0_9, %c0_10] : memref<16x128xf32, #tpu.memory_space<vmem>>, vector<16x128xf32>
    tpu.vector_store %arg25[%c0_9, %c0_10], %12 {strides = array<i32>} : memref<16x128xf32, #tpu.memory_space<vmem>>, vector<16x128xf32>,
    %cst_11 = arith.constant 0.000000e+00 : f32
    %14 = vector.broadcast %cst_11 : f32 to vector<8x128xf32>
    %c0_12 = arith.constant 0 : index
    %c0_13 = arith.constant 0 : index
    %15 = vector.load %arg26[%c0_12, %c0_13] : memref<8x128xf32, #tpu.memory_space<vmem>>, vector<8x128xf32>
    tpu.vector_store %arg26[%c0_12, %c0_13], %14 {strides = array<i32>} : memref<8x128xf32, #tpu.memory_space<vmem>>, vector<8x128xf32>,
    %c0_i32_14 = arith.constant 0 : i32
    %c16_i32 = arith.constant 16 : i32
    %16 = arith.addi %c0_i32_14, %c16_i32 : i32
    %c1_i32 = arith.constant 1 : i32
    scf.for %arg27 = %c0_i32_14 to %16 step %c1_i32  : i32 {
      %45 = arith.index_cast %arg27 : i32 to index
      %46 = memref.load %arg3[%45] : memref<16xi32, #tpu.memory_space<smem>>
      %47 = arith.index_cast %46 : i32 to index
      %c0_37 = arith.constant 0 : index
      %48 = vector.load %arg26[%47, %c0_37] : memref<8x128xf32, #tpu.memory_space<vmem>>, vector<1x128xf32>
      %49 = arith.index_cast %arg27 : i32 to index
      %c0_38 = arith.constant 0 : index
      %50 = vector.load %arg25[%49, %c0_38] : memref<16x128xf32, #tpu.memory_space<vmem>>, vector<1x128xf32>
      %51 = arith.addf %48, %50 : vector<1x128xf32>
      %52 = arith.index_cast %46 : i32 to index
      %c0_39 = arith.constant 0 : index
      %53 = vector.load %arg26[%52, %c0_39] : memref<8x128xf32, #tpu.memory_space<vmem>>, vector<1x128xf32>
      tpu.vector_store %arg26[%52, %c0_39], %51 {strides = array<i32>} : memref<8x128xf32, #tpu.memory_space<vmem>>, vector<1x128xf32>,
    }
    %c16_i32_15 = arith.constant 16 : i32
    %c0_16 = arith.constant 0 : index
    %c0_17 = arith.constant 0 : index
    %17 = vector.load %arg26[%c0_16, %c0_17] : memref<8x128xf32, #tpu.memory_space<vmem>>, vector<8x128xf32>
    %18 = arith.truncf %17 : vector<8x128xf32> to vector<8x128xbf16>
    %c0_18 = arith.constant 0 : index
    %c0_19 = arith.constant 0 : index
    %c0_20 = arith.constant 0 : index
    %19 = vector.load %arg16[%c0_18, %c0_19, %c0_20] : memref<1x128x128xbf16, #tpu.memory_space<vmem>>, vector<1x128x128xbf16>
    %20 = vector.shape_cast %19 : vector<1x128x128xbf16> to vector<128x128xbf16>
    %cst_21 = arith.constant dense<0.000000e+00> : vector<8x128xf32>
    %21 = tpu.matmul %18, %20, %cst_21 {dimension_numbers = #tpu.dot_dimension_numbers<[1], [0], [0], [1], [0, 0, 1, 1], [], []>} : vector<8x128xbf16>, vector<128x128xbf16>, vector<8x128xf32> -> vector<8x128xf32>
    %c0_22 = arith.constant 0 : index
    %c0_23 = arith.constant 0 : index
    %c0_24 = arith.constant 0 : index
    %22 = vector.load %arg17[%c0_22, %c0_23, %c0_24] : memref<1x1x128xf32, #tpu.memory_space<vmem>>, vector<1x1x128xf32>
    %23 = vector.shape_cast %22 : vector<1x1x128xf32> to vector<1x128xf32>
    %24 = vector.broadcast %23 : vector<1x128xf32> to vector<8x128xf32>
    %25 = arith.addf %21, %24 : vector<8x128xf32>
    %26 = arith.negf %25 : vector<8x128xf32>
    %27 = math.exp %26 : vector<8x128xf32>
    %cst_25 = arith.constant 1.000000e+00 : f32
    %28 = vector.broadcast %cst_25 : f32 to vector<8x128xf32>
    %29 = arith.addf %28, %27 : vector<8x128xf32>
    %30 = arith.divf %28, %29 : vector<8x128xf32>
    %31 = arith.mulf %25, %30 : vector<8x128xf32>
    %c0_26 = arith.constant 0 : index
    %c0_27 = arith.constant 0 : index
    %c0_28 = arith.constant 0 : index
    %32 = vector.load %arg18[%c0_26, %c0_27, %c0_28] : memref<1x1x128xf32, #tpu.memory_space<vmem>>, vector<1x1x128xf32>
    %33 = vector.shape_cast %32 : vector<1x1x128xf32> to vector<1x128xf32>
    %34 = vector.broadcast %33 : vector<1x128xf32> to vector<8x128xf32>
    %35 = arith.mulf %31, %34 : vector<8x128xf32>
    %cst_29 = arith.constant dense<0.000000e+00> : vector<8xf32>
    %36 = vector.multi_reduction <add>, %35, %cst_29 [1] : vector<8x128xf32> to vector<8xf32>
    %37 = vector.shape_cast %36 : vector<8xf32> to vector<8x1xf32>
    %c0_30 = arith.constant 0 : index
    %c0_31 = arith.constant 0 : index
    %c0_32 = arith.constant 0 : index
    %38 = vector.load %arg19[%c0_30, %c0_31, %c0_32] : memref<1x1x1xf32, #tpu.memory_space<vmem>>, vector<1x1x1xf32>
    %39 = vector.shape_cast %38 : vector<1x1x1xf32> to vector<1x1xf32>
    %40 = vector.broadcast %39 : vector<1x1xf32> to vector<8x1xf32>
    %41 = arith.addf %37, %40 : vector<8x1xf32>
    %c0_33 = arith.constant 0 : index
    %c0_34 = arith.constant 0 : index
    %42 = vector.load %arg20[%c0_33, %c0_34] : memref<8x1xf32, #tpu.memory_space<vmem>>, vector<8x1xf32>
    %43 = arith.addf %42, %41 : vector<8x1xf32>
    %c0_35 = arith.constant 0 : index
    %c0_36 = arith.constant 0 : index
    %44 = vector.load %arg20[%c0_35, %c0_36] : memref<8x1xf32, #tpu.memory_space<vmem>>, vector<8x1xf32>
    tpu.vector_store %arg20[%c0_35, %c0_36], %43 {strides = array<i32>} : memref<8x1xf32, #tpu.memory_space<vmem>>, vector<8x1xf32>,
    return
  }
  func.func @transform_0(%arg0: i32, %arg1: memref<32xi32, #tpu.memory_space<smem>>, %arg2: memref<32xi32, #tpu.memory_space<smem>>, %arg3: memref<16xi32, #tpu.memory_space<smem>>) -> (i32, i32) {
    %c0_i32 = arith.constant 0 : i32
    %c0_i32_0 = arith.constant 0 : i32
    %c0_i32_1 = arith.constant 0 : i32
    return %c0_i32, %c0_i32_0 : i32, i32
  }
  func.func @transform_1(%arg0: i32, %arg1: memref<32xi32, #tpu.memory_space<smem>>, %arg2: memref<32xi32, #tpu.memory_space<smem>>, %arg3: memref<16xi32, #tpu.memory_space<smem>>) -> (i32, i32) {
    %c0_i32 = arith.constant 0 : i32
    %c0_i32_0 = arith.constant 0 : i32
    %c0_i32_1 = arith.constant 0 : i32
    return %c0_i32, %c0_i32_0 : i32, i32
  }
  func.func @transform_2(%arg0: i32, %arg1: memref<32xi32, #tpu.memory_space<smem>>, %arg2: memref<32xi32, #tpu.memory_space<smem>>, %arg3: memref<16xi32, #tpu.memory_space<smem>>) -> (i32, i32) {
    %c0_i32 = arith.constant 0 : i32
    %c0_i32_0 = arith.constant 0 : i32
    %c0_i32_1 = arith.constant 0 : i32
    return %c0_i32, %c0_i32_0 : i32, i32
  }
  func.func @transform_3(%arg0: i32, %arg1: memref<32xi32, #tpu.memory_space<smem>>, %arg2: memref<32xi32, #tpu.memory_space<smem>>, %arg3: memref<16xi32, #tpu.memory_space<smem>>) -> (i32, i32, i32) {
    %c0_i32 = arith.constant 0 : i32
    %c0_i32_0 = arith.constant 0 : i32
    %c0_i32_1 = arith.constant 0 : i32
    return %arg0, %c0_i32, %c0_i32_0 : i32, i32, i32
  }
  func.func @transform_4(%arg0: i32, %arg1: memref<32xi32, #tpu.memory_space<smem>>, %arg2: memref<32xi32, #tpu.memory_space<smem>>, %arg3: memref<16xi32, #tpu.memory_space<smem>>) -> (i32, i32, i32) {
    %c0_i32 = arith.constant 0 : i32
    %c0_i32_0 = arith.constant 0 : i32
    %c0_i32_1 = arith.constant 0 : i32
    return %arg0, %c0_i32, %c0_i32_0 : i32, i32, i32
  }
  func.func @transform_5(%arg0: i32, %arg1: memref<32xi32, #tpu.memory_space<smem>>, %arg2: memref<32xi32, #tpu.memory_space<smem>>, %arg3: memref<16xi32, #tpu.memory_space<smem>>) -> (i32, i32, i32) {
    %c0_i32 = arith.constant 0 : i32
    %c0_i32_0 = arith.constant 0 : i32
    %c0_i32_1 = arith.constant 0 : i32
    return %arg0, %c0_i32, %c0_i32_0 : i32, i32, i32
  }
  func.func @transform_6(%arg0: i32, %arg1: memref<32xi32, #tpu.memory_space<smem>>, %arg2: memref<32xi32, #tpu.memory_space<smem>>, %arg3: memref<16xi32, #tpu.memory_space<smem>>) -> (i32, i32, i32) {
    %c0_i32 = arith.constant 0 : i32
    %c0_i32_0 = arith.constant 0 : i32
    %c0_i32_1 = arith.constant 0 : i32
    return %arg0, %c0_i32, %c0_i32_0 : i32, i32, i32
  }
  func.func @transform_7(%arg0: i32, %arg1: memref<32xi32, #tpu.memory_space<smem>>, %arg2: memref<32xi32, #tpu.memory_space<smem>>, %arg3: memref<16xi32, #tpu.memory_space<smem>>) -> (i32, i32, i32) {
    %c0_i32 = arith.constant 0 : i32
    %c0_i32_0 = arith.constant 0 : i32
    %c0_i32_1 = arith.constant 0 : i32
    return %arg0, %c0_i32, %c0_i32_0 : i32, i32, i32
  }
  func.func @transform_8(%arg0: i32, %arg1: memref<32xi32, #tpu.memory_space<smem>>, %arg2: memref<32xi32, #tpu.memory_space<smem>>, %arg3: memref<16xi32, #tpu.memory_space<smem>>) -> (i32, i32, i32) {
    %c0_i32 = arith.constant 0 : i32
    %c0_i32_0 = arith.constant 0 : i32
    %c0_i32_1 = arith.constant 0 : i32
    return %arg0, %c0_i32, %c0_i32_0 : i32, i32, i32
  }
  func.func @transform_9(%arg0: i32, %arg1: memref<32xi32, #tpu.memory_space<smem>>, %arg2: memref<32xi32, #tpu.memory_space<smem>>, %arg3: memref<16xi32, #tpu.memory_space<smem>>) -> (i32, i32, i32, i32) {
    %c0_i32 = arith.constant 0 : i32
    %c0_i32_0 = arith.constant 0 : i32
    %c0_i32_1 = arith.constant 0 : i32
    %c0_i32_2 = arith.constant 0 : i32
    return %arg0, %c0_i32, %c0_i32_0, %c0_i32_1 : i32, i32, i32, i32
  }
  func.func @transform_10(%arg0: i32, %arg1: memref<32xi32, #tpu.memory_space<smem>>, %arg2: memref<32xi32, #tpu.memory_space<smem>>, %arg3: memref<16xi32, #tpu.memory_space<smem>>) -> (i32, i32, i32) {
    %c0_i32 = arith.constant 0 : i32
    %c0_i32_0 = arith.constant 0 : i32
    %c0_i32_1 = arith.constant 0 : i32
    return %arg0, %c0_i32, %c0_i32_0 : i32, i32, i32
  }
  func.func @transform_11(%arg0: i32, %arg1: memref<32xi32, #tpu.memory_space<smem>>, %arg2: memref<32xi32, #tpu.memory_space<smem>>, %arg3: memref<16xi32, #tpu.memory_space<smem>>) -> (i32, i32, i32) {
    %c0_i32 = arith.constant 0 : i32
    %c0_i32_0 = arith.constant 0 : i32
    %c0_i32_1 = arith.constant 0 : i32
    return %arg0, %c0_i32, %c0_i32_0 : i32, i32, i32
  }
  func.func @transform_12(%arg0: i32, %arg1: memref<32xi32, #tpu.memory_space<smem>>, %arg2: memref<32xi32, #tpu.memory_space<smem>>, %arg3: memref<16xi32, #tpu.memory_space<smem>>) -> (i32, i32, i32) {
    %c0_i32 = arith.constant 0 : i32
    %c0_i32_0 = arith.constant 0 : i32
    %c0_i32_1 = arith.constant 0 : i32
    return %arg0, %c0_i32, %c0_i32_0 : i32, i32, i32
  }
  func.func @transform_13(%arg0: i32, %arg1: memref<32xi32, #tpu.memory_space<smem>>, %arg2: memref<32xi32, #tpu.memory_space<smem>>, %arg3: memref<16xi32, #tpu.memory_space<smem>>) -> (i32, i32, i32) {
    %c0_i32 = arith.constant 0 : i32
    %c0_i32_0 = arith.constant 0 : i32
    %c0_i32_1 = arith.constant 0 : i32
    return %arg0, %c0_i32, %c0_i32_0 : i32, i32, i32
  }
  func.func @transform_14(%arg0: i32, %arg1: memref<32xi32, #tpu.memory_space<smem>>, %arg2: memref<32xi32, #tpu.memory_space<smem>>, %arg3: memref<16xi32, #tpu.memory_space<smem>>) -> (i32, i32, i32) {
    %c0_i32 = arith.constant 0 : i32
    %c0_i32_0 = arith.constant 0 : i32
    %c0_i32_1 = arith.constant 0 : i32
    return %arg0, %c0_i32, %c0_i32_0 : i32, i32, i32
  }
  func.func @transform_15(%arg0: i32, %arg1: memref<32xi32, #tpu.memory_space<smem>>, %arg2: memref<32xi32, #tpu.memory_space<smem>>, %arg3: memref<16xi32, #tpu.memory_space<smem>>) -> (i32, i32, i32) {
    %c0_i32 = arith.constant 0 : i32
    %c0_i32_0 = arith.constant 0 : i32
    %c0_i32_1 = arith.constant 0 : i32
    return %arg0, %c0_i32, %c0_i32_0 : i32, i32, i32
  }
  func.func @transform_16(%arg0: i32, %arg1: memref<32xi32, #tpu.memory_space<smem>>, %arg2: memref<32xi32, #tpu.memory_space<smem>>, %arg3: memref<16xi32, #tpu.memory_space<smem>>) -> (i32, i32) {
    %c0_i32 = arith.constant 0 : i32
    %c0_i32_0 = arith.constant 0 : i32
    %c0_i32_1 = arith.constant 0 : i32
    return %c0_i32, %c0_i32_0 : i32, i32
  }
}

module attributes {stable_mosaic.version = 11 : i64} {
  func.func @edgenn_kernel(%arg0: i32, %arg1: memref<16x32xf32, #tpu.memory_space<vmem>>, %arg2: memref<32x32xbf16, #tpu.memory_space<vmem>>, %arg3: memref<1x32xf32, #tpu.memory_space<vmem>>, %arg4: memref<32x32xbf16, #tpu.memory_space<vmem>>, %arg5: memref<1x32xf32, #tpu.memory_space<vmem>>, %arg6: memref<16x32xf32, #tpu.memory_space<vmem>>) attributes {dimension_semantics = [#tpu.dimension_semantics<parallel>], iteration_bounds = array<i64: 1>, scalar_prefetch = 0 : i64, scratch_operands = 0 : i64, tpu.core_type = #tpu.core_type<tc>, window_params = [{transform_indices = @transform_0, window_bounds = array<i64: 16, 32>}, {pipeline_mode = #tpu.pipeline_mode<synchronous>, transform_indices = @transform_1, window_bounds = array<i64: 32, 32>}, {pipeline_mode = #tpu.pipeline_mode<synchronous>, transform_indices = @transform_2, window_bounds = array<i64: 1, 32>}, {pipeline_mode = #tpu.pipeline_mode<synchronous>, transform_indices = @transform_3, window_bounds = array<i64: 32, 32>}, {pipeline_mode = #tpu.pipeline_mode<synchronous>, transform_indices = @transform_4, window_bounds = array<i64: 1, 32>}, {transform_indices = @transform_5, window_bounds = array<i64: 16, 32>}]} {
    %c0 = arith.constant 0 : index
    %c0_0 = arith.constant 0 : index
    %0 = vector.load %arg1[%c0, %c0_0] : memref<16x32xf32, #tpu.memory_space<vmem>>, vector<16x32xf32>
    %1 = arith.truncf %0 : vector<16x32xf32> to vector<16x32xbf16>
    %c0_1 = arith.constant 0 : index
    %c0_2 = arith.constant 0 : index
    %2 = vector.load %arg2[%c0_1, %c0_2] : memref<32x32xbf16, #tpu.memory_space<vmem>>, vector<32x32xbf16>
    %cst = arith.constant dense<0.000000e+00> : vector<16x32xf32>
    %3 = tpu.matmul %1, %2, %cst {dimension_numbers = #tpu.dot_dimension_numbers<[1], [0], [0], [1], [0, 0, 1, 1], [], []>} : vector<16x32xbf16>, vector<32x32xbf16>, vector<16x32xf32> -> vector<16x32xf32>
    %c0_3 = arith.constant 0 : index
    %c0_4 = arith.constant 0 : index
    %4 = vector.load %arg3[%c0_3, %c0_4] : memref<1x32xf32, #tpu.memory_space<vmem>>, vector<1x32xf32>
    %5 = vector.broadcast %4 : vector<1x32xf32> to vector<16x32xf32>
    %6 = arith.addf %3, %5 : vector<16x32xf32>
    %7 = arith.negf %6 : vector<16x32xf32>
    %8 = math.exp %7 : vector<16x32xf32>
    %cst_5 = arith.constant 1.000000e+00 : f32
    %9 = vector.broadcast %cst_5 : f32 to vector<16x32xf32>
    %10 = arith.addf %9, %8 : vector<16x32xf32>
    %11 = arith.divf %9, %10 : vector<16x32xf32>
    %12 = arith.mulf %6, %11 : vector<16x32xf32>
    %13 = arith.truncf %12 : vector<16x32xf32> to vector<16x32xbf16>
    %c0_6 = arith.constant 0 : index
    %c0_7 = arith.constant 0 : index
    %14 = vector.load %arg4[%c0_6, %c0_7] : memref<32x32xbf16, #tpu.memory_space<vmem>>, vector<32x32xbf16>
    %cst_8 = arith.constant dense<0.000000e+00> : vector<16x32xf32>
    %15 = tpu.matmul %13, %14, %cst_8 {dimension_numbers = #tpu.dot_dimension_numbers<[1], [0], [0], [1], [0, 0, 1, 1], [], []>} : vector<16x32xbf16>, vector<32x32xbf16>, vector<16x32xf32> -> vector<16x32xf32>
    %c0_9 = arith.constant 0 : index
    %c0_10 = arith.constant 0 : index
    %16 = vector.load %arg5[%c0_9, %c0_10] : memref<1x32xf32, #tpu.memory_space<vmem>>, vector<1x32xf32>
    %17 = vector.broadcast %16 : vector<1x32xf32> to vector<16x32xf32>
    %18 = arith.addf %15, %17 : vector<16x32xf32>
    %c0_11 = arith.constant 0 : index
    %c0_12 = arith.constant 0 : index
    %19 = vector.load %arg6[%c0_11, %c0_12] : memref<16x32xf32, #tpu.memory_space<vmem>>, vector<16x32xf32>
    tpu.vector_store %arg6[%c0_11, %c0_12], %18 {strides = array<i32>} : memref<16x32xf32, #tpu.memory_space<vmem>>, vector<16x32xf32>,
    return
  }
  func.func @transform_0(%arg0: i32) -> (i32, i32) {
    %c0_i32 = arith.constant 0 : i32
    %c0_i32_0 = arith.constant 0 : i32
    return %arg0, %c0_i32 : i32, i32
  }
  func.func @transform_1(%arg0: i32) -> (i32, i32) {
    %c0_i32 = arith.constant 0 : i32
    %c0_i32_0 = arith.constant 0 : i32
    %c0_i32_1 = arith.constant 0 : i32
    return %c0_i32, %c0_i32_0 : i32, i32
  }
  func.func @transform_2(%arg0: i32) -> (i32, i32) {
    %c0_i32 = arith.constant 0 : i32
    %c0_i32_0 = arith.constant 0 : i32
    %c0_i32_1 = arith.constant 0 : i32
    return %c0_i32, %c0_i32_0 : i32, i32
  }
  func.func @transform_3(%arg0: i32) -> (i32, i32) {
    %c0_i32 = arith.constant 0 : i32
    %c0_i32_0 = arith.constant 0 : i32
    %c0_i32_1 = arith.constant 0 : i32
    return %c0_i32, %c0_i32_0 : i32, i32
  }
  func.func @transform_4(%arg0: i32) -> (i32, i32) {
    %c0_i32 = arith.constant 0 : i32
    %c0_i32_0 = arith.constant 0 : i32
    %c0_i32_1 = arith.constant 0 : i32
    return %c0_i32, %c0_i32_0 : i32, i32
  }
  func.func @transform_5(%arg0: i32) -> (i32, i32) {
    %c0_i32 = arith.constant 0 : i32
    %c0_i32_0 = arith.constant 0 : i32
    return %arg0, %c0_i32 : i32, i32
  }
}

</mosaic_0001>

<llo_original>
// kernel: noattn_forward.2
$region0: #{noattn_forward.2}
  #allocation0 [shape = 'u32[]', space=smem, size = 0x4, offset = 0x4, fixed_abs, tag = 'smem constant byte address 0x4 - core index']
  #allocation1 [shape = 'u32[144,128]{1,0:T(1,128)}', space=vmem, size = 0x12000, scoped, tag = 'internal scratch']
  %s0 = inlined_call_operand.vmem [shape: f32[16,32], index: 0, kind: input, shape index: {}]
  %s1 = inlined_call_operand.vmem [shape: bf16[32,32], index: 1, kind: input, shape index: {}]
  %s2 = inlined_call_operand.vmem [shape: f32[1,32], index: 2, kind: input, shape index: {}]
  %s3 = inlined_call_operand.vmem [shape: bf16[32,32], index: 3, kind: input, shape index: {}]
  %s4 = inlined_call_operand.vmem [shape: f32[1,32], index: 4, kind: input, shape index: {}]
  %s5 = inlined_call_operand.hbm [shape: f32[16,32], index: 5, kind: output, shape index: {}]
  %s6 = sld [smem:[#allocation0]]
  $region30: #{noattn_forward.2} parent=0
    _
  %s8 = ssub.s32 1, %s6
  %s9 = scalar_select 0, %s8, %s6
  $region1: #{noattn_forward.2} parent=0
    #allocation2 [shape = 'u8[8192]{0}', space=vmem, size = 0x2000, scoped, tag = 'output window, operand 0, single buffered']
    #allocation3 [shape = 's32[1]{0}', space=sflag, size = 0x4, scoped, tag = 'scoped memory for noattn_forward.2']
    %10 = vsyncpa [#allocation3], 0
    // Predicated region
    $region2: #{noattn_forward.2} parent=1 // pred_check
      _
    $region3: #{noattn_forward.2} parent=1 // pred_check_branch
      %12 = sbr.rel (0) target = $region5
    $region4: #{noattn_forward.2} parent=1 // pred_region
      _
    $region5: #{noattn_forward.2} parent=1 // pred_fallthru
      _
    // Predicated region
    $region6: #{noattn_forward.2} parent=1 // pred_check
      _
    $region7: #{noattn_forward.2} parent=1 // pred_check_branch
      %14 = sbr.rel (0) target = $region9
    $region8: #{noattn_forward.2} parent=1 // pred_region
      _
    $region9: #{noattn_forward.2} parent=1 // pred_fallthru
      _
    // Predicated region
    $region10: #{noattn_forward.2} parent=1 // pred_check
      _
    $region11: #{noattn_forward.2} parent=1 // pred_check_branch
      %16 = sbr.rel (0) target = $region13
    $region12: #{noattn_forward.2} parent=1 // pred_region
      _
    $region13: #{noattn_forward.2} parent=1 // pred_fallthru
      _
    // Predicated region
    $region14: #{noattn_forward.2} parent=1 // pred_check
      _
    $region15: #{noattn_forward.2} parent=1 // pred_check_branch
      %18 = sbr.rel (0) target = $region17
    $region16: #{noattn_forward.2} parent=1 // pred_region
      _
    $region17: #{noattn_forward.2} parent=1 // pred_fallthru
      _
    // Predicated region
    $region18: #{noattn_forward.2} parent=1 // pred_check
      _
    $region19: #{noattn_forward.2} parent=1 // pred_check_branch
      %20 = sbr.rel (0) target = $region21
    $region20: #{noattn_forward.2} parent=1 // pred_region
      _
    $region21: #{noattn_forward.2} parent=1 // pred_fallthru
      _
    %v22 = vld [vmem:[%s0] sm:$0xff]
    %v23 = vld [vmem:[%s0 + $0x8] sm:$0xff]
    %v24 = vpack.c.bf16 %v23, %v22
    %v25 = vld [vmem:[%s1] sm:$0xf]
    %v26 = vld [vmem:[%s1 + $0x4] sm:$0xf]
    %v27 = vld [vmem:[%s1 + $0x8] sm:$0xf]
    %v28 = vld [vmem:[%s1 + $0xc] sm:$0xf]
    %v29 = vld [vmem:[%s2] sm:$0x1]
    %v31 = vlaneseq
    %v32 = vshrl.u32 %v31, 7
    %v33 = vsub.s32 0, %v32
    %v34 = vrot.slane %v29, %v33
    %v40 = vunpack.c.l.b16 %v25
    %v41 = vunpack.c.l.b16 %v26
    %v42 = vunpack.c.l.b16 %v27
    %v43 = vunpack.c.l.b16 %v28
    %v44 = vpack.c.b16 %v41, %v40
    %v45 = vpack.c.b16 %v43, %v42
    %vm48 = vcmask 261120
    %v50 = vsel %vm48, %v24, 0
    %52 = vmatprep.subr.bf16.mxu0 0
    %53 = vmatpush1.bf16.msra.mxu0 %v44
    %54 = vmatprep.subr.bf16.mxu0 0
    %55 = vmatpush1.bf16.msra.mxu0 %v45
    %56 = vmatprep.subr.bf16.mxu0 0
    %57 = vmatpush1.bf16.msra.mxu0 0
    %58 = vmatprep.subr.bf16.mxu0 0
    %59 = vmatpush1.bf16.msra.mxu0 0
    %60 = vmatprep.subr.bf16.mxu0 0
    %61 = vmatpush1.bf16.msra.mxu0 0
    %62 = vmatprep.subr.bf16.mxu0 0
    %63 = vmatpush1.bf16.msra.mxu0 0
    %64 = vmatprep.subr.bf16.mxu0 0
    %65 = vmatpush1.bf16.msra.mxu0 0
    %66 = vmatprep.subr.bf16.mxu0 0
    %67 = vmatpush1.bf16.msra.mxu0 0
    %68 = vmatprep.subr.bf16.mxu0 0
    %69 = vmatpush1.bf16.msra.mxu0 0
    %70 = vmatprep.subr.bf16.mxu0 0
    %71 = vmatpush1.bf16.msra.mxu0 0
    %72 = vmatprep.subr.bf16.mxu0 0
    %73 = vmatpush1.bf16.msra.mxu0 0
    %74 = vmatprep.subr.bf16.mxu0 0
    %75 = vmatpush1.bf16.msra.mxu0 0
    %76 = vmatprep.subr.bf16.mxu0 0
    %77 = vmatpush1.bf16.msra.mxu0 0
    %78 = vmatprep.subr.bf16.mxu0 0
    %79 = vmatpush1.bf16.msra.mxu0 0
    %80 = vmatprep.subr.bf16.mxu0 0
    %81 = vmatpush1.bf16.msra.mxu0 0
    %82 = vmatprep.subr.bf16.mxu0 0
    %83 = vmatpush1.bf16.msra.mxu0 0
    %84 = vmatprep.mubr.bf16.mxu0 0
    %85 = vmatmul.mubr.bf16.gmra.mrb[0].mxu0 %v50
    %v86 = vpop.f32.mrb[0].mxu0
    %v87 = vadd.f32 %v34, %v86
    %v88 = vpop.f32.mrb[0].mxu0
    %v89 = vpop.f32.mrb[0].mxu0
    %v90 = vadd.f32 %v34, %v89
    %v91 = vpop.f32.mrb[0].mxu0
    %92 = vdwg.mxu0
    %v93 = vxor.u32 %v87, 2147483648
    %v94 = vxor.u32 %v90, 2147483648
    %v95 = vmul.f32 %v93, 1.442695
    %v96 = vpow.pop %v95
    %v97 = vmul.f32 %v94, 1.442695
    %v98 = vpow.pop %v97
    %v99 = vadd.f32 %v96, 1.0
    %v100 = vadd.f32 %v98, 1.0
    %v101 = vrcp.pop %v99
    %v102 = vmul.f32 1.0, %v101
    %v103 = vrcp.pop %v100
    %v104 = vmul.f32 1.0, %v103
    %v105 = vmul.f32 %v87, %v102
    %v106 = vmul.f32 %v90, %v104
    %v107 = vpack.c.bf16 %v106, %v105
    %v108 = vld [vmem:[%s3] sm:$0xf]
    %v109 = vld [vmem:[%s3 + $0x4] sm:$0xf]
    %v110 = vld [vmem:[%s3 + $0x8] sm:$0xf]
    %v111 = vld [vmem:[%s3 + $0xc] sm:$0xf]
    %v112 = vld [vmem:[%s4] sm:$0x1]
    %v114 = vlaneseq
    %v115 = vshrl.u32 %v114, 7
    %v116 = vsub.s32 0, %v115
    %v117 = vrot.slane %v112, %v116
    %v123 = vunpack.c.l.b16 %v108
    %v124 = vunpack.c.l.b16 %v109
    %v125 = vunpack.c.l.b16 %v110
    %v126 = vunpack.c.l.b16 %v111
    %v127 = vpack.c.b16 %v124, %v123
    %v128 = vpack.c.b16 %v126, %v125
    %v132 = vsel %vm48, %v107, 0
    %134 = vmatprep.subr.bf16.mxu0 0
    %135 = vmatpush1.bf16.msra.mxu0 %v127
    %136 = vmatprep.subr.bf16.mxu0 0
    %137 = vmatpush1.bf16.msra.mxu0 %v128
    %138 = vmatprep.subr.bf16.mxu0 0
    %139 = vmatpush1.bf16.msra.mxu0 0
    %140 = vmatprep.subr.bf16.mxu0 0
    %141 = vmatpush1.bf16.msra.mxu0 0
    %142 = vmatprep.subr.bf16.mxu0 0
    %143 = vmatpush1.bf16.msra.mxu0 0
    %144 = vmatprep.subr.bf16.mxu0 0
    %145 = vmatpush1.bf16.msra.mxu0 0
    %146 = vmatprep.subr.bf16.mxu0 0
    %147 = vmatpush1.bf16.msra.mxu0 0
    %148 = vmatprep.subr.bf16.mxu0 0
    %149 = vmatpush1.bf16.msra.mxu0 0
    %150 = vmatprep.subr.bf16.mxu0 0
    %151 = vmatpush1.bf16.msra.mxu0 0
    %152 = vmatprep.subr.bf16.mxu0 0
    %153 = vmatpush1.bf16.msra.mxu0 0
    %154 = vmatprep.subr.bf16.mxu0 0
    %155 = vmatpush1.bf16.msra.mxu0 0
    %156 = vmatprep.subr.bf16.mxu0 0
    %157 = vmatpush1.bf16.msra.mxu0 0
    %158 = vmatprep.subr.bf16.mxu0 0
    %159 = vmatpush1.bf16.msra.mxu0 0
    %160 = vmatprep.subr.bf16.mxu0 0
    %161 = vmatpush1.bf16.msra.mxu0 0
    %162 = vmatprep.subr.bf16.mxu0 0
    %163 = vmatpush1.bf16.msra.mxu0 0
    %164 = vmatprep.subr.bf16.mxu0 0
    %165 = vmatpush1.bf16.msra.mxu0 0
    %166 = vmatprep.mubr.bf16.mxu0 0
    %167 = vmatmul.mubr.bf16.gmra.mrb[0].mxu0 %v132
    %v168 = vpop.f32.mrb[0].mxu0
    %v169 = vadd.f32 %v117, %v168
    %v170 = vpop.f32.mrb[0].mxu0
    %v171 = vpop.f32.mrb[0].mxu0
    %v172 = vadd.f32 %v117, %v171
    %v173 = vpop.f32.mrb[0].mxu0
    %174 = vdwg.mxu0
    %175 = vst.msk [vmem:[#allocation2] sm:$0xff] %vm48, %v169
    %176 = vst.msk [vmem:[#allocation2 + $0x8] sm:$0xff] %vm48, %v172
    // Predicated region
    $region22: #{noattn_forward.2} parent=1 // pred_check
      _
    $region23: #{noattn_forward.2} parent=1 // pred_check_branch
      %178 = sbr.rel (0) target = $region25
    $region24: #{noattn_forward.2} parent=1 // pred_region
      %s180 = ssub.s32 256, 256
      %181 = vsyncadd [#allocation3], %s180
      %s182 = sshll.u32 [#allocation2], 4
      %s183 = int_to_ptr.vmem [resolvable:$true] %s182
      %188 = dma.vmem_to_hbm [thread:$0]  %s183, 256, %s5, [#allocation3], 128, 128, 8
    $region25: #{noattn_forward.2} parent=1 // pred_fallthru
      _
    // Predicated region
    $region26: #{noattn_forward.2} parent=1 // pred_check
      _
    $region27: #{noattn_forward.2} parent=1 // pred_check_branch
      %190 = sbr.rel (0) target = $region29
    $region28: #{noattn_forward.2} parent=1 // pred_region
      %191 = dma.done [#allocation3], 256
    $region29: #{noattn_forward.2} parent=1 // pred_fallthru
      _
    %192 = vsyncpa [#allocation3], 1

// kernel: noattn_forward.3
$region0: #{noattn_forward.3}
  #allocation0 [shape = 'u32[]', space=smem, size = 0x4, offset = 0x4, fixed_abs, tag = 'smem constant byte address 0x4 - core index']
  #allocation1 [shape = 'u32[144,128]{1,0:T(1,128)}', space=vmem, size = 0x12000, scoped, tag = 'internal scratch']
  #allocation2 [shape = 'f32[16,128]{1,0:T(8,128)}', space=vmem, size = 0x2000, scoped, tag = 'scratch operand']
  #allocation3 [shape = 'f32[16,128]{1,0:T(8,128)}', space=vmem, size = 0x2000, scoped, tag = 'scratch operand']
  #allocation4 [shape = 'f32[16,128]{1,0:T(8,128)}', space=vmem, size = 0x2000, scoped, tag = 'scratch operand']
  #allocation5 [shape = 'f32[32,128]{1,0:T(8,128)}', space=vmem, size = 0x4000, scoped, tag = 'scratch operand']
  #allocation6 [shape = 'f32[16,128]{1,0:T(8,128)}', space=vmem, size = 0x2000, scoped, tag = 'scratch operand']
  #allocation7 [shape = 'f32[8,128]{1,0:T(8,128)}', space=vmem, size = 0x1000, scoped, tag = 'scratch operand']
  #allocation8 [shape = 's32[1]{0}', space=sflag, size = 0x4, scoped, tag = 'scoped memory for noattn_forward.3']
  #allocation9 [shape = 'u8[512]{0}', space=smem, size = 0x200, scoped, tag = 'prefetched SMEM operand 0']
  #allocation10 [shape = 'u8[512]{0}', space=smem, size = 0x200, scoped, tag = 'prefetched SMEM operand 1']
  #allocation11 [shape = 'u8[512]{0}', space=smem, size = 0x200, scoped, tag = 'prefetched SMEM operand 2']
  %s0 = inlined_call_operand.vmem [shape: s32[32], index: 0, kind: input, shape index: {}]
  %s1 = inlined_call_operand.vmem [shape: s32[32], index: 1, kind: input, shape index: {}]
  %s2 = inlined_call_operand.vmem [shape: s32[16], index: 2, kind: input, shape index: {}]
  %s3 = inlined_call_operand.hbm [shape: f32[16,128], index: 3, kind: input, shape index: {}]
  %s4 = inlined_call_operand.vmem [shape: f32[16,16], index: 4, kind: input, shape index: {}]
  %s5 = inlined_call_operand.vmem [shape: f32[32,16], index: 5, kind: input, shape index: {}]
  %s6 = inlined_call_operand.hbm [shape: bf16[3,128,128], index: 6, kind: input, shape index: {}]
  %s7 = inlined_call_operand.vmem [shape: f32[3,1,128], index: 7, kind: input, shape index: {}]
  %s8 = inlined_call_operand.vmem [shape: bf16[3,16,128], index: 8, kind: input, shape index: {}]
  %s9 = inlined_call_operand.vmem [shape: bf16[3,16,128], index: 9, kind: input, shape index: {}]
  %s10 = inlined_call_operand.hbm [shape: bf16[3,128,128], index: 10, kind: input, shape index: {}]
  %s11 = inlined_call_operand.vmem [shape: f32[3,1,128], index: 11, kind: input, shape index: {}]
  %s12 = inlined_call_operand.hbm [shape: bf16[3,7,128,128], index: 12, kind: input, shape index: {}]
  %s13 = inlined_call_operand.vmem [shape: f32[3,7,128], index: 13, kind: input, shape index: {}]
  %s14 = inlined_call_operand.hbm [shape: bf16[3,16,128], index: 14, kind: input, shape index: {}]
  %s15 = inlined_call_operand.hbm [shape: bf16[3,128,128], index: 15, kind: input, shape index: {}]
  %s16 = inlined_call_operand.hbm [shape: f32[3,1,128], index: 16, kind: input, shape index: {}]
  %s17 = inlined_call_operand.hbm [shape: f32[3,1,128], index: 17, kind: input, shape index: {}]
  %s18 = inlined_call_operand.vmem [shape: f32[3,1,1], index: 18, kind: input, shape index: {}]
  %s19 = inlined_call_operand.vmem [shape: f32[8,1], index: 19, kind: output, shape index: {}]
  %s20 = sld [smem:[#allocation0]]
  $region151: #{noattn_forward.3} parent=0
    _
  %s22 = ssub.s32 1, %s20
  %s23 = scalar_select 0, %s22, %s20
  %s24 = sshll.u32 %s0, 4
  %s25 = int_to_ptr.vmem [resolvable:$true] %s24
  %27 = dma.vmem_to_smem %s25, 16, [#allocation9], [#allocation8]
  %s28 = sshll.u32 %s1, 4
  %s29 = int_to_ptr.vmem [resolvable:$true] %s28
  %31 = dma.vmem_to_smem %s29, 16, [#allocation10], [#allocation8]
  %s32 = sshll.u32 %s2, 4
  %s33 = int_to_ptr.vmem [resolvable:$true] %s32
  %35 = dma.vmem_to_smem %s33, 16, [#allocation11], [#allocation8]
  %36 = dma.done [#allocation8], 48
  %37 = sfence
  $region1: #{noattn_forward.3} parent=0
    #allocation12 [shape = 'u8[8192]{0}', space=vmem, size = 0x2000, scoped, tag = 'input window, operand 3, single buffered']
    #allocation13 [shape = 's32[2]{0}', space=sflag, size = 0x8, scoped, tag = 'scoped memory for noattn_forward.3']
    #allocation14 [shape = 'u8[65536]{0}', space=vmem, size = 0x10000, scoped, tag = 'input window, operand 6']
    #allocation15 [shape = 's32[2]{0}', space=sflag, size = 0x8, scoped, tag = 'scoped memory for noattn_forward.3']
    #allocation16 [shape = 'u8[65536]{0}', space=vmem, size = 0x10000, scoped, tag = 'input window, operand 10']
    #allocation17 [shape = 'u8[458752]{0}', space=vmem, size = 0x70000, scoped, tag = 'input window, operand 12']
    #allocation18 [shape = 's32[2]{0}', space=sflag, size = 0x8, scoped, tag = 'scoped memory for noattn_forward.3']
    #allocation19 [shape = 'u8[8192]{0}', space=vmem, size = 0x2000, scoped, tag = 'input window, operand 14']
    #allocation20 [shape = 'u8[65536]{0}', space=vmem, size = 0x10000, scoped, tag = 'input window, operand 15']
    #allocation21 [shape = 's32[2]{0}', space=sflag, size = 0x8, scoped, tag = 'scoped memory for noattn_forward.3']
    #allocation22 [shape = 'u8[1024]{0}', space=vmem, size = 0x400, scoped, tag = 'input window, operand 16']
    #allocation23 [shape = 'u8[1024]{0}', space=vmem, size = 0x400, scoped, tag = 'input window, operand 17']
    #allocation24 [shape = 's32[2]{0}', space=sflag, size = 0x8, scoped, tag = 'scoped memory for noattn_forward.3']
    %38 = vsyncpa [#allocation13], 0
    %39 = vsyncpa [#allocation15], 0
    %s40 = scalar_lea.sflag [#allocation15], 1
    %41 = vsyncpa %s40, 0
    %42 = vsyncpa [#allocation18], 0
    %s43 = scalar_lea.sflag [#allocation18], 1
    %44 = vsyncpa %s43, 0
    %45 = vsyncpa [#allocation21], 0
    %s46 = scalar_lea.sflag [#allocation21], 1
    %47 = vsyncpa %s46, 0
    %48 = vsyncpa [#allocation24], 0
    %s49 = scalar_lea.sflag [#allocation24], 1
    %50 = vsyncpa %s49, 0
    loop: start=0, step=1, limit=5
    $region2: #{noattn_forward.3} parent=1 // loop_pre_header
      _
    $region3: #{noattn_forward.3} parent=1 // loop_header
      %s52 = sphi 0, %s56
      %p53 = scmp.ge.s32.totalorder %s52, 5
      %s60 = sphi 0, %s60
      %s62 = sphi 0, %s60
      %s63 = sphi 0, %s62
      %s77 = sphi 0, %s63
      %s81 = sphi 0, %s81
      %s83 = sphi 0, %s81
      %s84 = sphi 0, %s83
      %s98 = sphi 0, %s84
      %s102 = sphi 0, %s102
      %s104 = sphi 0, %s102
      %s105 = sphi 0, %s104
      %s119 = sphi 0, %s105
      %s125 = sphi 0, %s127
      %s128 = sphi 0, %s125
      %s129 = sphi 0, %s128
      %s145 = sphi 0, %s129
      %s151 = sphi 0, %s153
      %s154 = sphi 0, %s151
      %s155 = sphi 0, %s154
      %s171 = sphi 0, %s155
      %s177 = sphi 0, %s179
      %s180 = sphi 0, %s177
      %s181 = sphi 0, %s180
      %s197 = sphi 0, %s181
      %s203 = sphi 0, %s205
      %s206 = sphi 0, %s203
      %s207 = sphi 0, %s206
      %s223 = sphi 0, %s207
      %s229 = sphi 0, %s231
      %s232 = sphi 0, %s229
      %s233 = sphi 0, %s232
      %s249 = sphi 0, %s233
      %s255 = sphi 0, %s257
      %s258 = sphi 0, %s255
      %s259 = sphi 0, %s258
      %s275 = sphi 0, %s259
      %s281 = sphi 0, %s283
      %s284 = sphi 0, %s281
      %s285 = sphi 0, %s284
      %s301 = sphi 0, %s285
      %s307 = sphi 0, %s309
      %s310 = sphi 0, %s307
      %s311 = sphi 0, %s310
      %s327 = sphi 0, %s311
      %s333 = sphi 0, %s335
      %s336 = sphi 0, %s333
      %s337 = sphi 0, %s336
      %s353 = sphi 0, %s337
      %s359 = sphi 0, %s361
      %s362 = sphi 0, %s359
      %s363 = sphi 0, %s362
      %s379 = sphi 0, %s363
      %s385 = sphi 0, %s387
      %s388 = sphi 0, %s385
      %s389 = sphi 0, %s388
      %s405 = sphi 0, %s389
      %s411 = sphi 0, %s413
      %s414 = sphi 0, %s411
      %s415 = sphi 0, %s414
      %s431 = sphi 0, %s415
      %s437 = sphi 0, %s439
      %s440 = sphi 0, %s437
      %s441 = sphi 0, %s440
      %s457 = sphi 0, %s441
      %s461 = sphi 0, %s461
      %s463 = sphi 0, %s461
      %s464 = sphi 0, %s463
      %s478 = sphi 0, %s464
    $region4: #{noattn_forward.3} parent=1 // loop_header_branch
      %55 = sbr.rel (%p53) target = $region8
    $region5: #{noattn_forward.3} parent=1 // loop_body
      %s57 = ssub.s32 %s52, 1
      %s58 = ssub.s32 %s52, 2
      %s59 = sadd.s32 %s52, 1
      %s61 = sadd.s32 %s60, 1
      %p64 = scmp.eq.s32.totalorder %s52, 2
      %p65 = scmp.ne.s32.totalorder %s60, %s62
      %p66 = scmp.eq.s32.totalorder %s52, 0
      %p67 = por %p65, %p66
      %p68 = scmp.ne.s32.totalorder %s60, %s62
      %p69 = scmp.eq.s32.totalorder %s57, 2
      %p70 = por %p68, %p69
      %p71 = scmp.ne.s32.totalorder %s62, %s63
      %p72 = scmp.eq.s32.totalorder %s57, 0
      %p73 = por %p71, %p72
      %p74 = scmp.ne.s32.totalorder %s62, %s63
      %p75 = scmp.eq.s32.totalorder %s58, 2
      %p76 = por %p74, %p75
      %p78 = scmp.ne.s32.totalorder %s63, %s77
      %p79 = scmp.eq.s32.totalorder %s58, 0
      %p80 = por %p78, %p79
      %s82 = sadd.s32 %s81, 1
      %p85 = scmp.eq.s32.totalorder %s52, 2
      %p86 = scmp.ne.s32.totalorder %s81, %s83
      %p87 = scmp.eq.s32.totalorder %s52, 0
      %p88 = por %p86, %p87
      %p89 = scmp.ne.s32.totalorder %s81, %s83
      %p90 = scmp.eq.s32.totalorder %s57, 2
      %p91 = por %p89, %p90
      %p92 = scmp.ne.s32.totalorder %s83, %s84
      %p93 = scmp.eq.s32.totalorder %s57, 0
      %p94 = por %p92, %p93
      %p95 = scmp.ne.s32.totalorder %s83, %s84
      %p96 = scmp.eq.s32.totalorder %s58, 2
      %p97 = por %p95, %p96
      %p99 = scmp.ne.s32.totalorder %s84, %s98
      %p100 = scmp.eq.s32.totalorder %s58, 0
      %p101 = por %p99, %p100
      %s103 = sadd.s32 %s102, 1
      %p106 = scmp.eq.s32.totalorder %s52, 2
      %p107 = scmp.ne.s32.totalorder %s102, %s104
      %p108 = scmp.eq.s32.totalorder %s52, 0
      %p109 = por %p107, %p108
      %p110 = scmp.ne.s32.totalorder %s102, %s104
      %p111 = scmp.eq.s32.totalorder %s57, 2
      %p112 = por %p110, %p111
      %p113 = scmp.ne.s32.totalorder %s104, %s105
      %p114 = scmp.eq.s32.totalorder %s57, 0
      %p115 = por %p113, %p114
      %p116 = scmp.ne.s32.totalorder %s104, %s105
      %p117 = scmp.eq.s32.totalorder %s58, 2
      %p118 = por %p116, %p117
      %p120 = scmp.ne.s32.totalorder %s105, %s119
      %p121 = scmp.eq.s32.totalorder %s58, 0
      %p122 = por %p120, %p121
      %s123 = ssub.s32 %s52, %s59
      %p124 = scmp.eq.s32.totalorder %s123, 0
      %s126 = sadd.s32 %s125, 1
      %s127 = scalar_select %p124, %s125, %s126
      %p130 = pneg %p124
      %p131 = scmp.eq.s32.totalorder %s52, 2
      %p132 = por %p130, %p131
      %p133 = scmp.ne.s32.totalorder %s125, %s128
      %p134 = scmp.eq.s32.totalorder %s52, 0
      %p135 = por %p133, %p134
      %p136 = scmp.ne.s32.totalorder %s125, %s128
      %p137 = scmp.eq.s32.totalorder %s57, 2
      %p138 = por %p136, %p137
      %p139 = scmp.ne.s32.totalorder %s128, %s129
      %p140 = scmp.eq.s32.totalorder %s57, 0
      %p141 = por %p139, %p140
      %p142 = scmp.ne.s32.totalorder %s128, %s129
      %p143 = scmp.eq.s32.totalorder %s58, 2
      %p144 = por %p142, %p143
      %p146 = scmp.ne.s32.totalorder %s129, %s145
      %p147 = scmp.eq.s32.totalorder %s58, 0
      %p148 = por %p146, %p147
      %s149 = ssub.s32 %s52, %s59
      %p150 = scmp.eq.s32.totalorder %s149, 0
      %s152 = sadd.s32 %s151, 1
      %s153 = scalar_select %p150, %s151, %s152
      %p156 = pneg %p150
      %p157 = scmp.eq.s32.totalorder %s52, 2
      %p158 = por %p156, %p157
      %p159 = scmp.ne.s32.totalorder %s151, %s154
      %p160 = scmp.eq.s32.totalorder %s52, 0
      %p161 = por %p159, %p160
      %p162 = scmp.ne.s32.totalorder %s151, %s154
      %p163 = scmp.eq.s32.totalorder %s57, 2
      %p164 = por %p162, %p163
      %p165 = scmp.ne.s32.totalorder %s154, %s155
      %p166 = scmp.eq.s32.totalorder %s57, 0
      %p167 = por %p165, %p166
      %p168 = scmp.ne.s32.totalorder %s154, %s155
      %p169 = scmp.eq.s32.totalorder %s58, 2
      %p170 = por %p168, %p169
      %p172 = scmp.ne.s32.totalorder %s155, %s171
      %p173 = scmp.eq.s32.totalorder %s58, 0
      %p174 = por %p172, %p173
      %s175 = ssub.s32 %s52, %s59
      %p176 = scmp.eq.s32.totalorder %s175, 0
      %s178 = sadd.s32 %s177, 1
      %s179 = scalar_select %p176, %s177, %s178
      %p182 = pneg %p176
      %p183 = scmp.eq.s32.totalorder %s52, 2
      %p184 = por %p182, %p183
      %p185 = scmp.ne.s32.totalorder %s177, %s180
      %p186 = scmp.eq.s32.totalorder %s52, 0
      %p187 = por %p185, %p186
      %p188 = scmp.ne.s32.totalorder %s177, %s180
      %p189 = scmp.eq.s32.totalorder %s57, 2
      %p190 = por %p188, %p189
      %p191 = scmp.ne.s32.totalorder %s180, %s181
      %p192 = scmp.eq.s32.totalorder %s57, 0
      %p193 = por %p191, %p192
      %p194 = scmp.ne.s32.totalorder %s180, %s181
      %p195 = scmp.eq.s32.totalorder %s58, 2
      %p196 = por %p194, %p195
      %p198 = scmp.ne.s32.totalorder %s181, %s197
      %p199 = scmp.eq.s32.totalorder %s58, 0
      %p200 = por %p198, %p199
      %s201 = ssub.s32 %s52, %s59
      %p202 = scmp.eq.s32.totalorder %s201, 0
      %s204 = sadd.s32 %s203, 1
      %s205 = scalar_select %p202, %s203, %s204
      %p208 = pneg %p202
      %p209 = scmp.eq.s32.totalorder %s52, 2
      %p210 = por %p208, %p209
      %p211 = scmp.ne.s32.totalorder %s203, %s206
      %p212 = scmp.eq.s32.totalorder %s52, 0
      %p213 = por %p211, %p212
      %p214 = scmp.ne.s32.totalorder %s203, %s206
      %p215 = scmp.eq.s32.totalorder %s57, 2
      %p216 = por %p214, %p215
      %p217 = scmp.ne.s32.totalorder %s206, %s207
      %p218 = scmp.eq.s32.totalorder %s57, 0
      %p219 = por %p217, %p218
      %p220 = scmp.ne.s32.totalorder %s206, %s207
      %p221 = scmp.eq.s32.totalorder %s58, 2
      %p222 = por %p220, %p221
      %p224 = scmp.ne.s32.totalorder %s207, %s223
      %p225 = scmp.eq.s32.totalorder %s58, 0
      %p226 = por %p224, %p225
      %s227 = ssub.s32 %s52, %s59
      %p228 = scmp.eq.s32.totalorder %s227, 0
      %s230 = sadd.s32 %s229, 1
      %s231 = scalar_select %p228, %s229, %s230
      %p234 = pneg %p228
      %p235 = scmp.eq.s32.totalorder %s52, 2
      %p236 = por %p234, %p235
      %p237 = scmp.ne.s32.totalorder %s229, %s232
      %p238 = scmp.eq.s32.totalorder %s52, 0
      %p239 = por %p237, %p238
      %p240 = scmp.ne.s32.totalorder %s229, %s232
      %p241 = scmp.eq.s32.totalorder %s57, 2
      %p242 = por %p240, %p241
      %p243 = scmp.ne.s32.totalorder %s232, %s233
      %p244 = scmp.eq.s32.totalorder %s57, 0
      %p245 = por %p243, %p244
      %p246 = scmp.ne.s32.totalorder %s232, %s233
      %p247 = scmp.eq.s32.totalorder %s58, 2
      %p248 = por %p246, %p247
      %p250 = scmp.ne.s32.totalorder %s233, %s249
      %p251 = scmp.eq.s32.totalorder %s58, 0
      %p252 = por %p250, %p251
      %s253 = ssub.s32 %s52, %s59
      %p254 = scmp.eq.s32.totalorder %s253, 0
      %s256 = sadd.s32 %s255, 1
      %s257 = scalar_select %p254, %s255, %s256
      %p260 = pneg %p254
      %p261 = scmp.eq.s32.totalorder %s52, 2
      %p262 = por %p260, %p261
      %p263 = scmp.ne.s32.totalorder %s255, %s258
      %p264 = scmp.eq.s32.totalorder %s52, 0
      %p265 = por %p263, %p264
      %p266 = scmp.ne.s32.totalorder %s255, %s258
      %p267 = scmp.eq.s32.totalorder %s57, 2
      %p268 = por %p266, %p267
      %p269 = scmp.ne.s32.totalorder %s258, %s259
      %p270 = scmp.eq.s32.totalorder %s57, 0
      %p271 = por %p269, %p270
      %p272 = scmp.ne.s32.totalorder %s258, %s259
      %p273 = scmp.eq.s32.totalorder %s58, 2
      %p274 = por %p272, %p273
      %p276 = scmp.ne.s32.totalorder %s259, %s275
      %p277 = scmp.eq.s32.totalorder %s58, 0
      %p278 = por %p276, %p277
      %s279 = ssub.s32 %s52, %s59
      %p280 = scmp.eq.s32.totalorder %s279, 0
      %s282 = sadd.s32 %s281, 1
      %s283 = scalar_select %p280, %s281, %s282
      %p286 = pneg %p280
      %p287 = scmp.eq.s32.totalorder %s52, 2
      %p288 = por %p286, %p287
      %p289 = scmp.ne.s32.totalorder %s281, %s284
      %p290 = scmp.eq.s32.totalorder %s52, 0
      %p291 = por %p289, %p290
      %p292 = scmp.ne.s32.totalorder %s281, %s284
      %p293 = scmp.eq.s32.totalorder %s57, 2
      %p294 = por %p292, %p293
      %p295 = scmp.ne.s32.totalorder %s284, %s285
      %p296 = scmp.eq.s32.totalorder %s57, 0
      %p297 = por %p295, %p296
      %p298 = scmp.ne.s32.totalorder %s284, %s285
      %p299 = scmp.eq.s32.totalorder %s58, 2
      %p300 = por %p298, %p299
      %p302 = scmp.ne.s32.totalorder %s285, %s301
      %p303 = scmp.eq.s32.totalorder %s58, 0
      %p304 = por %p302, %p303
      %s305 = ssub.s32 %s52, %s59
      %p306 = scmp.eq.s32.totalorder %s305, 0
      %s308 = sadd.s32 %s307, 1
      %s309 = scalar_select %p306, %s307, %s308
      %p312 = pneg %p306
      %p313 = scmp.eq.s32.totalorder %s52, 2
      %p314 = por %p312, %p313
      %p315 = scmp.ne.s32.totalorder %s307, %s310
      %p316 = scmp.eq.s32.totalorder %s52, 0
      %p317 = por %p315, %p316
      %p318 = scmp.ne.s32.totalorder %s307, %s310
      %p319 = scmp.eq.s32.totalorder %s57, 2
      %p320 = por %p318, %p319
      %p321 = scmp.ne.s32.totalorder %s310, %s311
      %p322 = scmp.eq.s32.totalorder %s57, 0
      %p323 = por %p321, %p322
      %p324 = scmp.ne.s32.totalorder %s310, %s311
      %p325 = scmp.eq.s32.totalorder %s58, 2
      %p326 = por %p324, %p325
      %p328 = scmp.ne.s32.totalorder %s311, %s327
      %p329 = scmp.eq.s32.totalorder %s58, 0
      %p330 = por %p328, %p329
      %s331 = ssub.s32 %s52, %s59
      %p332 = scmp.eq.s32.totalorder %s331, 0
      %s334 = sadd.s32 %s333, 1
      %s335 = scalar_select %p332, %s333, %s334
      %p338 = pneg %p332
      %p339 = scmp.eq.s32.totalorder %s52, 2
      %p340 = por %p338, %p339
      %p341 = scmp.ne.s32.totalorder %s333, %s336
      %p342 = scmp.eq.s32.totalorder %s52, 0
      %p343 = por %p341, %p342
      %p344 = scmp.ne.s32.totalorder %s333, %s336
      %p345 = scmp.eq.s32.totalorder %s57, 2
      %p346 = por %p344, %p345
      %p347 = scmp.ne.s32.totalorder %s336, %s337
      %p348 = scmp.eq.s32.totalorder %s57, 0
      %p349 = por %p347, %p348
      %p350 = scmp.ne.s32.totalorder %s336, %s337
      %p351 = scmp.eq.s32.totalorder %s58, 2
      %p352 = por %p350, %p351
      %p354 = scmp.ne.s32.totalorder %s337, %s353
      %p355 = scmp.eq.s32.totalorder %s58, 0
      %p356 = por %p354, %p355
      %s357 = ssub.s32 %s52, %s59
      %p358 = scmp.eq.s32.totalorder %s357, 0
      %s360 = sadd.s32 %s359, 1
      %s361 = scalar_select %p358, %s359, %s360
      %p364 = pneg %p358
      %p365 = scmp.eq.s32.totalorder %s52, 2
      %p366 = por %p364, %p365
      %p367 = scmp.ne.s32.totalorder %s359, %s362
      %p368 = scmp.eq.s32.totalorder %s52, 0
      %p369 = por %p367, %p368
      %p370 = scmp.ne.s32.totalorder %s359, %s362
      %p371 = scmp.eq.s32.totalorder %s57, 2
      %p372 = por %p370, %p371
      %p373 = scmp.ne.s32.totalorder %s362, %s363
      %p374 = scmp.eq.s32.totalorder %s57, 0
      %p375 = por %p373, %p374
      %p376 = scmp.ne.s32.totalorder %s362, %s363
      %p377 = scmp.eq.s32.totalorder %s58, 2
      %p378 = por %p376, %p377
      %p380 = scmp.ne.s32.totalorder %s363, %s379
      %p381 = scmp.eq.s32.totalorder %s58, 0
      %p382 = por %p380, %p381
      %s383 = ssub.s32 %s52, %s59
      %p384 = scmp.eq.s32.totalorder %s383, 0
      %s386 = sadd.s32 %s385, 1
      %s387 = scalar_select %p384, %s385, %s386
      %p390 = pneg %p384
      %p391 = scmp.eq.s32.totalorder %s52, 2
      %p392 = por %p390, %p391
      %p393 = scmp.ne.s32.totalorder %s385, %s388
      %p394 = scmp.eq.s32.totalorder %s52, 0
      %p395 = por %p393, %p394
      %p396 = scmp.ne.s32.totalorder %s385, %s388
      %p397 = scmp.eq.s32.totalorder %s57, 2
      %p398 = por %p396, %p397
      %p399 = scmp.ne.s32.totalorder %s388, %s389
      %p400 = scmp.eq.s32.totalorder %s57, 0
      %p401 = por %p399, %p400
      %p402 = scmp.ne.s32.totalorder %s388, %s389
      %p403 = scmp.eq.s32.totalorder %s58, 2
      %p404 = por %p402, %p403
      %p406 = scmp.ne.s32.totalorder %s389, %s405
      %p407 = scmp.eq.s32.totalorder %s58, 0
      %p408 = por %p406, %p407
      %s409 = ssub.s32 %s52, %s59
      %p410 = scmp.eq.s32.totalorder %s409, 0
      %s412 = sadd.s32 %s411, 1
      %s413 = scalar_select %p410, %s411, %s412
      %p416 = pneg %p410
      %p417 = scmp.eq.s32.totalorder %s52, 2
      %p418 = por %p416, %p417
      %p419 = scmp.ne.s32.totalorder %s411, %s414
      %p420 = scmp.eq.s32.totalorder %s52, 0
      %p421 = por %p419, %p420
      %p422 = scmp.ne.s32.totalorder %s411, %s414
      %p423 = scmp.eq.s32.totalorder %s57, 2
      %p424 = por %p422, %p423
      %p425 = scmp.ne.s32.totalorder %s414, %s415
      %p426 = scmp.eq.s32.totalorder %s57, 0
      %p427 = por %p425, %p426
      %p428 = scmp.ne.s32.totalorder %s414, %s415
      %p429 = scmp.eq.s32.totalorder %s58, 2
      %p430 = por %p428, %p429
      %p432 = scmp.ne.s32.totalorder %s415, %s431
      %p433 = scmp.eq.s32.totalorder %s58, 0
      %p434 = por %p432, %p433
      %s435 = ssub.s32 %s52, %s59
      %p436 = scmp.eq.s32.totalorder %s435, 0
      %s438 = sadd.s32 %s437, 1
      %s439 = scalar_select %p436, %s437, %s438
      %p442 = pneg %p436
      %p443 = scmp.eq.s32.totalorder %s52, 2
      %p444 = por %p442, %p443
      %p445 = scmp.ne.s32.totalorder %s437, %s440
      %p446 = scmp.eq.s32.totalorder %s52, 0
      %p447 = por %p445, %p446
      %p448 = scmp.ne.s32.totalorder %s437, %s440
      %p449 = scmp.eq.s32.totalorder %s57, 2
      %p450 = por %p448, %p449
      %p451 = scmp.ne.s32.totalorder %s440, %s441
      %p452 = scmp.eq.s32.totalorder %s57, 0
      %p453 = por %p451, %p452
      %p454 = scmp.ne.s32.totalorder %s440, %s441
      %p455 = scmp.eq.s32.totalorder %s58, 2
      %p456 = por %p454, %p455
      %p458 = scmp.ne.s32.totalorder %s441, %s457
      %p459 = scmp.eq.s32.totalorder %s58, 0
      %p460 = por %p458, %p459
      %s462 = sadd.s32 %s461, 1
      %p465 = scmp.eq.s32.totalorder %s52, 2
      %p466 = scmp.ne.s32.totalorder %s461, %s463
      %p467 = scmp.eq.s32.totalorder %s52, 0
      %p468 = por %p466, %p467
      %p469 = scmp.ne.s32.totalorder %s461, %s463
      %p470 = scmp.eq.s32.totalorder %s57, 2
      %p471 = por %p469, %p470
      %p472 = scmp.ne.s32.totalorder %s463, %s464
      %p473 = scmp.eq.s32.totalorder %s57, 0
      %p474 = por %p472, %p473
      %p475 = scmp.ne.s32.totalorder %s463, %s464
      %p476 = scmp.eq.s32.totalorder %s58, 2
      %p477 = por %p475, %p476
      %p479 = scmp.ne.s32.totalorder %s464, %s478
      %p480 = scmp.eq.s32.totalorder %s58, 0
      %p481 = por %p479, %p480
      %p482 = scmp.le.s32.totalorder 1, %s52
      %p483 = scmp.lt.s32.totalorder %s52, 4
      %p484 = pnand %p482, %p483
      %p485 = pneg %p484
      // Predicated region
      $region9: #{noattn_forward.3} parent=5 // pred_check
        _
      $region10: #{noattn_forward.3} parent=5 // pred_check_branch
        %487 = sbr.rel (%p484) target = $region12
      $region11: #{noattn_forward.3} parent=5 // pred_region
        %s488 = ssub.s32 %s52, 1
        // Predicated region
        $region13: #{noattn_forward.3} parent=11 // pred_check
          %p489 = pneg %p73
        $region14: #{noattn_forward.3} parent=11 // pred_check_branch
          %491 = sbr.rel (%p489) target = $region16
        $region15: #{noattn_forward.3} parent=11 // pred_region
          %s493 = ssub.s32 256, 256
          %494 = vsyncadd [#allocation13], %s493
          %s495 = sshll.u32 [#allocation12], 4
          %s496 = int_to_ptr.vmem [resolvable:$true] %s495
          %501 = dma.hbm_to_vmem [thread:$0]  %s3, 256, %s496, [#allocation13], 128, 128, 8
        $region16: #{noattn_forward.3} parent=11 // pred_fallthru
          _
        // Predicated region
        $region17: #{noattn_forward.3} parent=11 // pred_check
          %p502 = pneg %p94
        $region18: #{noattn_forward.3} parent=11 // pred_check_branch
          %504 = sbr.rel (%p502) target = $region20
        $region19: #{noattn_forward.3} parent=11 // pred_region
          _
        $region20: #{noattn_forward.3} parent=11 // pred_fallthru
          _
        // Predicated region
        $region21: #{noattn_forward.3} parent=11 // pred_check
          %p505 = pneg %p115
        $region22: #{noattn_forward.3} parent=11 // pred_check_branch
          %507 = sbr.rel (%p505) target = $region24
        $region23: #{noattn_forward.3} parent=11 // pred_region
          _
        $region24: #{noattn_forward.3} parent=11 // pred_fallthru
          _
      $region12: #{noattn_forward.3} parent=5 // pred_fallthru
        _
      %p508 = scmp.lt.s32.totalorder %s52, 3
      // Predicated region
      $region25: #{noattn_forward.3} parent=5 // pred_check
        %p509 = pneg %p508
      $region26: #{noattn_forward.3} parent=5 // pred_check_branch
        %511 = sbr.rel (%p509) target = $region28
      $region27: #{noattn_forward.3} parent=5 // pred_region
        // Predicated region
        $region29: #{noattn_forward.3} parent=27 // pred_check
          %p512 = pneg %p135
        $region30: #{noattn_forward.3} parent=27 // pred_check_branch
          %514 = sbr.rel (%p512) target = $region32
        $region31: #{noattn_forward.3} parent=27 // pred_region
          %s515 = sand.u32 %s52, 1
          %s516 = scalar_lea.sflag [#allocation15], %s515
          %s517 = sand.u32 %s125, 1
          %s518 = smul.addr %s517, 64
          %s519 = scalar_lea.vmem [#allocation14], %s518
          %s521 = ssub.s32 1024, 1024
          %522 = vsyncadd %s516, %s521
          %s523 = smul.addr %s52, 16
          %s524 = smul.addr %s523, 64
          %s525 = scalar_lea.hbm %s6, %s524
          %s526 = sshll.u32 %s519, 4
          %s527 = int_to_ptr.vmem [resolvable:$true] %s526
          %532 = dma.hbm_to_vmem [thread:$0]  %s525, 1024, %s527, %s516, 64, 64, 4
        $region32: #{noattn_forward.3} parent=27 // pred_fallthru
          _
        // Predicated region
        $region33: #{noattn_forward.3} parent=27 // pred_check
          %p533 = pneg %p161
        $region34: #{noattn_forward.3} parent=27 // pred_check_branch
          %535 = sbr.rel (%p533) target = $region36
        $region35: #{noattn_forward.3} parent=27 // pred_region
          %p536 = scmp.lt.s32.totalorder %s52, 2
          %s537 = scalar_select %p536, %s52, 2
          %s538 = scalar_lea.vmem %s7, %s537
        $region36: #{noattn_forward.3} parent=27 // pred_fallthru
          _
        // Predicated region
        $region37: #{noattn_forward.3} parent=27 // pred_check
          %p539 = pneg %p187
        $region38: #{noattn_forward.3} parent=27 // pred_check_branch
          %541 = sbr.rel (%p539) target = $region40
        $region39: #{noattn_forward.3} parent=27 // pred_region
          %p542 = scmp.lt.s32.totalorder %s52, 2
          %s543 = scalar_select %p542, %s52, 2
          %s544 = smul.addr %s543, 2
          %s545 = smul.addr %s544, 4
          %s546 = scalar_lea.vmem %s8, %s545
        $region40: #{noattn_forward.3} parent=27 // pred_fallthru
          _
        // Predicated region
        $region41: #{noattn_forward.3} parent=27 // pred_check
          %p547 = pneg %p213
        $region42: #{noattn_forward.3} parent=27 // pred_check_branch
          %549 = sbr.rel (%p547) target = $region44
        $region43: #{noattn_forward.3} parent=27 // pred_region
          %p550 = scmp.lt.s32.totalorder %s52, 2
          %s551 = scalar_select %p550, %s52, 2
          %s552 = smul.addr %s551, 2
          %s553 = smul.addr %s552, 4
          %s554 = scalar_lea.vmem %s9, %s553
        $region44: #{noattn_forward.3} parent=27 // pred_fallthru
          _
        // Predicated region
        $region45: #{noattn_forward.3} parent=27 // pred_check
          %p555 = pneg %p239
        $region46: #{noattn_forward.3} parent=27 // pred_check_branch
          %557 = sbr.rel (%p555) target = $region48
        $region47: #{noattn_forward.3} parent=27 // pred_region
          %s558 = sand.u32 %s52, 1
          %s559 = scalar_lea.sflag [#allocation15], %s558
          %s560 = sand.u32 %s229, 1
          %s561 = smul.addr %s560, 64
          %s562 = scalar_lea.vmem [#allocation16], %s561
          %s564 = ssub.s32 1024, 1024
          %565 = vsyncadd %s559, %s564
          %s566 = smul.addr %s52, 16
          %s567 = smul.addr %s566, 64
          %s568 = scalar_lea.hbm %s10, %s567
          %s569 = sshll.u32 %s562, 4
          %s570 = int_to_ptr.vmem [resolvable:$true] %s569
          %575 = dma.hbm_to_vmem [thread:$0]  %s568, 1024, %s570, %s559, 64, 64, 4
        $region48: #{noattn_forward.3} parent=27 // pred_fallthru
          _
        // Predicated region
        $region49: #{noattn_forward.3} parent=27 // pred_check
          %p576 = pneg %p265
        $region50: #{noattn_forward.3} parent=27 // pred_check_branch
          %578 = sbr.rel (%p576) target = $region52
        $region51: #{noattn_forward.3} parent=27 // pred_region
          %p579 = scmp.lt.s32.totalorder %s52, 2
          %s580 = scalar_select %p579, %s52, 2
          %s581 = scalar_lea.vmem %s11, %s580
        $region52: #{noattn_forward.3} parent=27 // pred_fallthru
          _
        // Predicated region
        $region53: #{noattn_forward.3} parent=27 // pred_check
          %p582 = pneg %p291
        $region54: #{noattn_forward.3} parent=27 // pred_check_branch
          %584 = sbr.rel (%p582) target = $region56
        $region55: #{noattn_forward.3} parent=27 // pred_region
          %s585 = sand.u32 %s52, 1
          %s586 = scalar_lea.sflag [#allocation18], %s585
          %s587 = sand.u32 %s281, 1
          %s588 = smul.addr %s587, 448
          %s589 = scalar_lea.vmem [#allocation17], %s588
          %s591 = ssub.s32 7168, 7168
          %592 = vsyncadd %s586, %s591
          %s593 = smul.addr %s52, 112
          %s594 = smul.addr %s593, 64
          %s595 = scalar_lea.hbm %s12, %s594
          %s596 = sshll.u32 %s589, 4
          %s597 = int_to_ptr.vmem [resolvable:$true] %s596
          %602 = dma.hbm_to_vmem [thread:$0]  %s595, 7168, %s597, %s586, 64, 64, 4
        $region56: #{noattn_forward.3} parent=27 // pred_fallthru
          _
        // Predicated region
        $region57: #{noattn_forward.3} parent=27 // pred_check
          %p603 = pneg %p317
        $region58: #{noattn_forward.3} parent=27 // pred_check_branch
          %605 = sbr.rel (%p603) target = $region60
        $region59: #{noattn_forward.3} parent=27 // pred_region
          %p606 = scmp.lt.s32.totalorder %s52, 2
          %s607 = scalar_select %p606, %s52, 2
          %s608 = smul.addr %s607, 8
          %s609 = scalar_lea.vmem %s13, %s608
        $region60: #{noattn_forward.3} parent=27 // pred_fallthru
          _
        // Predicated region
        $region61: #{noattn_forward.3} parent=27 // pred_check
          %p610 = pneg %p343
        $region62: #{noattn_forward.3} parent=27 // pred_check_branch
          %612 = sbr.rel (%p610) target = $region64
        $region63: #{noattn_forward.3} parent=27 // pred_region
          %s613 = sand.u32 %s52, 1
          %s614 = scalar_lea.sflag [#allocation18], %s613
          %s615 = sand.u32 %s333, 1
          %s616 = smul.addr %s615, 8
          %s617 = scalar_lea.vmem [#allocation19], %s616
          %s619 = ssub.s32 128, 128
          %620 = vsyncadd %s614, %s619
          %s621 = smul.addr %s52, 2
          %s622 = smul.addr %s621, 64
          %s623 = scalar_lea.hbm %s14, %s622
          %s624 = sshll.u32 %s617, 4
          %s625 = int_to_ptr.vmem [resolvable:$true] %s624
          %630 = dma.hbm_to_vmem [thread:$0]  %s623, 128, %s625, %s614, 64, 64, 4
        $region64: #{noattn_forward.3} parent=27 // pred_fallthru
          _
        // Predicated region
        $region65: #{noattn_forward.3} parent=27 // pred_check
          %p631 = pneg %p369
        $region66: #{noattn_forward.3} parent=27 // pred_check_branch
          %633 = sbr.rel (%p631) target = $region68
        $region67: #{noattn_forward.3} parent=27 // pred_region
          %s634 = sand.u32 %s52, 1
          %s635 = scalar_lea.sflag [#allocation21], %s634
          %s636 = sand.u32 %s359, 1
          %s637 = smul.addr %s636, 64
          %s638 = scalar_lea.vmem [#allocation20], %s637
          %s640 = ssub.s32 1024, 1024
          %641 = vsyncadd %s635, %s640
          %s642 = smul.addr %s52, 16
          %s643 = smul.addr %s642, 64
          %s644 = scalar_lea.hbm %s15, %s643
          %s645 = sshll.u32 %s638, 4
          %s646 = int_to_ptr.vmem [resolvable:$true] %s645
          %651 = dma.hbm_to_vmem [thread:$0]  %s644, 1024, %s646, %s635, 64, 64, 4
        $region68: #{noattn_forward.3} parent=27 // pred_fallthru
          _
        // Predicated region
        $region69: #{noattn_forward.3} parent=27 // pred_check
          %p652 = pneg %p395
        $region70: #{noattn_forward.3} parent=27 // pred_check_branch
          %654 = sbr.rel (%p652) target = $region72
        $region71: #{noattn_forward.3} parent=27 // pred_region
          %s655 = sand.u32 %s52, 1
          %s656 = scalar_lea.sflag [#allocation21], %s655
          %s657 = sand.u32 %s385, 1
          %s658 = scalar_lea.vmem [#allocation22], %s657
          %s660 = ssub.s32 16, 16
          %661 = vsyncadd %s656, %s660
          %s662 = smul.addr %s52, 16
          %s663 = scalar_lea.hbm %s16, %s662
          %s665 = sshll.u32 %s658, 4
          %s666 = int_to_ptr.vmem [resolvable:$true] %s665
          %668 = dma.hbm_to_vmem [thread:$0]  %s663, 16, %s666, %s656
        $region72: #{noattn_forward.3} parent=27 // pred_fallthru
          _
        // Predicated region
        $region73: #{noattn_forward.3} parent=27 // pred_check
          %p669 = pneg %p421
        $region74: #{noattn_forward.3} parent=27 // pred_check_branch
          %671 = sbr.rel (%p669) target = $region76
        $region75: #{noattn_forward.3} parent=27 // pred_region
          %s672 = sand.u32 %s411, 1
          %s673 = scalar_lea.sflag [#allocation24], %s672
          %s674 = sand.u32 %s411, 1
          %s675 = scalar_lea.vmem [#allocation23], %s674
          %s677 = ssub.s32 16, 16
          %678 = vsyncadd %s673, %s677
          %s679 = smul.addr %s52, 16
          %s680 = scalar_lea.hbm %s17, %s679
          %s682 = sshll.u32 %s675, 4
          %s683 = int_to_ptr.vmem [resolvable:$true] %s682
          %685 = dma.hbm_to_vmem [thread:$0]  %s680, 16, %s683, %s673
        $region76: #{noattn_forward.3} parent=27 // pred_fallthru
          _
        // Predicated region
        $region77: #{noattn_forward.3} parent=27 // pred_check
          %p686 = pneg %p447
        $region78: #{noattn_forward.3} parent=27 // pred_check_branch
          %688 = sbr.rel (%p686) target = $region80
        $region79: #{noattn_forward.3} parent=27 // pred_region
          %p689 = scmp.lt.s32.totalorder %s52, 2
          %s690 = scalar_select %p689, %s52, 2
          %s691 = scalar_lea.vmem %s18, %s690
        $region80: #{noattn_forward.3} parent=27 // pred_fallthru
          _
      $region28: #{noattn_forward.3} parent=5 // pred_fallthru
        _
      %p692 = scmp.le.s32.totalorder 1, %s52
      %p693 = scmp.lt.s32.totalorder %s52, 4
      %p694 = pnand %p692, %p693
      %p695 = pneg %p694
      // Predicated region
      $region81: #{noattn_forward.3} parent=5 // pred_check
        _
      $region82: #{noattn_forward.3} parent=5 // pred_check_branch
        %697 = sbr.rel (%p694) target = $region84
      $region83: #{noattn_forward.3} parent=5 // pred_region
        %s698 = ssub.s32 %s52, 1
        // Predicated region
        $region85: #{noattn_forward.3} parent=83 // pred_check
          %p699 = pneg %p73
        $region86: #{noattn_forward.3} parent=83 // pred_check_branch
          %701 = sbr.rel (%p699) target = $region88
        $region87: #{noattn_forward.3} parent=83 // pred_region
          %702 = dma.done [#allocation13], 256
        $region88: #{noattn_forward.3} parent=83 // pred_fallthru
          _
        %s703 = sand.u32 %s57, 1
        %s704 = scalar_lea.sflag [#allocation15], %s703
        %s705 = sand.u32 %s128, 1
        %s706 = smul.addr %s705, 64
        %s707 = scalar_lea.vmem [#allocation14], %s706
        // Predicated region
        $region89: #{noattn_forward.3} parent=83 // pred_check
          %p708 = pneg %p141
        $region90: #{noattn_forward.3} parent=83 // pred_check_branch
          %710 = sbr.rel (%p708) target = $region92
        $region91: #{noattn_forward.3} parent=83 // pred_region
          %711 = dma.done %s704, 1024
        $region92: #{noattn_forward.3} parent=83 // pred_fallthru
          _
        %s712 = sand.u32 %s57, 1
        %s713 = scalar_lea.sflag [#allocation15], %s712
        %s714 = sand.u32 %s232, 1
        %s715 = smul.addr %s714, 64
        %s716 = scalar_lea.vmem [#allocation16], %s715
        // Predicated region
        $region93: #{noattn_forward.3} parent=83 // pred_check
          %p717 = pneg %p245
        $region94: #{noattn_forward.3} parent=83 // pred_check_branch
          %719 = sbr.rel (%p717) target = $region96
        $region95: #{noattn_forward.3} parent=83 // pred_region
          %720 = dma.done %s713, 1024
        $region96: #{noattn_forward.3} parent=83 // pred_fallthru
          _
        %s721 = sand.u32 %s57, 1
        %s722 = scalar_lea.sflag [#allocation18], %s721
        %s723 = sand.u32 %s284, 1
        %s724 = smul.addr %s723, 448
        %s725 = scalar_lea.vmem [#allocation17], %s724
        // Predicated region
        $region97: #{noattn_forward.3} parent=83 // pred_check
          %p726 = pneg %p297
        $region98: #{noattn_forward.3} parent=83 // pred_check_branch
          %728 = sbr.rel (%p726) target = $region100
        $region99: #{noattn_forward.3} parent=83 // pred_region
          %729 = dma.done %s722, 7168
        $region100: #{noattn_forward.3} parent=83 // pred_fallthru
          _
        %s730 = sand.u32 %s57, 1
        %s731 = scalar_lea.sflag [#allocation18], %s730
        %s732 = sand.u32 %s336, 1
        %s733 = smul.addr %s732, 8
        %s734 = scalar_lea.vmem [#allocation19], %s733
        // Predicated region
        $region101: #{noattn_forward.3} parent=83 // pred_check
          %p735 = pneg %p349
        $region102: #{noattn_forward.3} parent=83 // pred_check_branch
          %737 = sbr.rel (%p735) target = $region104
        $region103: #{noattn_forward.3} parent=83 // pred_region
          %738 = dma.done %s731, 128
        $region104: #{noattn_forward.3} parent=83 // pred_fallthru
          _
        %s739 = sand.u32 %s57, 1
        %s740 = scalar_lea.sflag [#allocation21], %s739
        %s741 = sand.u32 %s362, 1
        %s742 = smul.addr %s741, 64
        %s743 = scalar_lea.vmem [#allocation20], %s742
        // Predicated region
        $region105: #{noattn_forward.3} parent=83 // pred_check
          %p744 = pneg %p375
        $region106: #{noattn_forward.3} parent=83 // pred_check_branch
          %746 = sbr.rel (%p744) target = $region108
        $region107: #{noattn_forward.3} parent=83 // pred_region
          %747 = dma.done %s740, 1024
        $region108: #{noattn_forward.3} parent=83 // pred_fallthru
          _
        %s748 = sand.u32 %s57, 1
        %s749 = scalar_lea.sflag [#allocation21], %s748
        %s750 = sand.u32 %s388, 1
        %s751 = scalar_lea.vmem [#allocation22], %s750
        // Predicated region
        $region109: #{noattn_forward.3} parent=83 // pred_check
          %p752 = pneg %p401
        $region110: #{noattn_forward.3} parent=83 // pred_check_branch
          %754 = sbr.rel (%p752) target = $region112
        $region111: #{noattn_forward.3} parent=83 // pred_region
          %755 = dma.done %s749, 16
        $region112: #{noattn_forward.3} parent=83 // pred_fallthru
          _
        %s756 = sand.u32 %s414, 1
        %s757 = scalar_lea.sflag [#allocation24], %s756
        %s758 = sand.u32 %s414, 1
        %s759 = scalar_lea.vmem [#allocation23], %s758
        // Predicated region
        $region113: #{noattn_forward.3} parent=83 // pred_check
          %p760 = pneg %p427
        $region114: #{noattn_forward.3} parent=83 // pred_check_branch
          %762 = sbr.rel (%p760) target = $region116
        $region115: #{noattn_forward.3} parent=83 // pred_region
          %763 = dma.done %s757, 16
        $region116: #{noattn_forward.3} parent=83 // pred_fallthru
          _
        %p764 = pneg %p73
        %p765 = pneg %p70
        %p766 = pneg %p94
        %p767 = pneg %p91
        %p768 = pneg %p115
        %p769 = pneg %p112
        %s770 = sand.u32 %s57, 1
        %s771 = scalar_lea.sflag [#allocation15], %s770
        %s772 = sand.u32 %s128, 1
        %s773 = smul.addr %s772, 64
        %s774 = scalar_lea.vmem [#allocation14], %s773
        %p775 = pneg %p141
        %p776 = pneg %p138
        %p777 = scmp.lt.s32.totalorder %s57, 2
        %s778 = scalar_select %p777, %s57, 2
        %s779 = scalar_lea.vmem %s7, %s778
        %p780 = pneg %p167
        %p781 = pneg %p164
        %p782 = scmp.lt.s32.totalorder %s57, 2
        %s783 = scalar_select %p782, %s57, 2
        %s784 = smul.addr %s783, 2
        %s785 = smul.addr %s784, 4
        %s786 = scalar_lea.vmem %s8, %s785
        %p787 = pneg %p193
        %p788 = pneg %p190
        %p789 = scmp.lt.s32.totalorder %s57, 2
        %s790 = scalar_select %p789, %s57, 2
        %s791 = smul.addr %s790, 2
        %s792 = smul.addr %s791, 4
        %s793 = scalar_lea.vmem %s9, %s792
        %p794 = pneg %p219
        %p795 = pneg %p216
        %s796 = sand.u32 %s57, 1
        %s797 = scalar_lea.sflag [#allocation15], %s796
        %s798 = sand.u32 %s232, 1
        %s799 = smul.addr %s798, 64
        %s800 = scalar_lea.vmem [#allocation16], %s799
        %p801 = pneg %p245
        %p802 = pneg %p242
        %p803 = scmp.lt.s32.totalorder %s57, 2
        %s804 = scalar_select %p803, %s57, 2
        %s805 = scalar_lea.vmem %s11, %s804
        %p806 = pneg %p271
        %p807 = pneg %p268
        %s808 = sand.u32 %s57, 1
        %s809 = scalar_lea.sflag [#allocation18], %s808
        %s810 = sand.u32 %s284, 1
        %s811 = smul.addr %s810, 448
        %s812 = scalar_lea.vmem [#allocation17], %s811
        %p813 = pneg %p297
        %p814 = pneg %p294
        %p815 = scmp.lt.s32.totalorder %s57, 2
        %s816 = scalar_select %p815, %s57, 2
        %s817 = smul.addr %s816, 8
        %s818 = scalar_lea.vmem %s13, %s817
        %p819 = pneg %p323
        %p820 = pneg %p320
        %s821 = sand.u32 %s57, 1
        %s822 = scalar_lea.sflag [#allocation18], %s821
        %s823 = sand.u32 %s336, 1
        %s824 = smul.addr %s823, 8
        %s825 = scalar_lea.vmem [#allocation19], %s824
        %p826 = pneg %p349
        %p827 = pneg %p346
        %s828 = sand.u32 %s57, 1
        %s829 = scalar_lea.sflag [#allocation21], %s828
        %s830 = sand.u32 %s362, 1
        %s831 = smul.addr %s830, 64
        %s832 = scalar_lea.vmem [#allocation20], %s831
        %p833 = pneg %p375
        %p834 = pneg %p372
        %s835 = sand.u32 %s57, 1
        %s836 = scalar_lea.sflag [#allocation21], %s835
        %s837 = sand.u32 %s388, 1
        %s838 = scalar_lea.vmem [#allocation22], %s837
        %p839 = pneg %p401
        %p840 = pneg %p398
        %s841 = sand.u32 %s414, 1
        %s842 = scalar_lea.sflag [#allocation24], %s841
        %s843 = sand.u32 %s414, 1
        %s844 = scalar_lea.vmem [#allocation23], %s843
        %p845 = pneg %p427
        %p846 = pneg %p424
        %p847 = scmp.lt.s32.totalorder %s57, 2
        %s848 = scalar_select %p847, %s57, 2
        %s849 = scalar_lea.vmem %s18, %s848
        %p850 = pneg %p453
        %p851 = pneg %p450
        %p852 = pneg %p474
        %p853 = pneg %p471
        %p854 = scmp.lt.s32.totalorder %s57, 2
        %s855 = scalar_select %p854, %s57, 2
        %s856 = scalar_lea.vmem %s7, %s855
        %p857 = scmp.lt.s32.totalorder %s57, 2
        %s858 = scalar_select %p857, %s57, 2
        %s859 = smul.addr %s858, 2
        %s860 = smul.addr %s859, 4
        %s861 = scalar_lea.vmem %s8, %s860
        %p862 = scmp.lt.s32.totalorder %s57, 2
        %s863 = scalar_select %p862, %s57, 2
        %s864 = smul.addr %s863, 2
        %s865 = smul.addr %s864, 4
        %s866 = scalar_lea.vmem %s9, %s865
        %p867 = scmp.lt.s32.totalorder %s57, 2
        %s868 = scalar_select %p867, %s57, 2
        %s869 = scalar_lea.vmem %s11, %s868
        %p870 = scmp.lt.s32.totalorder %s57, 2
        %s871 = scalar_select %p870, %s57, 2
        %s872 = smul.addr %s871, 8
        %s873 = scalar_lea.vmem %s13, %s872
        %p874 = scmp.lt.s32.totalorder %s57, 2
        %s875 = scalar_select %p874, %s57, 2
        %s876 = scalar_lea.vmem %s18, %s875
        %p878 = scmp.eq.s32.totalorder %s57, 0
        // Predicated region
        $region117: #{noattn_forward.3} parent=83 // pred_check
          %p879 = pneg %p878
        $region118: #{noattn_forward.3} parent=83 // pred_check_branch
          %881 = sbr.rel (%p879) target = $region120
        $region119: #{noattn_forward.3} parent=83 // pred_region
          %v882 = vld [vmem:[#allocation12] sm:$0xff]
          %v883 = vld [vmem:[#allocation12 + $0x8] sm:$0xff]
          %884 = vst [vmem:[#allocation2] sm:$0xff] %v882
          %885 = vst [vmem:[#allocation2 + $0x8] sm:$0xff] %v883
          %vm886 = vcmask 7168
          %887 = vst.msk [vmem:[%s19] sm:$0xff] %vm886, 0.0
        $region120: #{noattn_forward.3} parent=83 // pred_fallthru
          _
        %p888 = scmp.gt.s32.totalorder %s57, 0
        // Predicated region
        $region121: #{noattn_forward.3} parent=83 // pred_check
          %p889 = pneg %p888
        $region122: #{noattn_forward.3} parent=83 // pred_check_branch
          %891 = sbr.rel (%p889) target = $region124
        $region123: #{noattn_forward.3} parent=83 // pred_region
          %v892 = vld [vmem:[#allocation2] sm:$0xff]
          %v893 = vld [vmem:[#allocation2 + $0x8] sm:$0xff]
          %v894 = vld [vmem:[%s4] sm:$0xff]
          %v895 = vld [vmem:[%s4 + $0x8] sm:$0xff]
          %v896 = vpack.c.bf16 %v895, %v894
          %v897 = vld [vmem:[%s861] sm:$0xf]
          %v898 = vld [vmem:[%s861 + $0x4] sm:$0xf]
          %v901 = vunpack.c.l.b16 %v897
          %v902 = vunpack.c.l.b16 %v898
          %v903 = vpack.c.b16 %v902, %v901
          %vm905 = vcmask 130048
          %v907 = vsel %vm905, %v896, 0
          %909 = vmatprep.subr.bf16.mxu0 0
          %910 = vmatpush1.bf16.msra.mxu0 %v903
          %911 = vmatprep.subr.bf16.mxu0 0
          %912 = vmatpush1.bf16.msra.mxu0 0
          %913 = vmatprep.subr.bf16.mxu0 0
          %914 = vmatpush1.bf16.msra.mxu0 0
          %915 = vmatprep.subr.bf16.mxu0 0
          %916 = vmatpush1.bf16.msra.mxu0 0
          %917 = vmatprep.subr.bf16.mxu0 0
          %918 = vmatpush1.bf16.msra.mxu0 0
          %919 = vmatprep.subr.bf16.mxu0 0
          %920 = vmatpush1.bf16.msra.mxu0 0
          %921 = vmatprep.subr.bf16.mxu0 0
          %922 = vmatpush1.bf16.msra.mxu0 0
          %923 = vmatprep.subr.bf16.mxu0 0
          %924 = vmatpush1.bf16.msra.mxu0 0
          %925 = vmatprep.subr.bf16.mxu0 0
          %926 = vmatpush1.bf16.msra.mxu0 0
          %927 = vmatprep.subr.bf16.mxu0 0
          %928 = vmatpush1.bf16.msra.mxu0 0
          %929 = vmatprep.subr.bf16.mxu0 0
          %930 = vmatpush1.bf16.msra.mxu0 0
          %931 = vmatprep.subr.bf16.mxu0 0
          %932 = vmatpush1.bf16.msra.mxu0 0
          %933 = vmatprep.subr.bf16.mxu0 0
          %934 = vmatpush1.bf16.msra.mxu0 0
          %935 = vmatprep.subr.bf16.mxu0 0
          %936 = vmatpush1.bf16.msra.mxu0 0
          %937 = vmatprep.subr.bf16.mxu0 0
          %938 = vmatpush1.bf16.msra.mxu0 0
          %939 = vmatprep.subr.bf16.mxu0 0
          %940 = vmatpush1.bf16.msra.mxu0 0
          %941 = vmatprep.mubr.bf16.mxu0 0
          %942 = vmatmul.mubr.bf16.gmra.mrb[0].mxu0 %v907
          %v943 = vpop.f32.mrb[0].mxu0
          %v944 = vadd.f32 0.0, %v943
          %v945 = vpop.f32.mrb[0].mxu0
          %v946 = vpop.f32.mrb[0].mxu0
          %v947 = vadd.f32 0.0, %v946
          %v948 = vpop.f32.mrb[0].mxu0
          %949 = vdwg.mxu0
          %v950 = vpack.c.bf16 %v893, %v892
          %v951 = vld [vmem:[%s707] sm:$0xf]
          %v952 = vld [vmem:[%s707 + $0x4] sm:$0xf]
          %v953 = vld [vmem:[%s707 + $0x8] sm:$0xf]
          %v954 = vld [vmem:[%s707 + $0xc] sm:$0xf]
          %v955 = vld [vmem:[%s707 + $0x10] sm:$0xf]
          %v956 = vld [vmem:[%s707 + $0x14] sm:$0xf]
          %v957 = vld [vmem:[%s707 + $0x18] sm:$0xf]
          %v958 = vld [vmem:[%s707 + $0x1c] sm:$0xf]
          %v959 = vld [vmem:[%s707 + $0x20] sm:$0xf]
          %v960 = vld [vmem:[%s707 + $0x24] sm:$0xf]
          %v961 = vld [vmem:[%s707 + $0x28] sm:$0xf]
          %v962 = vld [vmem:[%s707 + $0x2c] sm:$0xf]
          %v963 = vld [vmem:[%s707 + $0x30] sm:$0xf]
          %v964 = vld [vmem:[%s707 + $0x34] sm:$0xf]
          %v965 = vld [vmem:[%s707 + $0x38] sm:$0xf]
          %v966 = vld [vmem:[%s707 + $0x3c] sm:$0xf]
          %v967 = vld [vmem:[%s856] sm:$0x1]
          %v969 = vlaneseq
          %v970 = vshrl.u32 %v969, 7
          %v971 = vsub.s32 0, %v970
          %v972 = vrot.slane %v967, %v971
          %v990 = vunpack.c.l.b16 %v951
          %v991 = vunpack.c.l.b16 %v952
          %v992 = vunpack.c.l.b16 %v953
          %v993 = vunpack.c.l.b16 %v954
          %v994 = vunpack.c.l.b16 %v955
          %v995 = vunpack.c.l.b16 %v956
          %v996 = vunpack.c.l.b16 %v957
          %v997 = vunpack.c.l.b16 %v958
          %v998 = vunpack.c.l.b16 %v959
          %v999 = vunpack.c.l.b16 %v960
          %v1000 = vunpack.c.l.b16 %v961
          %v1001 = vunpack.c.l.b16 %v962
          %v1002 = vunpack.c.l.b16 %v963
          %v1003 = vunpack.c.l.b16 %v964
          %v1004 = vunpack.c.l.b16 %v965
          %v1005 = vunpack.c.l.b16 %v966
          %v1006 = vpack.c.b16 %v991, %v990
          %v1007 = vpack.c.b16 %v993, %v992
          %v1008 = vpack.c.b16 %v995, %v994
          %v1009 = vpack.c.b16 %v997, %v996
          %v1010 = vpack.c.b16 %v999, %v998
          %v1011 = vpack.c.b16 %v1001, %v1000
          %v1012 = vpack.c.b16 %v1003, %v1002
          %v1013 = vpack.c.b16 %v1005, %v1004
          %1022 = vmatprep.subr.bf16.mxu0 0
          %1023 = vmatpush1.bf16.msra.mxu0 %v1006
          %1024 = vmatprep.subr.bf16.mxu0 0
          %1025 = vmatpush1.bf16.msra.mxu0 %v1007
          %1026 = vmatprep.subr.bf16.mxu0 0
          %1027 = vmatpush1.bf16.msra.mxu0 %v1008
          %1028 = vmatprep.subr.bf16.mxu0 0
          %1029 = vmatpush1.bf16.msra.mxu0 %v1009
          %1030 = vmatprep.subr.bf16.mxu0 0
          %1031 = vmatpush1.bf16.msra.mxu0 %v1010
          %1032 = vmatprep.subr.bf16.mxu0 0
          %1033 = vmatpush1.bf16.msra.mxu0 %v1011
          %1034 = vmatprep.subr.bf16.mxu0 0
          %1035 = vmatpush1.bf16.msra.mxu0 %v1012
          %1036 = vmatprep.subr.bf16.mxu0 0
          %1037 = vmatpush1.bf16.msra.mxu0 %v1013
          %1038 = vmatprep.subr.bf16.mxu0 0
          %1039 = vmatpush1.bf16.msra.mxu0 0
          %1040 = vmatprep.subr.bf16.mxu0 0
          %1041 = vmatpush1.bf16.msra.mxu0 0
          %1042 = vmatprep.subr.bf16.mxu0 0
          %1043 = vmatpush1.bf16.msra.mxu0 0
          %1044 = vmatprep.subr.bf16.mxu0 0
          %1045 = vmatpush1.bf16.msra.mxu0 0
          %1046 = vmatprep.subr.bf16.mxu0 0
          %1047 = vmatpush1.bf16.msra.mxu0 0
          %1048 = vmatprep.subr.bf16.mxu0 0
          %1049 = vmatpush1.bf16.msra.mxu0 0
          %1050 = vmatprep.subr.bf16.mxu0 0
          %1051 = vmatpush1.bf16.msra.mxu0 0
          %1052 = vmatprep.subr.bf16.mxu0 0
          %1053 = vmatpush1.bf16.msra.mxu0 0
          %1054 = vmatprep.mubr.bf16.mxu0 0
          %1055 = vmatmul.mubr.bf16.gmra.mrb[0].mxu0 %v950
          %v1056 = vpop.f32.mrb[0].mxu0
          %v1057 = vadd.f32 %v972, %v1056
          %v1058 = vpop.f32.mrb[0].mxu0
          %v1059 = vpop.f32.mrb[0].mxu0
          %v1060 = vadd.f32 %v972, %v1059
          %v1061 = vpop.f32.mrb[0].mxu0
          %1062 = vdwg.mxu0
          %v1063 = vxor.u32 %v1057, 2147483648
          %v1064 = vxor.u32 %v1060, 2147483648
          %v1065 = vmul.f32 %v1063, 1.442695
          %v1066 = vpow.pop %v1065
          %v1067 = vmul.f32 %v1064, 1.442695
          %v1068 = vpow.pop %v1067
          %v1069 = vadd.f32 %v1066, 1.0
          %v1070 = vadd.f32 %v1068, 1.0
          %v1071 = vrcp.pop %v1069
          %v1072 = vmul.f32 1.0, %v1071
          %v1073 = vrcp.pop %v1070
          %v1074 = vmul.f32 1.0, %v1073
          %v1075 = vmul.f32 %v1057, %v1072
          %v1076 = vmul.f32 %v1060, %v1074
          %v1077 = vmul.f32 %v1075, %v944
          %v1078 = vmul.f32 %v1076, %v947
          %1079 = vst [vmem:[#allocation3] sm:$0xff] %v1077
          %1080 = vst [vmem:[#allocation3 + $0x8] sm:$0xff] %v1078
          %v1081 = vld [vmem:[%s5] sm:$0xff]
          %v1082 = vld [vmem:[%s5 + $0x8] sm:$0xff]
          %v1083 = vld [vmem:[%s5 + $0x10] sm:$0xff]
          %v1084 = vld [vmem:[%s5 + $0x18] sm:$0xff]
          %v1085 = vpack.c.bf16 %v1082, %v1081
          %v1086 = vpack.c.bf16 %v1084, %v1083
          %v1087 = vld [vmem:[%s866] sm:$0xf]
          %v1088 = vld [vmem:[%s866 + $0x4] sm:$0xf]
          %v1091 = vunpack.c.l.b16 %v1087
          %v1092 = vunpack.c.l.b16 %v1088
          %v1093 = vpack.c.b16 %v1092, %v1091
          %v1096 = vsel %vm905, %v1085, 0
          %v1099 = vsel %vm905, %v1086, 0
          %1101 = vmatprep.subr.bf16.mxu0 0
          %1102 = vmatpush1.bf16.msra.mxu0 %v1093
          %1103 = vmatprep.subr.bf16.mxu0 0
          %1104 = vmatpush1.bf16.msra.mxu0 0
          %1105 = vmatprep.subr.bf16.mxu0 0
          %1106 = vmatpush1.bf16.msra.mxu0 0
          %1107 = vmatprep.subr.bf16.mxu0 0
          %1108 = vmatpush1.bf16.msra.mxu0 0
          %1109 = vmatprep.subr.bf16.mxu0 0
          %1110 = vmatpush1.bf16.msra.mxu0 0
          %1111 = vmatprep.subr.bf16.mxu0 0
          %1112 = vmatpush1.bf16.msra.mxu0 0
          %1113 = vmatprep.subr.bf16.mxu0 0
          %1114 = vmatpush1.bf16.msra.mxu0 0
          %1115 = vmatprep.subr.bf16.mxu0 0
          %1116 = vmatpush1.bf16.msra.mxu0 0
          %1117 = vmatprep.subr.bf16.mxu0 0
          %1118 = vmatpush1.bf16.msra.mxu0 0
          %1119 = vmatprep.subr.bf16.mxu0 0
          %1120 = vmatpush1.bf16.msra.mxu0 0
          %1121 = vmatprep.subr.bf16.mxu0 0
          %1122 = vmatpush1.bf16.msra.mxu0 0
          %1123 = vmatprep.subr.bf16.mxu0 0
          %1124 = vmatpush1.bf16.msra.mxu0 0
          %1125 = vmatprep.subr.bf16.mxu0 0
          %1126 = vmatpush1.bf16.msra.mxu0 0
          %1127 = vmatprep.subr.bf16.mxu0 0
          %1128 = vmatpush1.bf16.msra.mxu0 0
          %1129 = vmatprep.subr.bf16.mxu0 0
          %1130 = vmatpush1.bf16.msra.mxu0 0
          %1131 = vmatprep.subr.bf16.mxu0 0
          %1132 = vmatpush1.bf16.msra.mxu0 0
          %1133 = vmatprep.mubr.bf16.mxu0 0
          %1134 = vmatmul.mubr.bf16.gmra.mrb[0].mxu0 %v1096
          %v1135 = vpop.f32.mrb[0].mxu0
          %v1136 = vadd.f32 0.0, %v1135
          %v1137 = vpop.f32.mrb[0].mxu0
          %v1138 = vpop.f32.mrb[0].mxu0
          %v1139 = vadd.f32 0.0, %v1138
          %v1140 = vpop.f32.mrb[0].mxu0
          %1141 = vmatprep.mubr.bf16.mxu0 0
          %1142 = vmatmul.mubr.bf16.gmra.mrb[0].mxu0 %v1099
          %v1143 = vpop.f32.mrb[0].mxu0
          %v1144 = vadd.f32 0.0, %v1143
          %v1145 = vpop.f32.mrb[0].mxu0
          %v1146 = vpop.f32.mrb[0].mxu0
          %v1147 = vadd.f32 0.0, %v1146
          %v1148 = vpop.f32.mrb[0].mxu0
          %1149 = vdwg.mxu0
          %1150 = vst [vmem:[#allocation5] sm:$0xff] %v1136
          %1151 = vst [vmem:[#allocation5 + $0x8] sm:$0xff] %v1139
          %1152 = vst [vmem:[#allocation5 + $0x10] sm:$0xff] %v1144
          %1153 = vst [vmem:[#allocation5 + $0x18] sm:$0xff] %v1147
          %1154 = vst [vmem:[#allocation4] sm:$0xff] 0.0
          %1155 = vst [vmem:[#allocation4 + $0x8] sm:$0xff] 0.0
          loop: start=0, step=1, limit=32
          $region125: #{noattn_forward.3} parent=123 // loop_pre_header
            _
          $region126: #{noattn_forward.3} parent=123 // loop_header
            %s1157 = sphi 0, %s1161
            %p1158 = scmp.ge.s32.totalorder %s1157, 32
          $region127: #{noattn_forward.3} parent=123 // loop_header_branch
            %1160 = sbr.rel (%p1158) target = $region131
          $region128: #{noattn_forward.3} parent=123 // loop_body
            %s1162 = sld [smem:[#allocation9 + %s1157]]
            %s1163 = sld [smem:[#allocation10 + %s1157]]
            %s1164 = scalar_lea.vmem [#allocation3], %s1162
            %v1165 = vld [vmem:[%s1164] sm:$0x1]
            %s1166 = scalar_lea.vmem [#allocation5], %s1157
            %v1167 = vld [vmem:[%s1166] sm:$0x1]
            %v1168 = vmul.f32 %v1165, %v1167
            %s1169 = scalar_lea.vmem [#allocation4], %s1163
            %v1170 = vld [vmem:[%s1169] sm:$0x1]
            %v1171 = vadd.f32 %v1170, %v1168
            %1172 = vst [vmem:[%s1169] sm:$0x1] %v1171
          $region129: #{noattn_forward.3} parent=123 // loop_footer
            %s1161 = sadd.s32 1, %s1157
          $region130: #{noattn_forward.3} parent=123 // loop_footer_branch
            %1156 = sbr.rel target = $region126
          $region131: #{noattn_forward.3} parent=123 // loop_exit
            _
          %v1173 = vld [vmem:[#allocation4] sm:$0xff]
          %v1174 = vld [vmem:[#allocation4 + $0x8] sm:$0xff]
          %v1175 = vpack.c.bf16 %v1174, %v1173
          %v1176 = vld [vmem:[%s716] sm:$0xf]
          %v1177 = vld [vmem:[%s716 + $0x4] sm:$0xf]
          %v1178 = vld [vmem:[%s716 + $0x8] sm:$0xf]
          %v1179 = vld [vmem:[%s716 + $0xc] sm:$0xf]
          %v1180 = vld [vmem:[%s716 + $0x10] sm:$0xf]
          %v1181 = vld [vmem:[%s716 + $0x14] sm:$0xf]
          %v1182 = vld [vmem:[%s716 + $0x18] sm:$0xf]
          %v1183 = vld [vmem:[%s716 + $0x1c] sm:$0xf]
          %v1184 = vld [vmem:[%s716 + $0x20] sm:$0xf]
          %v1185 = vld [vmem:[%s716 + $0x24] sm:$0xf]
          %v1186 = vld [vmem:[%s716 + $0x28] sm:$0xf]
          %v1187 = vld [vmem:[%s716 + $0x2c] sm:$0xf]
          %v1188 = vld [vmem:[%s716 + $0x30] sm:$0xf]
          %v1189 = vld [vmem:[%s716 + $0x34] sm:$0xf]
          %v1190 = vld [vmem:[%s716 + $0x38] sm:$0xf]
          %v1191 = vld [vmem:[%s716 + $0x3c] sm:$0xf]
          %v1192 = vld [vmem:[%s869] sm:$0x1]
          %v1194 = vlaneseq
          %v1195 = vshrl.u32 %v1194, 7
          %v1196 = vsub.s32 0, %v1195
          %v1197 = vrot.slane %v1192, %v1196
          %v1215 = vunpack.c.l.b16 %v1176
          %v1216 = vunpack.c.l.b16 %v1177
          %v1217 = vunpack.c.l.b16 %v1178
          %v1218 = vunpack.c.l.b16 %v1179
          %v1219 = vunpack.c.l.b16 %v1180
          %v1220 = vunpack.c.l.b16 %v1181
          %v1221 = vunpack.c.l.b16 %v1182
          %v1222 = vunpack.c.l.b16 %v1183
          %v1223 = vunpack.c.l.b16 %v1184
          %v1224 = vunpack.c.l.b16 %v1185
          %v1225 = vunpack.c.l.b16 %v1186
          %v1226 = vunpack.c.l.b16 %v1187
          %v1227 = vunpack.c.l.b16 %v1188
          %v1228 = vunpack.c.l.b16 %v1189
          %v1229 = vunpack.c.l.b16 %v1190
          %v1230 = vunpack.c.l.b16 %v1191
          %v1231 = vpack.c.b16 %v1216, %v1215
          %v1232 = vpack.c.b16 %v1218, %v1217
          %v1233 = vpack.c.b16 %v1220, %v1219
          %v1234 = vpack.c.b16 %v1222, %v1221
          %v1235 = vpack.c.b16 %v1224, %v1223
          %v1236 = vpack.c.b16 %v1226, %v1225
          %v1237 = vpack.c.b16 %v1228, %v1227
          %v1238 = vpack.c.b16 %v1230, %v1229
          %1247 = vmatprep.subr.bf16.mxu0 0
          %1248 = vmatpush1.bf16.msra.mxu0 %v1231
          %1249 = vmatprep.subr.bf16.mxu0 0
          %1250 = vmatpush1.bf16.msra.mxu0 %v1232
          %1251 = vmatprep.subr.bf16.mxu0 0
          %1252 = vmatpush1.bf16.msra.mxu0 %v1233
          %1253 = vmatprep.subr.bf16.mxu0 0
          %1254 = vmatpush1.bf16.msra.mxu0 %v1234
          %1255 = vmatprep.subr.bf16.mxu0 0
          %1256 = vmatpush1.bf16.msra.mxu0 %v1235
          %1257 = vmatprep.subr.bf16.mxu0 0
          %1258 = vmatpush1.bf16.msra.mxu0 %v1236
          %1259 = vmatprep.subr.bf16.mxu0 0
          %1260 = vmatpush1.bf16.msra.mxu0 %v1237
          %1261 = vmatprep.subr.bf16.mxu0 0
          %1262 = vmatpush1.bf16.msra.mxu0 %v1238
          %1263 = vmatprep.subr.bf16.mxu0 0
          %1264 = vmatpush1.bf16.msra.mxu0 0
          %1265 = vmatprep.subr.bf16.mxu0 0
          %1266 = vmatpush1.bf16.msra.mxu0 0
          %1267 = vmatprep.subr.bf16.mxu0 0
          %1268 = vmatpush1.bf16.msra.mxu0 0
          %1269 = vmatprep.subr.bf16.mxu0 0
          %1270 = vmatpush1.bf16.msra.mxu0 0
          %1271 = vmatprep.subr.bf16.mxu0 0
          %1272 = vmatpush1.bf16.msra.mxu0 0
          %1273 = vmatprep.subr.bf16.mxu0 0
          %1274 = vmatpush1.bf16.msra.mxu0 0
          %1275 = vmatprep.subr.bf16.mxu0 0
          %1276 = vmatpush1.bf16.msra.mxu0 0
          %1277 = vmatprep.subr.bf16.mxu0 0
          %1278 = vmatpush1.bf16.msra.mxu0 0
          %1279 = vmatprep.mubr.bf16.mxu0 0
          %1280 = vmatmul.mubr.bf16.gmra.mrb[0].mxu0 %v1175
          %v1281 = vpop.f32.mrb[0].mxu0
          %v1282 = vadd.f32 %v1197, %v1281
          %v1283 = vpop.f32.mrb[0].mxu0
          %v1284 = vpop.f32.mrb[0].mxu0
          %v1285 = vadd.f32 %v1197, %v1284
          %v1286 = vpop.f32.mrb[0].mxu0
          %1287 = vdwg.mxu0
          %v1288 = vxor.u32 %v1282, 2147483648
          %v1289 = vxor.u32 %v1285, 2147483648
          %v1290 = vmul.f32 %v1288, 1.442695
          %v1291 = vpow.pop %v1290
          %v1292 = vmul.f32 %v1289, 1.442695
          %v1293 = vpow.pop %v1292
          %v1294 = vadd.f32 %v1291, 1.0
          %v1295 = vadd.f32 %v1293, 1.0
          %v1296 = vrcp.pop %v1294
          %v1297 = vmul.f32 1.0, %v1296
          %v1298 = vrcp.pop %v1295
          %v1299 = vmul.f32 1.0, %v1298
          %v1300 = vmul.f32 %v1282, %v1297
          %v1301 = vmul.f32 %v1285, %v1299
          %1302 = vadd.xlane.f32.xlu0 %v1300
          %v1303 = vpop.xlane.xlu0 %1302
          %1304 = vadd.xlane.f32.xlu0 %v1301
          %v1305 = vpop.xlane.xlu0 %1304
          %v1306 = vrcp.pop 128.0
          %v1307 = vmul.f32 %v1303, %v1306
          %v1308 = vmul.f32 %v1305, %v1306
          %v1309 = vsub.f32 %v1300, %v1307
          %v1310 = vsub.f32 %v1301, %v1308
          %v1311 = vmul.f32 %v1309, %v1309
          %v1312 = vmul.f32 %v1310, %v1310
          %1313 = vadd.xlane.f32.xlu0 %v1311
          %v1314 = vpop.xlane.xlu0 %1313
          %1315 = vadd.xlane.f32.xlu0 %v1312
          %v1316 = vpop.xlane.xlu0 %1315
          %v1317 = vmul.f32 %v1314, %v1306
          %v1318 = vmul.f32 %v1316, %v1306
          %v1319 = vadd.f32 %v1317, 1e-08
          %v1320 = vadd.f32 %v1318, 1e-08
          %v1321 = vrsqrt.pop %v1319
          %v1322 = vrsqrt.pop %v1320
          %v1323 = vmul.f32 %v1309, %v1321
          %v1324 = vmul.f32 %v1310, %v1322
          %v1325 = vpack.c.bf16 %v1324, %v1323
          %v1326 = vld [vmem:[%s725] sm:$0xf]
          %v1327 = vld [vmem:[%s725 + $0x4] sm:$0xf]
          %v1328 = vld [vmem:[%s725 + $0x8] sm:$0xf]
          %v1329 = vld [vmem:[%s725 + $0xc] sm:$0xf]
          %v1330 = vld [vmem:[%s725 + $0x10] sm:$0xf]
          %v1331 = vld [vmem:[%s725 + $0x14] sm:$0xf]
          %v1332 = vld [vmem:[%s725 + $0x18] sm:$0xf]
          %v1333 = vld [vmem:[%s725 + $0x1c] sm:$0xf]
          %v1334 = vld [vmem:[%s725 + $0x20] sm:$0xf]
          %v1335 = vld [vmem:[%s725 + $0x24] sm:$0xf]
          %v1336 = vld [vmem:[%s725 + $0x28] sm:$0xf]
          %v1337 = vld [vmem:[%s725 + $0x2c] sm:$0xf]
          %v1338 = vld [vmem:[%s725 + $0x30] sm:$0xf]
          %v1339 = vld [vmem:[%s725 + $0x34] sm:$0xf]
          %v1340 = vld [vmem:[%s725 + $0x38] sm:$0xf]
          %v1341 = vld [vmem:[%s725 + $0x3c] sm:$0xf]
          %v1342 = vld [vmem:[%s873] sm:$0x1]
          %v1343 = vlaneseq
          %v1344 = vshrl.u32 %v1343, 7
          %v1345 = vsub.s32 0, %v1344
          %v1346 = vrot.slane %v1342, %v1345
          %v1363 = vunpack.c.l.b16 %v1326
          %v1364 = vunpack.c.l.b16 %v1327
          %v1365 = vunpack.c.l.b16 %v1328
          %v1366 = vunpack.c.l.b16 %v1329
          %v1367 = vunpack.c.l.b16 %v1330
          %v1368 = vunpack.c.l.b16 %v1331
          %v1369 = vunpack.c.l.b16 %v1332
          %v1370 = vunpack.c.l.b16 %v1333
          %v1371 = vunpack.c.l.b16 %v1334
          %v1372 = vunpack.c.l.b16 %v1335
          %v1373 = vunpack.c.l.b16 %v1336
          %v1374 = vunpack.c.l.b16 %v1337
          %v1375 = vunpack.c.l.b16 %v1338
          %v1376 = vunpack.c.l.b16 %v1339
          %v1377 = vunpack.c.l.b16 %v1340
          %v1378 = vunpack.c.l.b16 %v1341
          %v1379 = vpack.c.b16 %v1364, %v1363
          %v1380 = vpack.c.b16 %v1366, %v1365
          %v1381 = vpack.c.b16 %v1368, %v1367
          %v1382 = vpack.c.b16 %v1370, %v1369
          %v1383 = vpack.c.b16 %v1372, %v1371
          %v1384 = vpack.c.b16 %v1374, %v1373
          %v1385 = vpack.c.b16 %v1376, %v1375
          %v1386 = vpack.c.b16 %v1378, %v1377
          %1395 = vmatprep.subr.bf16.mxu0 0
          %1396 = vmatpush1.bf16.msra.mxu0 %v1379
          %1397 = vmatprep.subr.bf16.mxu0 0
          %1398 = vmatpush1.bf16.msra.mxu0 %v1380
          %1399 = vmatprep.subr.bf16.mxu0 0
          %1400 = vmatpush1.bf16.msra.mxu0 %v1381
          %1401 = vmatprep.subr.bf16.mxu0 0
          %1402 = vmatpush1.bf16.msra.mxu0 %v1382
          %1403 = vmatprep.subr.bf16.mxu0 0
          %1404 = vmatpush1.bf16.msra.mxu0 %v1383
          %1405 = vmatprep.subr.bf16.mxu0 0
          %1406 = vmatpush1.bf16.msra.mxu0 %v1384
          %1407 = vmatprep.subr.bf16.mxu0 0
          %1408 = vmatpush1.bf16.msra.mxu0 %v1385
          %1409 = vmatprep.subr.bf16.mxu0 0
          %1410 = vmatpush1.bf16.msra.mxu0 %v1386
          %1411 = vmatprep.subr.bf16.mxu0 0
          %1412 = vmatpush1.bf16.msra.mxu0 0
          %1413 = vmatprep.subr.bf16.mxu0 0
          %1414 = vmatpush1.bf16.msra.mxu0 0
          %1415 = vmatprep.subr.bf16.mxu0 0
          %1416 = vmatpush1.bf16.msra.mxu0 0
          %1417 = vmatprep.subr.bf16.mxu0 0
          %1418 = vmatpush1.bf16.msra.mxu0 0
          %1419 = vmatprep.subr.bf16.mxu0 0
          %1420 = vmatpush1.bf16.msra.mxu0 0
          %1421 = vmatprep.subr.bf16.mxu0 0
          %1422 = vmatpush1.bf16.msra.mxu0 0
          %1423 = vmatprep.subr.bf16.mxu0 0
          %1424 = vmatpush1.bf16.msra.mxu0 0
          %1425 = vmatprep.subr.bf16.mxu0 0
          %1426 = vmatpush1.bf16.msra.mxu0 0
          %1427 = vmatprep.mubr.bf16.mxu0 0
          %1428 = vmatmul.mubr.bf16.gmra.mrb[0].mxu0 %v1325
          %v1429 = vpop.f32.mrb[0].mxu0
          %v1430 = vadd.f32 %v1346, %v1429
          %v1431 = vpop.f32.mrb[0].mxu0
          %v1432 = vpop.f32.mrb[0].mxu0
          %v1433 = vadd.f32 %v1346, %v1432
          %v1434 = vpop.f32.mrb[0].mxu0
          %1435 = vdwg.mxu0
          %v1436 = vxor.u32 %v1430, 2147483648
          %v1437 = vxor.u32 %v1433, 2147483648
          %v1438 = vmul.f32 %v1436, 1.442695
          %v1439 = vpow.pop %v1438
          %v1440 = vmul.f32 %v1437, 1.442695
          %v1441 = vpow.pop %v1440
          %v1442 = vadd.f32 %v1439, 1.0
          %v1443 = vadd.f32 %v1441, 1.0
          %v1444 = vrcp.pop %v1442
          %v1445 = vmul.f32 1.0, %v1444
          %v1446 = vrcp.pop %v1443
          %v1447 = vmul.f32 1.0, %v1446
          %v1448 = vmul.f32 %v1430, %v1445
          %v1449 = vmul.f32 %v1433, %v1447
          %v1450 = vpack.c.bf16 %v1449, %v1448
          %s1451 = scalar_lea.vmem %s725, 64 [#allocation17]
          %v1452 = vld [vmem:[%s1451] sm:$0xf]
          %v1453 = vld [vmem:[%s1451 + $0x4] sm:$0xf]
          %v1454 = vld [vmem:[%s1451 + $0x8] sm:$0xf]
          %v1455 = vld [vmem:[%s1451 + $0xc] sm:$0xf]
          %v1456 = vld [vmem:[%s1451 + $0x10] sm:$0xf]
          %v1457 = vld [vmem:[%s1451 + $0x14] sm:$0xf]
          %v1458 = vld [vmem:[%s1451 + $0x18] sm:$0xf]
          %v1459 = vld [vmem:[%s1451 + $0x1c] sm:$0xf]
          %v1460 = vld [vmem:[%s1451 + $0x20] sm:$0xf]
          %v1461 = vld [vmem:[%s1451 + $0x24] sm:$0xf]
          %v1462 = vld [vmem:[%s1451 + $0x28] sm:$0xf]
          %v1463 = vld [vmem:[%s1451 + $0x2c] sm:$0xf]
          %v1464 = vld [vmem:[%s1451 + $0x30] sm:$0xf]
          %v1465 = vld [vmem:[%s1451 + $0x34] sm:$0xf]
          %v1466 = vld [vmem:[%s1451 + $0x38] sm:$0xf]
          %v1467 = vld [vmem:[%s1451 + $0x3c] sm:$0xf]
          %v1468 = vld [vmem:[%s873 + $0x1] sm:$0x1]
          %v1469 = vlaneseq
          %v1470 = vshrl.u32 %v1469, 7
          %v1471 = vsub.s32 0, %v1470
          %v1472 = vrot.slane %v1468, %v1471
          %v1489 = vunpack.c.l.b16 %v1452
          %v1490 = vunpack.c.l.b16 %v1453
          %v1491 = vunpack.c.l.b16 %v1454
          %v1492 = vunpack.c.l.b16 %v1455
          %v1493 = vunpack.c.l.b16 %v1456
          %v1494 = vunpack.c.l.b16 %v1457
          %v1495 = vunpack.c.l.b16 %v1458
          %v1496 = vunpack.c.l.b16 %v1459
          %v1497 = vunpack.c.l.b16 %v1460
          %v1498 = vunpack.c.l.b16 %v1461
          %v1499 = vunpack.c.l.b16 %v1462
          %v1500 = vunpack.c.l.b16 %v1463
          %v1501 = vunpack.c.l.b16 %v1464
          %v1502 = vunpack.c.l.b16 %v1465
          %v1503 = vunpack.c.l.b16 %v1466
          %v1504 = vunpack.c.l.b16 %v1467
          %v1505 = vpack.c.b16 %v1490, %v1489
          %v1506 = vpack.c.b16 %v1492, %v1491
          %v1507 = vpack.c.b16 %v1494, %v1493
          %v1508 = vpack.c.b16 %v1496, %v1495
          %v1509 = vpack.c.b16 %v1498, %v1497
          %v1510 = vpack.c.b16 %v1500, %v1499
          %v1511 = vpack.c.b16 %v1502, %v1501
          %v1512 = vpack.c.b16 %v1504, %v1503
          %1521 = vmatprep.subr.bf16.mxu0 0
          %1522 = vmatpush1.bf16.msra.mxu0 %v1505
          %1523 = vmatprep.subr.bf16.mxu0 0
          %1524 = vmatpush1.bf16.msra.mxu0 %v1506
          %1525 = vmatprep.subr.bf16.mxu0 0
          %1526 = vmatpush1.bf16.msra.mxu0 %v1507
          %1527 = vmatprep.subr.bf16.mxu0 0
          %1528 = vmatpush1.bf16.msra.mxu0 %v1508
          %1529 = vmatprep.subr.bf16.mxu0 0
          %1530 = vmatpush1.bf16.msra.mxu0 %v1509
          %1531 = vmatprep.subr.bf16.mxu0 0
          %1532 = vmatpush1.bf16.msra.mxu0 %v1510
          %1533 = vmatprep.subr.bf16.mxu0 0
          %1534 = vmatpush1.bf16.msra.mxu0 %v1511
          %1535 = vmatprep.subr.bf16.mxu0 0
          %1536 = vmatpush1.bf16.msra.mxu0 %v1512
          %1537 = vmatprep.subr.bf16.mxu0 0
          %1538 = vmatpush1.bf16.msra.mxu0 0
          %1539 = vmatprep.subr.bf16.mxu0 0
          %1540 = vmatpush1.bf16.msra.mxu0 0
          %1541 = vmatprep.subr.bf16.mxu0 0
          %1542 = vmatpush1.bf16.msra.mxu0 0
          %1543 = vmatprep.subr.bf16.mxu0 0
          %1544 = vmatpush1.bf16.msra.mxu0 0
          %1545 = vmatprep.subr.bf16.mxu0 0
          %1546 = vmatpush1.bf16.msra.mxu0 0
          %1547 = vmatprep.subr.bf16.mxu0 0
          %1548 = vmatpush1.bf16.msra.mxu0 0
          %1549 = vmatprep.subr.bf16.mxu0 0
          %1550 = vmatpush1.bf16.msra.mxu0 0
          %1551 = vmatprep.subr.bf16.mxu0 0
          %1552 = vmatpush1.bf16.msra.mxu0 0
          %1553 = vmatprep.mubr.bf16.mxu0 0
          %1554 = vmatmul.mubr.bf16.gmra.mrb[0].mxu0 %v1450
          %v1555 = vpop.f32.mrb[0].mxu0
          %v1556 = vadd.f32 %v1472, %v1555
          %v1557 = vpop.f32.mrb[0].mxu0
          %v1558 = vpop.f32.mrb[0].mxu0
          %v1559 = vadd.f32 %v1472, %v1558
          %v1560 = vpop.f32.mrb[0].mxu0
          %1561 = vdwg.mxu0
          %v1562 = vxor.u32 %v1556, 2147483648
          %v1563 = vxor.u32 %v1559, 2147483648
          %v1564 = vmul.f32 %v1562, 1.442695
          %v1565 = vpow.pop %v1564
          %v1566 = vmul.f32 %v1563, 1.442695
          %v1567 = vpow.pop %v1566
          %v1568 = vadd.f32 %v1565, 1.0
          %v1569 = vadd.f32 %v1567, 1.0
          %v1570 = vrcp.pop %v1568
          %v1571 = vmul.f32 1.0, %v1570
          %v1572 = vrcp.pop %v1569
          %v1573 = vmul.f32 1.0, %v1572
          %v1574 = vmul.f32 %v1556, %v1571
          %v1575 = vmul.f32 %v1559, %v1573
          %v1576 = vadd.f32 %v1323, %v1574
          %v1577 = vadd.f32 %v1324, %v1575
          %v1578 = vpack.c.bf16 %v1577, %v1576
          %s1579 = scalar_lea.vmem %s725, 128 [#allocation17]
          %v1580 = vld [vmem:[%s1579] sm:$0xf]
          %v1581 = vld [vmem:[%s1579 + $0x4] sm:$0xf]
          %v1582 = vld [vmem:[%s1579 + $0x8] sm:$0xf]
          %v1583 = vld [vmem:[%s1579 + $0xc] sm:$0xf]
          %v1584 = vld [vmem:[%s1579 + $0x10] sm:$0xf]
          %v1585 = vld [vmem:[%s1579 + $0x14] sm:$0xf]
          %v1586 = vld [vmem:[%s1579 + $0x18] sm:$0xf]
          %v1587 = vld [vmem:[%s1579 + $0x1c] sm:$0xf]
          %v1588 = vld [vmem:[%s1579 + $0x20] sm:$0xf]
          %v1589 = vld [vmem:[%s1579 + $0x24] sm:$0xf]
          %v1590 = vld [vmem:[%s1579 + $0x28] sm:$0xf]
          %v1591 = vld [vmem:[%s1579 + $0x2c] sm:$0xf]
          %v1592 = vld [vmem:[%s1579 + $0x30] sm:$0xf]
          %v1593 = vld [vmem:[%s1579 + $0x34] sm:$0xf]
          %v1594 = vld [vmem:[%s1579 + $0x38] sm:$0xf]
          %v1595 = vld [vmem:[%s1579 + $0x3c] sm:$0xf]
          %v1596 = vld [vmem:[%s873 + $0x2] sm:$0x1]
          %v1597 = vlaneseq
          %v1598 = vshrl.u32 %v1597, 7
          %v1599 = vsub.s32 0, %v1598
          %v1600 = vrot.slane %v1596, %v1599
          %v1617 = vunpack.c.l.b16 %v1580
          %v1618 = vunpack.c.l.b16 %v1581
          %v1619 = vunpack.c.l.b16 %v1582
          %v1620 = vunpack.c.l.b16 %v1583
          %v1621 = vunpack.c.l.b16 %v1584
          %v1622 = vunpack.c.l.b16 %v1585
          %v1623 = vunpack.c.l.b16 %v1586
          %v1624 = vunpack.c.l.b16 %v1587
          %v1625 = vunpack.c.l.b16 %v1588
          %v1626 = vunpack.c.l.b16 %v1589
          %v1627 = vunpack.c.l.b16 %v1590
          %v1628 = vunpack.c.l.b16 %v1591
          %v1629 = vunpack.c.l.b16 %v1592
          %v1630 = vunpack.c.l.b16 %v1593
          %v1631 = vunpack.c.l.b16 %v1594
          %v1632 = vunpack.c.l.b16 %v1595
          %v1633 = vpack.c.b16 %v1618, %v1617
          %v1634 = vpack.c.b16 %v1620, %v1619
          %v1635 = vpack.c.b16 %v1622, %v1621
          %v1636 = vpack.c.b16 %v1624, %v1623
          %v1637 = vpack.c.b16 %v1626, %v1625
          %v1638 = vpack.c.b16 %v1628, %v1627
          %v1639 = vpack.c.b16 %v1630, %v1629
          %v1640 = vpack.c.b16 %v1632, %v1631
          %1649 = vmatprep.subr.bf16.mxu0 0
          %1650 = vmatpush1.bf16.msra.mxu0 %v1633
          %1651 = vmatprep.subr.bf16.mxu0 0
          %1652 = vmatpush1.bf16.msra.mxu0 %v1634
          %1653 = vmatprep.subr.bf16.mxu0 0
          %1654 = vmatpush1.bf16.msra.mxu0 %v1635
          %1655 = vmatprep.subr.bf16.mxu0 0
          %1656 = vmatpush1.bf16.msra.mxu0 %v1636
          %1657 = vmatprep.subr.bf16.mxu0 0
          %1658 = vmatpush1.bf16.msra.mxu0 %v1637
          %1659 = vmatprep.subr.bf16.mxu0 0
          %1660 = vmatpush1.bf16.msra.mxu0 %v1638
          %1661 = vmatprep.subr.bf16.mxu0 0
          %1662 = vmatpush1.bf16.msra.mxu0 %v1639
          %1663 = vmatprep.subr.bf16.mxu0 0
          %1664 = vmatpush1.bf16.msra.mxu0 %v1640
          %1665 = vmatprep.subr.bf16.mxu0 0
          %1666 = vmatpush1.bf16.msra.mxu0 0
          %1667 = vmatprep.subr.bf16.mxu0 0
          %1668 = vmatpush1.bf16.msra.mxu0 0
          %1669 = vmatprep.subr.bf16.mxu0 0
          %1670 = vmatpush1.bf16.msra.mxu0 0
          %1671 = vmatprep.subr.bf16.mxu0 0
          %1672 = vmatpush1.bf16.msra.mxu0 0
          %1673 = vmatprep.subr.bf16.mxu0 0
          %1674 = vmatpush1.bf16.msra.mxu0 0
          %1675 = vmatprep.subr.bf16.mxu0 0
          %1676 = vmatpush1.bf16.msra.mxu0 0
          %1677 = vmatprep.subr.bf16.mxu0 0
          %1678 = vmatpush1.bf16.msra.mxu0 0
          %1679 = vmatprep.subr.bf16.mxu0 0
          %1680 = vmatpush1.bf16.msra.mxu0 0
          %1681 = vmatprep.mubr.bf16.mxu0 0
          %1682 = vmatmul.mubr.bf16.gmra.mrb[0].mxu0 %v1578
          %v1683 = vpop.f32.mrb[0].mxu0
          %v1684 = vadd.f32 %v1600, %v1683
          %v1685 = vpop.f32.mrb[0].mxu0
          %v1686 = vpop.f32.mrb[0].mxu0
          %v1687 = vadd.f32 %v1600, %v1686
          %v1688 = vpop.f32.mrb[0].mxu0
          %1689 = vdwg.mxu0
          %v1690 = vxor.u32 %v1684, 2147483648
          %v1691 = vxor.u32 %v1687, 2147483648
          %v1692 = vmul.f32 %v1690, 1.442695
          %v1693 = vpow.pop %v1692
          %v1694 = vmul.f32 %v1691, 1.442695
          %v1695 = vpow.pop %v1694
          %v1696 = vadd.f32 %v1693, 1.0
          %v1697 = vadd.f32 %v1695, 1.0
          %v1698 = vrcp.pop %v1696
          %v1699 = vmul.f32 1.0, %v1698
          %v1700 = vrcp.pop %v1697
          %v1701 = vmul.f32 1.0, %v1700
          %v1702 = vmul.f32 %v1684, %v1699
          %v1703 = vmul.f32 %v1687, %v1701
          %v1704 = vadd.f32 %v1702, %v892
          %v1705 = vadd.f32 %v1703, %v893
          %v1706 = vpack.c.bf16 %v1705, %v1704
          %s1707 = scalar_lea.vmem %s725, 192 [#allocation17]
          %v1708 = vld [vmem:[%s1707] sm:$0xf]
          %v1709 = vld [vmem:[%s1707 + $0x4] sm:$0xf]
          %v1710 = vld [vmem:[%s1707 + $0x8] sm:$0xf]
          %v1711 = vld [vmem:[%s1707 + $0xc] sm:$0xf]
          %v1712 = vld [vmem:[%s1707 + $0x10] sm:$0xf]
          %v1713 = vld [vmem:[%s1707 + $0x14] sm:$0xf]
          %v1714 = vld [vmem:[%s1707 + $0x18] sm:$0xf]
          %v1715 = vld [vmem:[%s1707 + $0x1c] sm:$0xf]
          %v1716 = vld [vmem:[%s1707 + $0x20] sm:$0xf]
          %v1717 = vld [vmem:[%s1707 + $0x24] sm:$0xf]
          %v1718 = vld [vmem:[%s1707 + $0x28] sm:$0xf]
          %v1719 = vld [vmem:[%s1707 + $0x2c] sm:$0xf]
          %v1720 = vld [vmem:[%s1707 + $0x30] sm:$0xf]
          %v1721 = vld [vmem:[%s1707 + $0x34] sm:$0xf]
          %v1722 = vld [vmem:[%s1707 + $0x38] sm:$0xf]
          %v1723 = vld [vmem:[%s1707 + $0x3c] sm:$0xf]
          %v1724 = vld [vmem:[%s873 + $0x3] sm:$0x1]
          %v1725 = vlaneseq
          %v1726 = vshrl.u32 %v1725, 7
          %v1727 = vsub.s32 0, %v1726
          %v1728 = vrot.slane %v1724, %v1727
          %v1745 = vunpack.c.l.b16 %v1708
          %v1746 = vunpack.c.l.b16 %v1709
          %v1747 = vunpack.c.l.b16 %v1710
          %v1748 = vunpack.c.l.b16 %v1711
          %v1749 = vunpack.c.l.b16 %v1712
          %v1750 = vunpack.c.l.b16 %v1713
          %v1751 = vunpack.c.l.b16 %v1714
          %v1752 = vunpack.c.l.b16 %v1715
          %v1753 = vunpack.c.l.b16 %v1716
          %v1754 = vunpack.c.l.b16 %v1717
          %v1755 = vunpack.c.l.b16 %v1718
          %v1756 = vunpack.c.l.b16 %v1719
          %v1757 = vunpack.c.l.b16 %v1720
          %v1758 = vunpack.c.l.b16 %v1721
          %v1759 = vunpack.c.l.b16 %v1722
          %v1760 = vunpack.c.l.b16 %v1723
          %v1761 = vpack.c.b16 %v1746, %v1745
          %v1762 = vpack.c.b16 %v1748, %v1747
          %v1763 = vpack.c.b16 %v1750, %v1749
          %v1764 = vpack.c.b16 %v1752, %v1751
          %v1765 = vpack.c.b16 %v1754, %v1753
          %v1766 = vpack.c.b16 %v1756, %v1755
          %v1767 = vpack.c.b16 %v1758, %v1757
          %v1768 = vpack.c.b16 %v1760, %v1759
          %1777 = vmatprep.subr.bf16.mxu0 0
          %1778 = vmatpush1.bf16.msra.mxu0 %v1761
          %1779 = vmatprep.subr.bf16.mxu0 0
          %1780 = vmatpush1.bf16.msra.mxu0 %v1762
          %1781 = vmatprep.subr.bf16.mxu0 0
          %1782 = vmatpush1.bf16.msra.mxu0 %v1763
          %1783 = vmatprep.subr.bf16.mxu0 0
          %1784 = vmatpush1.bf16.msra.mxu0 %v1764
          %1785 = vmatprep.subr.bf16.mxu0 0
          %1786 = vmatpush1.bf16.msra.mxu0 %v1765
          %1787 = vmatprep.subr.bf16.mxu0 0
          %1788 = vmatpush1.bf16.msra.mxu0 %v1766
          %1789 = vmatprep.subr.bf16.mxu0 0
          %1790 = vmatpush1.bf16.msra.mxu0 %v1767
          %1791 = vmatprep.subr.bf16.mxu0 0
          %1792 = vmatpush1.bf16.msra.mxu0 %v1768
          %1793 = vmatprep.subr.bf16.mxu0 0
          %1794 = vmatpush1.bf16.msra.mxu0 0
          %1795 = vmatprep.subr.bf16.mxu0 0
          %1796 = vmatpush1.bf16.msra.mxu0 0
          %1797 = vmatprep.subr.bf16.mxu0 0
          %1798 = vmatpush1.bf16.msra.mxu0 0
          %1799 = vmatprep.subr.bf16.mxu0 0
          %1800 = vmatpush1.bf16.msra.mxu0 0
          %1801 = vmatprep.subr.bf16.mxu0 0
          %1802 = vmatpush1.bf16.msra.mxu0 0
          %1803 = vmatprep.subr.bf16.mxu0 0
          %1804 = vmatpush1.bf16.msra.mxu0 0
          %1805 = vmatprep.subr.bf16.mxu0 0
          %1806 = vmatpush1.bf16.msra.mxu0 0
          %1807 = vmatprep.subr.bf16.mxu0 0
          %1808 = vmatpush1.bf16.msra.mxu0 0
          %1809 = vmatprep.mubr.bf16.mxu0 0
          %1810 = vmatmul.mubr.bf16.gmra.mrb[0].mxu0 %v1706
          %v1811 = vpop.f32.mrb[0].mxu0
          %v1812 = vadd.f32 %v1728, %v1811
          %v1813 = vpop.f32.mrb[0].mxu0
          %v1814 = vpop.f32.mrb[0].mxu0
          %v1815 = vadd.f32 %v1728, %v1814
          %v1816 = vpop.f32.mrb[0].mxu0
          %1817 = vdwg.mxu0
          %v1818 = vxor.u32 %v1812, 2147483648
          %v1819 = vxor.u32 %v1815, 2147483648
          %v1820 = vmul.f32 %v1818, 1.442695
          %v1821 = vpow.pop %v1820
          %v1822 = vmul.f32 %v1819, 1.442695
          %v1823 = vpow.pop %v1822
          %v1824 = vadd.f32 %v1821, 1.0
          %v1825 = vadd.f32 %v1823, 1.0
          %v1826 = vrcp.pop %v1824
          %v1827 = vmul.f32 1.0, %v1826
          %v1828 = vrcp.pop %v1825
          %v1829 = vmul.f32 1.0, %v1828
          %v1830 = vmul.f32 %v1812, %v1827
          %v1831 = vmul.f32 %v1815, %v1829
          %v1832 = vpack.c.bf16 %v1831, %v1830
          %s1833 = scalar_lea.vmem %s725, 256 [#allocation17]
          %v1834 = vld [vmem:[%s1833] sm:$0xf]
          %v1835 = vld [vmem:[%s1833 + $0x4] sm:$0xf]
          %v1836 = vld [vmem:[%s1833 + $0x8] sm:$0xf]
          %v1837 = vld [vmem:[%s1833 + $0xc] sm:$0xf]
          %v1838 = vld [vmem:[%s1833 + $0x10] sm:$0xf]
          %v1839 = vld [vmem:[%s1833 + $0x14] sm:$0xf]
          %v1840 = vld [vmem:[%s1833 + $0x18] sm:$0xf]
          %v1841 = vld [vmem:[%s1833 + $0x1c] sm:$0xf]
          %v1842 = vld [vmem:[%s1833 + $0x20] sm:$0xf]
          %v1843 = vld [vmem:[%s1833 + $0x24] sm:$0xf]
          %v1844 = vld [vmem:[%s1833 + $0x28] sm:$0xf]
          %v1845 = vld [vmem:[%s1833 + $0x2c] sm:$0xf]
          %v1846 = vld [vmem:[%s1833 + $0x30] sm:$0xf]
          %v1847 = vld [vmem:[%s1833 + $0x34] sm:$0xf]
          %v1848 = vld [vmem:[%s1833 + $0x38] sm:$0xf]
          %v1849 = vld [vmem:[%s1833 + $0x3c] sm:$0xf]
          %v1850 = vld [vmem:[%s873 + $0x4] sm:$0x1]
          %v1851 = vlaneseq
          %v1852 = vshrl.u32 %v1851, 7
          %v1853 = vsub.s32 0, %v1852
          %v1854 = vrot.slane %v1850, %v1853
          %v1871 = vunpack.c.l.b16 %v1834
          %v1872 = vunpack.c.l.b16 %v1835
          %v1873 = vunpack.c.l.b16 %v1836
          %v1874 = vunpack.c.l.b16 %v1837
          %v1875 = vunpack.c.l.b16 %v1838
          %v1876 = vunpack.c.l.b16 %v1839
          %v1877 = vunpack.c.l.b16 %v1840
          %v1878 = vunpack.c.l.b16 %v1841
          %v1879 = vunpack.c.l.b16 %v1842
          %v1880 = vunpack.c.l.b16 %v1843
          %v1881 = vunpack.c.l.b16 %v1844
          %v1882 = vunpack.c.l.b16 %v1845
          %v1883 = vunpack.c.l.b16 %v1846
          %v1884 = vunpack.c.l.b16 %v1847
          %v1885 = vunpack.c.l.b16 %v1848
          %v1886 = vunpack.c.l.b16 %v1849
          %v1887 = vpack.c.b16 %v1872, %v1871
          %v1888 = vpack.c.b16 %v1874, %v1873
          %v1889 = vpack.c.b16 %v1876, %v1875
          %v1890 = vpack.c.b16 %v1878, %v1877
          %v1891 = vpack.c.b16 %v1880, %v1879
          %v1892 = vpack.c.b16 %v1882, %v1881
          %v1893 = vpack.c.b16 %v1884, %v1883
          %v1894 = vpack.c.b16 %v1886, %v1885
          %1903 = vmatprep.subr.bf16.mxu0 0
          %1904 = vmatpush1.bf16.msra.mxu0 %v1887
          %1905 = vmatprep.subr.bf16.mxu0 0
          %1906 = vmatpush1.bf16.msra.mxu0 %v1888
          %1907 = vmatprep.subr.bf16.mxu0 0
          %1908 = vmatpush1.bf16.msra.mxu0 %v1889
          %1909 = vmatprep.subr.bf16.mxu0 0
          %1910 = vmatpush1.bf16.msra.mxu0 %v1890
          %1911 = vmatprep.subr.bf16.mxu0 0
          %1912 = vmatpush1.bf16.msra.mxu0 %v1891
          %1913 = vmatprep.subr.bf16.mxu0 0
          %1914 = vmatpush1.bf16.msra.mxu0 %v1892
          %1915 = vmatprep.subr.bf16.mxu0 0
          %1916 = vmatpush1.bf16.msra.mxu0 %v1893
          %1917 = vmatprep.subr.bf16.mxu0 0
          %1918 = vmatpush1.bf16.msra.mxu0 %v1894
          %1919 = vmatprep.subr.bf16.mxu0 0
          %1920 = vmatpush1.bf16.msra.mxu0 0
          %1921 = vmatprep.subr.bf16.mxu0 0
          %1922 = vmatpush1.bf16.msra.mxu0 0
          %1923 = vmatprep.subr.bf16.mxu0 0
          %1924 = vmatpush1.bf16.msra.mxu0 0
          %1925 = vmatprep.subr.bf16.mxu0 0
          %1926 = vmatpush1.bf16.msra.mxu0 0
          %1927 = vmatprep.subr.bf16.mxu0 0
          %1928 = vmatpush1.bf16.msra.mxu0 0
          %1929 = vmatprep.subr.bf16.mxu0 0
          %1930 = vmatpush1.bf16.msra.mxu0 0
          %1931 = vmatprep.subr.bf16.mxu0 0
          %1932 = vmatpush1.bf16.msra.mxu0 0
          %1933 = vmatprep.subr.bf16.mxu0 0
          %1934 = vmatpush1.bf16.msra.mxu0 0
          %1935 = vmatprep.mubr.bf16.mxu0 0
          %1936 = vmatmul.mubr.bf16.gmra.mrb[0].mxu0 %v1832
          %v1937 = vpop.f32.mrb[0].mxu0
          %v1938 = vadd.f32 %v1854, %v1937
          %v1939 = vpop.f32.mrb[0].mxu0
          %v1940 = vpop.f32.mrb[0].mxu0
          %v1941 = vadd.f32 %v1854, %v1940
          %v1942 = vpop.f32.mrb[0].mxu0
          %1943 = vdwg.mxu0
          %v1944 = vxor.u32 %v1938, 2147483648
          %v1945 = vxor.u32 %v1941, 2147483648
          %v1946 = vmul.f32 %v1944, 1.442695
          %v1947 = vpow.pop %v1946
          %v1948 = vmul.f32 %v1945, 1.442695
          %v1949 = vpow.pop %v1948
          %v1950 = vadd.f32 %v1947, 1.0
          %v1951 = vadd.f32 %v1949, 1.0
          %v1952 = vrcp.pop %v1950
          %v1953 = vmul.f32 1.0, %v1952
          %v1954 = vrcp.pop %v1951
          %v1955 = vmul.f32 1.0, %v1954
          %v1956 = vmul.f32 %v1938, %v1953
          %v1957 = vmul.f32 %v1941, %v1955
          %v1958 = vadd.f32 %v1704, %v1956
          %v1959 = vadd.f32 %v1705, %v1957
          %v1960 = vpack.c.bf16 %v1959, %v1958
          %s1961 = scalar_lea.vmem %s725, 320 [#allocation17]
          %v1962 = vld [vmem:[%s1961] sm:$0xf]
          %v1963 = vld [vmem:[%s1961 + $0x4] sm:$0xf]
          %v1964 = vld [vmem:[%s1961 + $0x8] sm:$0xf]
          %v1965 = vld [vmem:[%s1961 + $0xc] sm:$0xf]
          %v1966 = vld [vmem:[%s1961 + $0x10] sm:$0xf]
          %v1967 = vld [vmem:[%s1961 + $0x14] sm:$0xf]
          %v1968 = vld [vmem:[%s1961 + $0x18] sm:$0xf]
          %v1969 = vld [vmem:[%s1961 + $0x1c] sm:$0xf]
          %v1970 = vld [vmem:[%s1961 + $0x20] sm:$0xf]
          %v1971 = vld [vmem:[%s1961 + $0x24] sm:$0xf]
          %v1972 = vld [vmem:[%s1961 + $0x28] sm:$0xf]
          %v1973 = vld [vmem:[%s1961 + $0x2c] sm:$0xf]
          %v1974 = vld [vmem:[%s1961 + $0x30] sm:$0xf]
          %v1975 = vld [vmem:[%s1961 + $0x34] sm:$0xf]
          %v1976 = vld [vmem:[%s1961 + $0x38] sm:$0xf]
          %v1977 = vld [vmem:[%s1961 + $0x3c] sm:$0xf]
          %v1978 = vld [vmem:[%s873 + $0x5] sm:$0x1]
          %v1979 = vlaneseq
          %v1980 = vshrl.u32 %v1979, 7
          %v1981 = vsub.s32 0, %v1980
          %v1982 = vrot.slane %v1978, %v1981
          %v1999 = vunpack.c.l.b16 %v1962
          %v2000 = vunpack.c.l.b16 %v1963
          %v2001 = vunpack.c.l.b16 %v1964
          %v2002 = vunpack.c.l.b16 %v1965
          %v2003 = vunpack.c.l.b16 %v1966
          %v2004 = vunpack.c.l.b16 %v1967
          %v2005 = vunpack.c.l.b16 %v1968
          %v2006 = vunpack.c.l.b16 %v1969
          %v2007 = vunpack.c.l.b16 %v1970
          %v2008 = vunpack.c.l.b16 %v1971
          %v2009 = vunpack.c.l.b16 %v1972
          %v2010 = vunpack.c.l.b16 %v1973
          %v2011 = vunpack.c.l.b16 %v1974
          %v2012 = vunpack.c.l.b16 %v1975
          %v2013 = vunpack.c.l.b16 %v1976
          %v2014 = vunpack.c.l.b16 %v1977
          %v2015 = vpack.c.b16 %v2000, %v1999
          %v2016 = vpack.c.b16 %v2002, %v2001
          %v2017 = vpack.c.b16 %v2004, %v2003
          %v2018 = vpack.c.b16 %v2006, %v2005
          %v2019 = vpack.c.b16 %v2008, %v2007
          %v2020 = vpack.c.b16 %v2010, %v2009
          %v2021 = vpack.c.b16 %v2012, %v2011
          %v2022 = vpack.c.b16 %v2014, %v2013
          %2031 = vmatprep.subr.bf16.mxu0 0
          %2032 = vmatpush1.bf16.msra.mxu0 %v2015
          %2033 = vmatprep.subr.bf16.mxu0 0
          %2034 = vmatpush1.bf16.msra.mxu0 %v2016
          %2035 = vmatprep.subr.bf16.mxu0 0
          %2036 = vmatpush1.bf16.msra.mxu0 %v2017
          %2037 = vmatprep.subr.bf16.mxu0 0
          %2038 = vmatpush1.bf16.msra.mxu0 %v2018
          %2039 = vmatprep.subr.bf16.mxu0 0
          %2040 = vmatpush1.bf16.msra.mxu0 %v2019
          %2041 = vmatprep.subr.bf16.mxu0 0
          %2042 = vmatpush1.bf16.msra.mxu0 %v2020
          %2043 = vmatprep.subr.bf16.mxu0 0
          %2044 = vmatpush1.bf16.msra.mxu0 %v2021
          %2045 = vmatprep.subr.bf16.mxu0 0
          %2046 = vmatpush1.bf16.msra.mxu0 %v2022
          %2047 = vmatprep.subr.bf16.mxu0 0
          %2048 = vmatpush1.bf16.msra.mxu0 0
          %2049 = vmatprep.subr.bf16.mxu0 0
          %2050 = vmatpush1.bf16.msra.mxu0 0
          %2051 = vmatprep.subr.bf16.mxu0 0
          %2052 = vmatpush1.bf16.msra.mxu0 0
          %2053 = vmatprep.subr.bf16.mxu0 0
          %2054 = vmatpush1.bf16.msra.mxu0 0
          %2055 = vmatprep.subr.bf16.mxu0 0
          %2056 = vmatpush1.bf16.msra.mxu0 0
          %2057 = vmatprep.subr.bf16.mxu0 0
          %2058 = vmatpush1.bf16.msra.mxu0 0
          %2059 = vmatprep.subr.bf16.mxu0 0
          %2060 = vmatpush1.bf16.msra.mxu0 0
          %2061 = vmatprep.subr.bf16.mxu0 0
          %2062 = vmatpush1.bf16.msra.mxu0 0
          %2063 = vmatprep.mubr.bf16.mxu0 0
          %2064 = vmatmul.mubr.bf16.gmra.mrb[0].mxu0 %v1960
          %v2065 = vpop.f32.mrb[0].mxu0
          %v2066 = vadd.f32 %v1982, %v2065
          %v2067 = vpop.f32.mrb[0].mxu0
          %v2068 = vpop.f32.mrb[0].mxu0
          %v2069 = vadd.f32 %v1982, %v2068
          %v2070 = vpop.f32.mrb[0].mxu0
          %2071 = vdwg.mxu0
          %v2072 = vxor.u32 %v2066, 2147483648
          %v2073 = vxor.u32 %v2069, 2147483648
          %v2074 = vmul.f32 %v2072, 1.442695
          %v2075 = vpow.pop %v2074
          %v2076 = vmul.f32 %v2073, 1.442695
          %v2077 = vpow.pop %v2076
          %v2078 = vadd.f32 %v2075, 1.0
          %v2079 = vadd.f32 %v2077, 1.0
          %v2080 = vrcp.pop %v2078
          %v2081 = vmul.f32 1.0, %v2080
          %v2082 = vrcp.pop %v2079
          %v2083 = vmul.f32 1.0, %v2082
          %v2084 = vmul.f32 %v2066, %v2081
          %v2085 = vmul.f32 %v2069, %v2083
          %v2086 = vpack.c.bf16 %v2085, %v2084
          %s2087 = scalar_lea.vmem %s725, 384 [#allocation17]
          %v2088 = vld [vmem:[%s2087] sm:$0xf]
          %v2089 = vld [vmem:[%s2087 + $0x4] sm:$0xf]
          %v2090 = vld [vmem:[%s2087 + $0x8] sm:$0xf]
          %v2091 = vld [vmem:[%s2087 + $0xc] sm:$0xf]
          %v2092 = vld [vmem:[%s2087 + $0x10] sm:$0xf]
          %v2093 = vld [vmem:[%s2087 + $0x14] sm:$0xf]
          %v2094 = vld [vmem:[%s2087 + $0x18] sm:$0xf]
          %v2095 = vld [vmem:[%s2087 + $0x1c] sm:$0xf]
          %v2096 = vld [vmem:[%s2087 + $0x20] sm:$0xf]
          %v2097 = vld [vmem:[%s2087 + $0x24] sm:$0xf]
          %v2098 = vld [vmem:[%s2087 + $0x28] sm:$0xf]
          %v2099 = vld [vmem:[%s2087 + $0x2c] sm:$0xf]
          %v2100 = vld [vmem:[%s2087 + $0x30] sm:$0xf]
          %v2101 = vld [vmem:[%s2087 + $0x34] sm:$0xf]
          %v2102 = vld [vmem:[%s2087 + $0x38] sm:$0xf]
          %v2103 = vld [vmem:[%s2087 + $0x3c] sm:$0xf]
          %v2104 = vld [vmem:[%s873 + $0x6] sm:$0x1]
          %v2105 = vlaneseq
          %v2106 = vshrl.u32 %v2105, 7
          %v2107 = vsub.s32 0, %v2106
          %v2108 = vrot.slane %v2104, %v2107
          %v2125 = vunpack.c.l.b16 %v2088
          %v2126 = vunpack.c.l.b16 %v2089
          %v2127 = vunpack.c.l.b16 %v2090
          %v2128 = vunpack.c.l.b16 %v2091
          %v2129 = vunpack.c.l.b16 %v2092
          %v2130 = vunpack.c.l.b16 %v2093
          %v2131 = vunpack.c.l.b16 %v2094
          %v2132 = vunpack.c.l.b16 %v2095
          %v2133 = vunpack.c.l.b16 %v2096
          %v2134 = vunpack.c.l.b16 %v2097
          %v2135 = vunpack.c.l.b16 %v2098
          %v2136 = vunpack.c.l.b16 %v2099
          %v2137 = vunpack.c.l.b16 %v2100
          %v2138 = vunpack.c.l.b16 %v2101
          %v2139 = vunpack.c.l.b16 %v2102
          %v2140 = vunpack.c.l.b16 %v2103
          %v2141 = vpack.c.b16 %v2126, %v2125
          %v2142 = vpack.c.b16 %v2128, %v2127
          %v2143 = vpack.c.b16 %v2130, %v2129
          %v2144 = vpack.c.b16 %v2132, %v2131
          %v2145 = vpack.c.b16 %v2134, %v2133
          %v2146 = vpack.c.b16 %v2136, %v2135
          %v2147 = vpack.c.b16 %v2138, %v2137
          %v2148 = vpack.c.b16 %v2140, %v2139
          %2157 = vmatprep.subr.bf16.mxu0 0
          %2158 = vmatpush1.bf16.msra.mxu0 %v2141
          %2159 = vmatprep.subr.bf16.mxu0 0
          %2160 = vmatpush1.bf16.msra.mxu0 %v2142
          %2161 = vmatprep.subr.bf16.mxu0 0
          %2162 = vmatpush1.bf16.msra.mxu0 %v2143
          %2163 = vmatprep.subr.bf16.mxu0 0
          %2164 = vmatpush1.bf16.msra.mxu0 %v2144
          %2165 = vmatprep.subr.bf16.mxu0 0
          %2166 = vmatpush1.bf16.msra.mxu0 %v2145
          %2167 = vmatprep.subr.bf16.mxu0 0
          %2168 = vmatpush1.bf16.msra.mxu0 %v2146
          %2169 = vmatprep.subr.bf16.mxu0 0
          %2170 = vmatpush1.bf16.msra.mxu0 %v2147
          %2171 = vmatprep.subr.bf16.mxu0 0
          %2172 = vmatpush1.bf16.msra.mxu0 %v2148
          %2173 = vmatprep.subr.bf16.mxu0 0
          %2174 = vmatpush1.bf16.msra.mxu0 0
          %2175 = vmatprep.subr.bf16.mxu0 0
          %2176 = vmatpush1.bf16.msra.mxu0 0
          %2177 = vmatprep.subr.bf16.mxu0 0
          %2178 = vmatpush1.bf16.msra.mxu0 0
          %2179 = vmatprep.subr.bf16.mxu0 0
          %2180 = vmatpush1.bf16.msra.mxu0 0
          %2181 = vmatprep.subr.bf16.mxu0 0
          %2182 = vmatpush1.bf16.msra.mxu0 0
          %2183 = vmatprep.subr.bf16.mxu0 0
          %2184 = vmatpush1.bf16.msra.mxu0 0
          %2185 = vmatprep.subr.bf16.mxu0 0
          %2186 = vmatpush1.bf16.msra.mxu0 0
          %2187 = vmatprep.subr.bf16.mxu0 0
          %2188 = vmatpush1.bf16.msra.mxu0 0
          %2189 = vmatprep.mubr.bf16.mxu0 0
          %2190 = vmatmul.mubr.bf16.gmra.mrb[0].mxu0 %v2086
          %v2191 = vpop.f32.mrb[0].mxu0
          %v2192 = vadd.f32 %v2108, %v2191
          %v2193 = vpop.f32.mrb[0].mxu0
          %v2194 = vpop.f32.mrb[0].mxu0
          %v2195 = vadd.f32 %v2108, %v2194
          %v2196 = vpop.f32.mrb[0].mxu0
          %2197 = vdwg.mxu0
          %v2198 = vxor.u32 %v2192, 2147483648
          %v2199 = vxor.u32 %v2195, 2147483648
          %v2200 = vmul.f32 %v2198, 1.442695
          %v2201 = vpow.pop %v2200
          %v2202 = vmul.f32 %v2199, 1.442695
          %v2203 = vpow.pop %v2202
          %v2204 = vadd.f32 %v2201, 1.0
          %v2205 = vadd.f32 %v2203, 1.0
          %v2206 = vrcp.pop %v2204
          %v2207 = vmul.f32 1.0, %v2206
          %v2208 = vrcp.pop %v2205
          %v2209 = vmul.f32 1.0, %v2208
          %v2210 = vmul.f32 %v2192, %v2207
          %v2211 = vmul.f32 %v2195, %v2209
          %v2212 = vadd.f32 %v1958, %v2210
          %v2213 = vadd.f32 %v1959, %v2211
          %2214 = vst [vmem:[#allocation2] sm:$0xff] %v2212
          %2215 = vst [vmem:[#allocation2 + $0x8] sm:$0xff] %v2213
        $region124: #{noattn_forward.3} parent=83 // pred_fallthru
          _
        %v2216 = vld [vmem:[#allocation2] sm:$0xff]
        %v2217 = vld [vmem:[#allocation2 + $0x8] sm:$0xff]
        %v2218 = vld [vmem:[%s4] sm:$0xff]
        %v2219 = vld [vmem:[%s4 + $0x8] sm:$0xff]
        %v2220 = vpack.c.bf16 %v2219, %v2218
        %v2221 = vld [vmem:[%s734] sm:$0xf]
        %v2222 = vld [vmem:[%s734 + $0x4] sm:$0xf]
        %v2225 = vunpack.c.l.b16 %v2221
        %v2226 = vunpack.c.l.b16 %v2222
        %v2227 = vpack.c.b16 %v2226, %v2225
        %vm2229 = vcmask 130048
        %v2231 = vsel %vm2229, %v2220, 0
        %2233 = vmatprep.subr.bf16.mxu0 0
        %2234 = vmatpush1.bf16.msra.mxu0 %v2227
        %2235 = vmatprep.subr.bf16.mxu0 0
        %2236 = vmatpush1.bf16.msra.mxu0 0
        %2237 = vmatprep.subr.bf16.mxu0 0
        %2238 = vmatpush1.bf16.msra.mxu0 0
        %2239 = vmatprep.subr.bf16.mxu0 0
        %2240 = vmatpush1.bf16.msra.mxu0 0
        %2241 = vmatprep.subr.bf16.mxu0 0
        %2242 = vmatpush1.bf16.msra.mxu0 0
        %2243 = vmatprep.subr.bf16.mxu0 0
        %2244 = vmatpush1.bf16.msra.mxu0 0
        %2245 = vmatprep.subr.bf16.mxu0 0
        %2246 = vmatpush1.bf16.msra.mxu0 0
        %2247 = vmatprep.subr.bf16.mxu0 0
        %2248 = vmatpush1.bf16.msra.mxu0 0
        %2249 = vmatprep.subr.bf16.mxu0 0
        %2250 = vmatpush1.bf16.msra.mxu0 0
        %2251 = vmatprep.subr.bf16.mxu0 0
        %2252 = vmatpush1.bf16.msra.mxu0 0
        %2253 = vmatprep.subr.bf16.mxu0 0
        %2254 = vmatpush1.bf16.msra.mxu0 0
        %2255 = vmatprep.subr.bf16.mxu0 0
        %2256 = vmatpush1.bf16.msra.mxu0 0
        %2257 = vmatprep.subr.bf16.mxu0 0
        %2258 = vmatpush1.bf16.msra.mxu0 0
        %2259 = vmatprep.subr.bf16.mxu0 0
        %2260 = vmatpush1.bf16.msra.mxu0 0
        %2261 = vmatprep.subr.bf16.mxu0 0
        %2262 = vmatpush1.bf16.msra.mxu0 0
        %2263 = vmatprep.subr.bf16.mxu0 0
        %2264 = vmatpush1.bf16.msra.mxu0 0
        %2265 = vmatprep.mubr.bf16.mxu0 0
        %2266 = vmatmul.mubr.bf16.gmra.mrb[0].mxu0 %v2231
        %v2267 = vpop.f32.mrb[0].mxu0
        %v2268 = vadd.f32 0.0, %v2267
        %v2269 = vpop.f32.mrb[0].mxu0
        %v2270 = vpop.f32.mrb[0].mxu0
        %v2271 = vadd.f32 0.0, %v2270
        %v2272 = vpop.f32.mrb[0].mxu0
        %2273 = vdwg.mxu0
        %v2274 = vmul.f32 %v2216, %v2268
        %v2275 = vmul.f32 %v2217, %v2271
        %2276 = vst [vmem:[#allocation6] sm:$0xff] %v2274
        %2277 = vst [vmem:[#allocation6 + $0x8] sm:$0xff] %v2275
        %2278 = vst [vmem:[#allocation7] sm:$0xff] 0.0
        loop: start=0, step=1, limit=16
        $region132: #{noattn_forward.3} parent=83 // loop_pre_header
          _
        $region133: #{noattn_forward.3} parent=83 // loop_header
          %s2280 = sphi 0, %s2284
          %p2281 = scmp.ge.s32.totalorder %s2280, 16
        $region134: #{noattn_forward.3} parent=83 // loop_header_branch
          %2283 = sbr.rel (%p2281) target = $region138
        $region135: #{noattn_forward.3} parent=83 // loop_body
          %s2285 = sld [smem:[#allocation11 + %s2280]]
          %s2286 = scalar_lea.vmem [#allocation7], %s2285
          %v2287 = vld [vmem:[%s2286] sm:$0x1]
          %s2288 = scalar_lea.vmem [#allocation6], %s2280
          %v2289 = vld [vmem:[%s2288] sm:$0x1]
          %v2290 = vadd.f32 %v2287, %v2289
          %2291 = vst [vmem:[%s2286] sm:$0x1] %v2290
        $region136: #{noattn_forward.3} parent=83 // loop_footer
          %s2284 = sadd.s32 1, %s2280
        $region137: #{noattn_forward.3} parent=83 // loop_footer_branch
          %2279 = sbr.rel target = $region133
        $region138: #{noattn_forward.3} parent=83 // loop_exit
          _
        %v2292 = vld [vmem:[#allocation7] sm:$0xff]
        %v2293 = vpack.c.bf16 %v2292, %v2292
        %v2294 = vld [vmem:[%s743] sm:$0xf]
        %v2295 = vld [vmem:[%s743 + $0x4] sm:$0xf]
        %v2296 = vld [vmem:[%s743 + $0x8] sm:$0xf]
        %v2297 = vld [vmem:[%s743 + $0xc] sm:$0xf]
        %v2298 = vld [vmem:[%s743 + $0x10] sm:$0xf]
        %v2299 = vld [vmem:[%s743 + $0x14] sm:$0xf]
        %v2300 = vld [vmem:[%s743 + $0x18] sm:$0xf]
        %v2301 = vld [vmem:[%s743 + $0x1c] sm:$0xf]
        %v2302 = vld [vmem:[%s743 + $0x20] sm:$0xf]
        %v2303 = vld [vmem:[%s743 + $0x24] sm:$0xf]
        %v2304 = vld [vmem:[%s743 + $0x28] sm:$0xf]
        %v2305 = vld [vmem:[%s743 + $0x2c] sm:$0xf]
        %v2306 = vld [vmem:[%s743 + $0x30] sm:$0xf]
        %v2307 = vld [vmem:[%s743 + $0x34] sm:$0xf]
        %v2308 = vld [vmem:[%s743 + $0x38] sm:$0xf]
        %v2309 = vld [vmem:[%s743 + $0x3c] sm:$0xf]
        %v2310 = vld [vmem:[%s751] sm:$0x1]
        %v2312 = vlaneseq
        %v2313 = vshrl.u32 %v2312, 7
        %v2314 = vsub.s32 0, %v2313
        %v2315 = vrot.slane %v2310, %v2314
        %v2333 = vunpack.c.l.b16 %v2294
        %v2334 = vunpack.c.l.b16 %v2295
        %v2335 = vunpack.c.l.b16 %v2296
        %v2336 = vunpack.c.l.b16 %v2297
        %v2337 = vunpack.c.l.b16 %v2298
        %v2338 = vunpack.c.l.b16 %v2299
        %v2339 = vunpack.c.l.b16 %v2300
        %v2340 = vunpack.c.l.b16 %v2301
        %v2341 = vunpack.c.l.b16 %v2302
        %v2342 = vunpack.c.l.b16 %v2303
        %v2343 = vunpack.c.l.b16 %v2304
        %v2344 = vunpack.c.l.b16 %v2305
        %v2345 = vunpack.c.l.b16 %v2306
        %v2346 = vunpack.c.l.b16 %v2307
        %v2347 = vunpack.c.l.b16 %v2308
        %v2348 = vunpack.c.l.b16 %v2309
        %v2349 = vpack.c.b16 %v2334, %v2333
        %v2350 = vpack.c.b16 %v2336, %v2335
        %v2351 = vpack.c.b16 %v2338, %v2337
        %v2352 = vpack.c.b16 %v2340, %v2339
        %v2353 = vpack.c.b16 %v2342, %v2341
        %v2354 = vpack.c.b16 %v2344, %v2343
        %v2355 = vpack.c.b16 %v2346, %v2345
        %v2356 = vpack.c.b16 %v2348, %v2347
        %2365 = vmatprep.subr.bf16.mxu0 0
        %2366 = vmatpush1.bf16.msra.mxu0 %v2349
        %2367 = vmatprep.subr.bf16.mxu0 0
        %2368 = vmatpush1.bf16.msra.mxu0 %v2350
        %2369 = vmatprep.subr.bf16.mxu0 0
        %2370 = vmatpush1.bf16.msra.mxu0 %v2351
        %2371 = vmatprep.subr.bf16.mxu0 0
        %2372 = vmatpush1.bf16.msra.mxu0 %v2352
        %2373 = vmatprep.subr.bf16.mxu0 0
        %2374 = vmatpush1.bf16.msra.mxu0 %v2353
        %2375 = vmatprep.subr.bf16.mxu0 0
        %2376 = vmatpush1.bf16.msra.mxu0 %v2354
        %2377 = vmatprep.subr.bf16.mxu0 0
        %2378 = vmatpush1.bf16.msra.mxu0 %v2355
        %2379 = vmatprep.subr.bf16.mxu0 0
        %2380 = vmatpush1.bf16.msra.mxu0 %v2356
        %2381 = vmatprep.subr.bf16.mxu0 0
        %2382 = vmatpush1.bf16.msra.mxu0 0
        %2383 = vmatprep.subr.bf16.mxu0 0
        %2384 = vmatpush1.bf16.msra.mxu0 0
        %2385 = vmatprep.subr.bf16.mxu0 0
        %2386 = vmatpush1.bf16.msra.mxu0 0
        %2387 = vmatprep.subr.bf16.mxu0 0
        %2388 = vmatpush1.bf16.msra.mxu0 0
        %2389 = vmatprep.subr.bf16.mxu0 0
        %2390 = vmatpush1.bf16.msra.mxu0 0
        %2391 = vmatprep.subr.bf16.mxu0 0
        %2392 = vmatpush1.bf16.msra.mxu0 0
        %2393 = vmatprep.subr.bf16.mxu0 0
        %2394 = vmatpush1.bf16.msra.mxu0 0
        %2395 = vmatprep.subr.bf16.mxu0 0
        %2396 = vmatpush1.bf16.msra.mxu0 0
        %2397 = vmatprep.mubr.bf16.mxu0 0
        %2398 = vmatmul.mubr.bf16.gmra.mrb[0].mxu0 %v2293
        %v2399 = vpop.f32.mrb[0].mxu0
        %v2400 = vadd.f32 %v2315, %v2399
        %v2401 = vpop.f32.mrb[0].mxu0
        %v2402 = vpop.f32.mrb[0].mxu0
        %v2403 = vpop.f32.mrb[0].mxu0
        %2404 = vdwg.mxu0
        %v2405 = vxor.u32 %v2400, 2147483648
        %v2406 = vmul.f32 %v2405, 1.442695
        %v2407 = vpow.pop %v2406
        %v2408 = vadd.f32 %v2407, 1.0
        %v2409 = vrcp.pop %v2408
        %v2410 = vmul.f32 1.0, %v2409
        %v2411 = vmul.f32 %v2400, %v2410
        %v2412 = vld [vmem:[%s759] sm:$0x1]
        %v2414 = vlaneseq
        %v2415 = vshrl.u32 %v2414, 7
        %v2416 = vsub.s32 0, %v2415
        %v2417 = vrot.slane %v2412, %v2416
        %v2419 = vmul.f32 %v2411, %v2417
        %2420 = vadd.xlane.f32.xlu0 %v2419
        %v2421 = vpop.xlane.xlu0 %2420
        %v2422 = vld [vmem:[%s876] sm:$0x1]
        %v2424 = vlaneseq
        %v2425 = vshrl.u32 %v2424, 7
        %v2426 = vsub.s32 0, %v2425
        %v2427 = vrot.slane %v2422, %v2426
        %v2429 = vadd.f32 %v2421, %v2427
        %v2430 = vld [vmem:[%s19] sm:$0xff]
        %v2431 = vadd.f32 %v2430, %v2429
        %vm2432 = vcmask 7168
        %2433 = vst.msk [vmem:[%s19] sm:$0xff] %vm2432, %v2431
        // Predicated region
        $region139: #{noattn_forward.3} parent=83 // pred_check
          %p2434 = pneg %p471
        $region140: #{noattn_forward.3} parent=83 // pred_check_branch
          %2436 = sbr.rel (%p2434) target = $region142
        $region141: #{noattn_forward.3} parent=83 // pred_region
          _
        $region142: #{noattn_forward.3} parent=83 // pred_fallthru
          _
        // Predicated region
        $region143: #{noattn_forward.3} parent=83 // pred_check
          %p2437 = pneg %p471
        $region144: #{noattn_forward.3} parent=83 // pred_check_branch
          %2439 = sbr.rel (%p2437) target = $region146
        $region145: #{noattn_forward.3} parent=83 // pred_region
          _
        $region146: #{noattn_forward.3} parent=83 // pred_fallthru
          _
      $region84: #{noattn_forward.3} parent=5 // pred_fallthru
        _
      %p2440 = scmp.le.s32.totalorder 2, %s52
      // Predicated region
      $region147: #{noattn_forward.3} parent=5 // pred_check
        %p2441 = pneg %p2440
      $region148: #{noattn_forward.3} parent=5 // pred_check_branch
        %2443 = sbr.rel (%p2441) target = $region150
      $region149: #{noattn_forward.3} parent=5 // pred_region
        %s2444 = ssub.s32 %s52, 2
      $region150: #{noattn_forward.3} parent=5 // pred_fallthru
        _
    $region6: #{noattn_forward.3} parent=1 // loop_footer
      %s56 = sadd.s32 1, %s52
    $region7: #{noattn_forward.3} parent=1 // loop_footer_branch
      %51 = sbr.rel target = $region3
    $region8: #{noattn_forward.3} parent=1 // loop_exit
      _
    %2445 = vsyncpa [#allocation13], 1
    %s2446 = scalar_lea.sflag [#allocation13], 1
    %2447 = vsyncpa %s2446, 1
    %2448 = vsyncpa [#allocation15], 1
    %s2449 = scalar_lea.sflag [#allocation15], 1
    %2450 = vsyncpa %s2449, 1
    %2451 = vsyncpa [#allocation18], 1
    %s2452 = scalar_lea.sflag [#allocation18], 1
    %2453 = vsyncpa %s2452, 1
    %2454 = vsyncpa [#allocation21], 1
    %s2455 = scalar_lea.sflag [#allocation21], 1
    %2456 = vsyncpa %s2455, 1
    %2457 = vsyncpa [#allocation24], 1
    %s2458 = scalar_lea.sflag [#allocation24], 1
    %2459 = vsyncpa %s2458, 1

</llo_original>
